<compile_context>
chip_gen: v7x
topology: tpu7x:2x2x1
jax: 0.10.0
libtpu: 0.0.40
codegen_flags: <defaults>
</compile_context>

<pallas_src>
import functools

import jax
import jax.numpy as jnp
import numpy as np
from jax.experimental import pallas as pl
from jax.experimental.pallas import tpu as pltpu

_OUT_LANES = 128  # fc3 output padded to a full lane group (unmasked final store)
_BLOCK_B = 8      # images per grid step: 8*H = 256 conv1 rows, sublane-tile aligned


# ----------------------------------------------------------------------------
# In-kernel helpers (traced inside the Pallas kernel; all shapes static)
# ----------------------------------------------------------------------------
def _pool_h(x, pool):
    """Max-pool the leading (h-major) axis of an (h, b, lanes) slab by `pool`.

    Rows are (h, b)-ordered with b spanning a full sublane tile, so the reshape
    is layout-free and the reduction is whole-vreg vmax (no sublane shuffles).
    """
    hh, bb, lanes = x.shape
    x4 = x.reshape(hh // pool, pool, bb, lanes)
    m = x4[:, 0]
    for r in range(1, pool):
        m = jnp.maximum(m, x4[:, r])
    return m                                        # (hh//pool, bb, lanes)


def _pool_w_strided(x, pool, c):
    """Max-pool the lane axis (layout w*c + ch) over windows of `pool` in w,
    WITHOUT compacting: the pooled value for window wo lands at lane
    (wo*pool)*c + ch; all other lanes hold garbage that the host-side
    zero-padded downstream weights drop.  jnp.roll = 2 lane slices + 1 concat.
    """
    m = x
    for d in range(1, pool):
        m = jnp.maximum(m, jnp.roll(x, -d * c, axis=2))
    return m


# ----------------------------------------------------------------------------
# Fused forward kernel: conv1+relu+pool -> conv2+relu+pool -> flatten -> MLP.
# One block of BBLK images per grid step; all rows are (h-major, batch-minor).
# ----------------------------------------------------------------------------
def _fused_forward_kernel(x_ref, t1_ref, b1t_ref, t2_ref, b2t_ref,
                          w1_ref, b1f_ref, w2_ref, b2f_ref, w3_ref, b3f_ref,
                          o_ref, *, K, PAD, POOL):
    Hp, BBLK, W = x_ref.shape
    H = Hp - 2 * PAD
    WC1 = t1_ref.shape[2]
    C1 = WC1 // W
    H1, W1 = H // POOL, W // POOL
    W1C2 = t2_ref.shape[2]
    C2 = W1C2 // W1
    H2 = H1 // POOL
    mx = t1_ref.dtype                      # MXU operand dtype (bf16)

    # ---- conv1 + ReLU: K accumulated MXU matmuls over row-shifted views ------
    # x is pre-H-padded and (h-major, batch-minor): the kh shift is a free
    # leading-dim slice and the (H, BBLK, W) -> (H*BBLK, W) collapse is
    # sublane-tile aligned, so no XLU shuffle work feeds the MXU.
    acc1 = jnp.zeros((H * BBLK, WC1), jnp.float32)
    for kh in range(K):
        a_kh = x_ref[kh:kh + H, :, :].reshape(H * BBLK, W).astype(mx)
        acc1 = acc1 + jnp.dot(a_kh, t1_ref[kh], preferred_element_type=jnp.float32)
    o1 = jnp.maximum(acc1 + b1t_ref[...], 0.0).reshape(H, BBLK, WC1)
    m1 = _pool_w_strided(_pool_h(o1, POOL), POOL, C1)   # (H1, BBLK, W*C1) strided

    # ---- conv2 + ReLU --------------------------------------------------------
    zrows = jnp.zeros((PAD, BBLK, WC1), m1.dtype)
    xp2 = jnp.concatenate([zrows, m1, zrows], axis=0)   # H-pad on a leading dim
    acc2 = jnp.zeros((H1 * BBLK, W1C2), jnp.float32)
    for kh in range(K):
        a_kh = xp2[kh:kh + H1].reshape(H1 * BBLK, WC1).astype(mx)
        acc2 = acc2 + jnp.dot(a_kh, t2_ref[kh], preferred_element_type=jnp.float32)
    o2 = jnp.maximum(acc2 + b2t_ref[...], 0.0).reshape(H1, BBLK, W1C2)
    m2 = _pool_w_strided(_pool_h(o2, POOL), POOL, C2)   # (H2, BBLK, W1*C2) strided

    # ---- flatten + MLP: single fc1 contraction (NCHW flatten order and the
    #      strided-pool lane selection are folded into w1_ref host-side) -------
    f = jnp.concatenate([m2[ho] for ho in range(H2)], axis=1).astype(mx)  # (BBLK, H2*W1*C2)
    h = jnp.dot(f, w1_ref[...], preferred_element_type=jnp.float32) + b1f_ref[...]
    h = jnp.maximum(h, 0.0)
    h = jnp.dot(h.astype(mx), w2_ref[...], preferred_element_type=jnp.float32) + b2f_ref[...]
    h = jnp.maximum(h, 0.0)
    o_ref[0] = (jnp.dot(h.astype(mx), w3_ref[...], preferred_element_type=jnp.float32)
                + b3f_ref[...])                          # (BBLK, _OUT_LANES)


# ----------------------------------------------------------------------------
# Wrapper: one pallas_call for the whole forward
# ----------------------------------------------------------------------------
def model_synthetic_forward(x_nchw, prep, *, k, pad, pool, n_out, block_b=_BLOCK_B):
    B, Cin, H, W = x_nchw.shape
    assert Cin == 1, "conv1 expects a single input channel"
    assert k == 2 * pad + 1, "stride-1 'same' conv only"

    n_steps = pl.cdiv(B, block_b)
    BP = n_steps * block_b
    x = x_nchw.reshape(B, H, W)              # Cin == 1: NCHW == NHWC, free reshape
    if BP != B:
        x = jnp.concatenate([x, jnp.zeros((BP - B, H, W), x.dtype)], axis=0)

    # Layout plumbing (outside the kernel's serial path): H-pad once and put
    # the batch on the sublane axis -> (H + 2*pad, BP, W), h-major rows.
    xt = jnp.transpose(jnp.pad(x, ((0, 0), (pad, pad), (0, 0))), (1, 0, 2))
    Hp = H + 2 * pad

    kern = functools.partial(_fused_forward_kernel, K=k, PAD=pad, POOL=pool)
    out = pl.pallas_call(
        kern,
        out_shape=jax.ShapeDtypeStruct((n_steps, block_b, _OUT_LANES), jnp.float32),
        grid=(n_steps,),
        in_specs=[
            pl.BlockSpec((Hp, block_b, W), lambda i: (0, i, 0)),
            pl.BlockSpec(prep["t1"].shape, lambda i: (0, 0, 0)),
            pl.BlockSpec(prep["b1t"].shape, lambda i: (0, 0)),
            pl.BlockSpec(prep["t2"].shape, lambda i: (0, 0, 0)),
            pl.BlockSpec(prep["b2t"].shape, lambda i: (0, 0)),
            pl.BlockSpec(prep["w1"].shape, lambda i: (0, 0)),
            pl.BlockSpec(prep["b1f"].shape, lambda i: (0, 0)),
            pl.BlockSpec(prep["w2"].shape, lambda i: (0, 0)),
            pl.BlockSpec(prep["b2f"].shape, lambda i: (0, 0)),
            pl.BlockSpec(prep["w3"].shape, lambda i: (0, 0)),
            pl.BlockSpec(prep["b3f"].shape, lambda i: (0, 0)),
        ],
        out_specs=pl.BlockSpec((1, block_b, _OUT_LANES), lambda i: (i, 0, 0)),
        compiler_params=pltpu.CompilerParams(dimension_semantics=("parallel",)),
    )(xt, prep["t1"], prep["b1t"], prep["t2"], prep["b2t"],
      prep["w1"], prep["b1f"], prep["w2"], prep["b2f"], prep["w3"], prep["b3f"])
    return out.reshape(BP, _OUT_LANES)[:B, :n_out]


# ----------------------------------------------------------------------------
# One-time host-side repack of PyTorch-layout parameters into kernel layouts.
#   conv weights: (Cout, Cin, K, K)   linear weights: (out, in)   -- PyTorch native
# ----------------------------------------------------------------------------
def prepare_params(tp, *, k, pad, pool, H, W):
    c1w = np.asarray(tp["conv1_w"], np.float32)    # (C1, 1, K, K)
    c1b = np.asarray(tp["conv1_b"], np.float32)
    c2w = np.asarray(tp["conv2_w"], np.float32)    # (C2, C1, K, K)
    c2b = np.asarray(tp["conv2_b"], np.float32)
    f1w = np.asarray(tp["fc1_w"], np.float32)      # (N1, C2*H2*W2)
    f1b = np.asarray(tp["fc1_b"], np.float32)
    f2w = np.asarray(tp["fc2_w"], np.float32)      # (N2, N1)
    f2b = np.asarray(tp["fc2_b"], np.float32)
    f3w = np.asarray(tp["fc3_w"], np.float32)      # (N3, N2)
    f3b = np.asarray(tp["fc3_b"], np.float32)

    C1, C2 = c1w.shape[0], c2w.shape[0]
    H1, W1 = H // pool, W // pool
    H2, W2s = H1 // pool, W1 // pool
    N1, N2, N3 = f1w.shape[0], f2w.shape[0], f3w.shape[0]
    assert f1w.shape[1] == C2 * H2 * W2s
    assert N3 <= _OUT_LANES

    # conv1 banded Toeplitz, one (W, W*C1) band per kh:
    #   t1[kh, j, w*C1 + c] = conv1_w[c, 0, kh, kw],  j = w + kw - pad
    t1 = np.zeros((k, W, W, C1), np.float32)
    for kh in range(k):
        for kw in range(k):
            for w in range(W):
                j = w + kw - pad
                if 0 <= j < W:
                    t1[kh, j, w, :] = c1w[:, 0, kh, kw]
    t1 = t1.reshape(k, W, W * C1)

    # conv2 bands on the UN-compacted (strided) pool-1 layout: input lane
    # w_in*C1 + ci is valid only for w_in % pool == 0 (pooled column w_in//pool);
    # every other row stays zero so the in-place W-pool garbage is dropped.
    #   t2[kh, (wi*pool)*C1 + ci, wo*C2 + co] = conv2_w[co, ci, kh, kw], wi = wo + kw - pad
    t2 = np.zeros((k, W, C1, W1, C2), np.float32)
    for kh in range(k):
        for kw in range(k):
            for wo in range(W1):
                wi = wo + kw - pad
                if 0 <= wi < W1:
                    t2[kh, wi * pool, :, wo, :] = c2w[:, :, kh, kw].T
    t2 = t2.reshape(k, W * C1, W1 * C2)

    # fc1: fold the PyTorch NCHW flatten order AND the strided pool-2 layout.
    # Kernel lane order of the flattened activation: ho*(W1*C2) + w*C2 + co,
    # valid only at w = wo*pool.  PyTorch flat index: co*H2*W2 + ho*W2 + wo.
    f1r = f1w.reshape(N1, C2, H2, W2s)
    w1f = np.zeros((H2, W1, C2, N1), np.float32)
    for ho in range(H2):
        for wo in range(W2s):
            w1f[ho, wo * pool, :, :] = f1r[:, :, ho, wo].T
    w1f = w1f.reshape(H2 * W1 * C2, N1)

    # fc3 zero-padded to a full lane group (single unmasked final store).
    w3p = np.zeros((N2, _OUT_LANES), np.float32)
    w3p[:, :N3] = f3w.T
    b3p = np.zeros((1, _OUT_LANES), np.float32)
    b3p[0, :N3] = f3b

    mx = jnp.bfloat16   # MXU operand dtype; accumulation stays f32 in-kernel
    prep = {
        "t1": jnp.asarray(t1, mx),
        "b1t": jnp.asarray(np.tile(c1b, W).reshape(1, W * C1)),
        "t2": jnp.asarray(t2, mx),
        "b2t": jnp.asarray(np.tile(c2b, W1).reshape(1, W1 * C2)),
        "w1": jnp.asarray(w1f, mx),
        "b1f": jnp.asarray(f1b.reshape(1, N1)),
        "w2": jnp.asarray(np.ascontiguousarray(f2w.T), mx),
        "b2f": jnp.asarray(f2b.reshape(1, N2)),
        "w3": jnp.asarray(w3p, mx),
        "b3f": jnp.asarray(b3p),
    }
    return prep, int(N3)


# ----------------------------------------------------------------------------
# Plain-XLA reference (PyTorch semantics) for a correctness cross-check.
# ----------------------------------------------------------------------------
def _ref_pool(y, p):
    B, C, H, W = y.shape
    return jnp.max(y.reshape(B, C, H // p, p, W // p, p), axis=(3, 5))


def reference_forward(x_nchw, tp, *, pad, pool):
    dn = ("NCHW", "OIHW", "NCHW")
    hi = jax.lax.Precision.HIGHEST
    y = jax.lax.conv_general_dilated(x_nchw, tp["conv1_w"], (1, 1),
                                     [(pad, pad), (pad, pad)],
                                     dimension_numbers=dn, precision=hi)
    y = jnp.maximum(y + tp["conv1_b"][None, :, None, None], 0.0)
    y = _ref_pool(y, pool)
    y = jax.lax.conv_general_dilated(y, tp["conv2_w"], (1, 1),
                                     [(pad, pad), (pad, pad)],
                                     dimension_numbers=dn, precision=hi)
    y = jnp.maximum(y + tp["conv2_b"][None, :, None, None], 0.0)
    y = _ref_pool(y, pool)
    y = y.reshape(y.shape[0], -1)
    y = jnp.maximum(jnp.dot(y, tp["fc1_w"].T, precision=hi) + tp["fc1_b"], 0.0)
    y = jnp.maximum(jnp.dot(y, tp["fc2_w"].T, precision=hi) + tp["fc2_b"], 0.0)
    return jnp.dot(y, tp["fc3_w"].T, precision=hi) + tp["fc3_b"]


if __name__ == "__main__":
    # Small shapes consistent with the module's constructor.  B=16 exercises the
    # batched grid: 2 "parallel" steps of 8 images (both TensorCores on v7x).
    B = 16
    filters = [1, 8, 16]
    neurons = [64, 32, 2]
    sub_array_size = 32
    k, pool, pad = 5, 4, 2
    flat_neurons = filters[-1] * (sub_array_size // pool ** 2) ** 2   # 64

    key = jax.random.PRNGKey(0)
    ks = jax.random.split(key, 11)

    def rnd(kk, shape, scale=0.1):
        return (scale * jax.random.normal(kk, shape)).astype(jnp.float32)

    # Parameters in native PyTorch layouts: conv (Cout, Cin, K, K), linear (out, in).
    torch_params = {
        "conv1_w": rnd(ks[1], (filters[1], filters[0], k, k)),
        "conv1_b": rnd(ks[2], (filters[1],)),
        "conv2_w": rnd(ks[3], (filters[2], filters[1], k, k)),
        "conv2_b": rnd(ks[4], (filters[2],)),
        "fc1_w": rnd(ks[5], (neurons[0], flat_neurons)),
        "fc1_b": rnd(ks[6], (neurons[0],)),
        "fc2_w": rnd(ks[7], (neurons[1], neurons[0])),
        "fc2_b": rnd(ks[8], (neurons[1],)),
        "fc3_w": rnd(ks[9], (neurons[2], neurons[1])),
        "fc3_b": rnd(ks[10], (neurons[2],)),
    }
    x = rnd(ks[0], (B, filters[0], sub_array_size, sub_array_size), scale=1.0)  # NCHW

    prep, n_out = prepare_params(torch_params, k=k, pad=pad, pool=pool,
                                 H=sub_array_size, W=sub_array_size)
    fwd = jax.jit(functools.partial(model_synthetic_forward,
                                    k=k, pad=pad, pool=pool, n_out=n_out))
    out = jax.block_until_ready(fwd(x, prep))
    assert out.shape == (B, neurons[-1]), out.shape
    assert bool(jnp.all(jnp.isfinite(out)))

    # Cross-check the fused kernel against the plain-XLA f32 HIGHEST reference.
    ref = jax.block_until_ready(
        jax.jit(functools.partial(reference_forward, pad=pad, pool=pool))(x, torch_params))
    err = float(jnp.max(jnp.abs(out - ref)))
    # Kernel matmul operands are bf16 (f32 accumulate) vs the f32 reference.
    assert err < 4e-2, f"kernel/reference mismatch: max abs err = {err}"
    print("KERNEL_OK")
</pallas_src>

<mosaic_0001>
module attributes {stable_mosaic.version = 11 : i64} {
  func.func @_fused_forward_kernel(%arg0: i32, %arg1: memref<36x8x32xf32, #tpu.memory_space<vmem>>, %arg2: memref<5x32x256xbf16, #tpu.memory_space<vmem>>, %arg3: memref<1x256xf32, #tpu.memory_space<vmem>>, %arg4: memref<5x256x128xbf16, #tpu.memory_space<vmem>>, %arg5: memref<1x128xf32, #tpu.memory_space<vmem>>, %arg6: memref<256x64xbf16, #tpu.memory_space<vmem>>, %arg7: memref<1x64xf32, #tpu.memory_space<vmem>>, %arg8: memref<64x32xbf16, #tpu.memory_space<vmem>>, %arg9: memref<1x32xf32, #tpu.memory_space<vmem>>, %arg10: memref<32x128xbf16, #tpu.memory_space<vmem>>, %arg11: memref<1x128xf32, #tpu.memory_space<vmem>>, %arg12: memref<1x8x128xf32, #tpu.memory_space<vmem>>) attributes {dimension_semantics = [#tpu.dimension_semantics<parallel>], iteration_bounds = array<i64: 2>, scalar_prefetch = 0 : i64, scratch_operands = 0 : i64, tpu.core_type = #tpu.core_type<tc>, window_params = [{transform_indices = @transform_0, window_bounds = array<i64: 36, 8, 32>}, {pipeline_mode = #tpu.pipeline_mode<synchronous>, transform_indices = @transform_1, window_bounds = array<i64: 5, 32, 256>}, {pipeline_mode = #tpu.pipeline_mode<synchronous>, transform_indices = @transform_2, window_bounds = array<i64: 1, 256>}, {pipeline_mode = #tpu.pipeline_mode<synchronous>, transform_indices = @transform_3, window_bounds = array<i64: 5, 256, 128>}, {pipeline_mode = #tpu.pipeline_mode<synchronous>, transform_indices = @transform_4, window_bounds = array<i64: 1, 128>}, {pipeline_mode = #tpu.pipeline_mode<synchronous>, transform_indices = @transform_5, window_bounds = array<i64: 256, 64>}, {pipeline_mode = #tpu.pipeline_mode<synchronous>, transform_indices = @transform_6, window_bounds = array<i64: 1, 64>}, {pipeline_mode = #tpu.pipeline_mode<synchronous>, transform_indices = @transform_7, window_bounds = array<i64: 64, 32>}, {pipeline_mode = #tpu.pipeline_mode<synchronous>, transform_indices = @transform_8, window_bounds = array<i64: 1, 32>}, {pipeline_mode = #tpu.pipeline_mode<synchronous>, transform_indices = @transform_9, window_bounds = array<i64: 32, 128>}, {pipeline_mode = #tpu.pipeline_mode<synchronous>, transform_indices = @transform_10, window_bounds = array<i64: 1, 128>}, {transform_indices = @transform_11, window_bounds = array<i64: 1, 8, 128>}]} {
    %cst = arith.constant 0.000000e+00 : f32
    %0 = vector.broadcast %cst : f32 to vector<256x256xf32>
    %c0 = arith.constant 0 : index
    %c0_0 = arith.constant 0 : index
    %c0_1 = arith.constant 0 : index
    %1 = vector.load %arg1[%c0, %c0_0, %c0_1] : memref<36x8x32xf32, #tpu.memory_space<vmem>>, vector<32x8x32xf32>
    %2 = vector.shape_cast %1 : vector<32x8x32xf32> to vector<256x32xf32>
    %3 = arith.truncf %2 : vector<256x32xf32> to vector<256x32xbf16>
    %c0_2 = arith.constant 0 : index
    %c0_3 = arith.constant 0 : index
    %c0_4 = arith.constant 0 : index
    %4 = vector.load %arg2[%c0_2, %c0_3, %c0_4] : memref<5x32x256xbf16, #tpu.memory_space<vmem>>, vector<1x32x256xbf16>
    %5 = vector.shape_cast %4 : vector<1x32x256xbf16> to vector<32x256xbf16>
    %cst_5 = arith.constant dense<0.000000e+00> : vector<256x256xf32>
    %6 = tpu.matmul %3, %5, %cst_5 {dimension_numbers = #tpu.dot_dimension_numbers<[1], [0], [0], [1], [0, 0, 1, 1], [], []>} : vector<256x32xbf16>, vector<32x256xbf16>, vector<256x256xf32> -> vector<256x256xf32>
    %7 = arith.addf %0, %6 : vector<256x256xf32>
    %c1 = arith.constant 1 : index
    %c0_6 = arith.constant 0 : index
    %c0_7 = arith.constant 0 : index
    %8 = vector.load %arg1[%c1, %c0_6, %c0_7] : memref<36x8x32xf32, #tpu.memory_space<vmem>>, vector<32x8x32xf32>
    %9 = vector.shape_cast %8 : vector<32x8x32xf32> to vector<256x32xf32>
    %10 = arith.truncf %9 : vector<256x32xf32> to vector<256x32xbf16>
    %c1_8 = arith.constant 1 : index
    %c0_9 = arith.constant 0 : index
    %c0_10 = arith.constant 0 : index
    %11 = vector.load %arg2[%c1_8, %c0_9, %c0_10] : memref<5x32x256xbf16, #tpu.memory_space<vmem>>, vector<1x32x256xbf16>
    %12 = vector.shape_cast %11 : vector<1x32x256xbf16> to vector<32x256xbf16>
    %cst_11 = arith.constant dense<0.000000e+00> : vector<256x256xf32>
    %13 = tpu.matmul %10, %12, %cst_11 {dimension_numbers = #tpu.dot_dimension_numbers<[1], [0], [0], [1], [0, 0, 1, 1], [], []>} : vector<256x32xbf16>, vector<32x256xbf16>, vector<256x256xf32> -> vector<256x256xf32>
    %14 = arith.addf %7, %13 : vector<256x256xf32>
    %c2 = arith.constant 2 : index
    %c0_12 = arith.constant 0 : index
    %c0_13 = arith.constant 0 : index
    %15 = vector.load %arg1[%c2, %c0_12, %c0_13] : memref<36x8x32xf32, #tpu.memory_space<vmem>>, vector<32x8x32xf32>
    %16 = vector.shape_cast %15 : vector<32x8x32xf32> to vector<256x32xf32>
    %17 = arith.truncf %16 : vector<256x32xf32> to vector<256x32xbf16>
    %c2_14 = arith.constant 2 : index
    %c0_15 = arith.constant 0 : index
    %c0_16 = arith.constant 0 : index
    %18 = vector.load %arg2[%c2_14, %c0_15, %c0_16] : memref<5x32x256xbf16, #tpu.memory_space<vmem>>, vector<1x32x256xbf16>
    %19 = vector.shape_cast %18 : vector<1x32x256xbf16> to vector<32x256xbf16>
    %cst_17 = arith.constant dense<0.000000e+00> : vector<256x256xf32>
    %20 = tpu.matmul %17, %19, %cst_17 {dimension_numbers = #tpu.dot_dimension_numbers<[1], [0], [0], [1], [0, 0, 1, 1], [], []>} : vector<256x32xbf16>, vector<32x256xbf16>, vector<256x256xf32> -> vector<256x256xf32>
    %21 = arith.addf %14, %20 : vector<256x256xf32>
    %c3 = arith.constant 3 : index
    %c0_18 = arith.constant 0 : index
    %c0_19 = arith.constant 0 : index
    %22 = vector.load %arg1[%c3, %c0_18, %c0_19] : memref<36x8x32xf32, #tpu.memory_space<vmem>>, vector<32x8x32xf32>
    %23 = vector.shape_cast %22 : vector<32x8x32xf32> to vector<256x32xf32>
    %24 = arith.truncf %23 : vector<256x32xf32> to vector<256x32xbf16>
    %c3_20 = arith.constant 3 : index
    %c0_21 = arith.constant 0 : index
    %c0_22 = arith.constant 0 : index
    %25 = vector.load %arg2[%c3_20, %c0_21, %c0_22] : memref<5x32x256xbf16, #tpu.memory_space<vmem>>, vector<1x32x256xbf16>
    %26 = vector.shape_cast %25 : vector<1x32x256xbf16> to vector<32x256xbf16>
    %cst_23 = arith.constant dense<0.000000e+00> : vector<256x256xf32>
    %27 = tpu.matmul %24, %26, %cst_23 {dimension_numbers = #tpu.dot_dimension_numbers<[1], [0], [0], [1], [0, 0, 1, 1], [], []>} : vector<256x32xbf16>, vector<32x256xbf16>, vector<256x256xf32> -> vector<256x256xf32>
    %28 = arith.addf %21, %27 : vector<256x256xf32>
    %c4 = arith.constant 4 : index
    %c0_24 = arith.constant 0 : index
    %c0_25 = arith.constant 0 : index
    %29 = vector.load %arg1[%c4, %c0_24, %c0_25] : memref<36x8x32xf32, #tpu.memory_space<vmem>>, vector<32x8x32xf32>
    %30 = vector.shape_cast %29 : vector<32x8x32xf32> to vector<256x32xf32>
    %31 = arith.truncf %30 : vector<256x32xf32> to vector<256x32xbf16>
    %c4_26 = arith.constant 4 : index
    %c0_27 = arith.constant 0 : index
    %c0_28 = arith.constant 0 : index
    %32 = vector.load %arg2[%c4_26, %c0_27, %c0_28] : memref<5x32x256xbf16, #tpu.memory_space<vmem>>, vector<1x32x256xbf16>
    %33 = vector.shape_cast %32 : vector<1x32x256xbf16> to vector<32x256xbf16>
    %cst_29 = arith.constant dense<0.000000e+00> : vector<256x256xf32>
    %34 = tpu.matmul %31, %33, %cst_29 {dimension_numbers = #tpu.dot_dimension_numbers<[1], [0], [0], [1], [0, 0, 1, 1], [], []>} : vector<256x32xbf16>, vector<32x256xbf16>, vector<256x256xf32> -> vector<256x256xf32>
    %35 = arith.addf %28, %34 : vector<256x256xf32>
    %c0_30 = arith.constant 0 : index
    %c0_31 = arith.constant 0 : index
    %36 = vector.load %arg3[%c0_30, %c0_31] : memref<1x256xf32, #tpu.memory_space<vmem>>, vector<1x256xf32>
    %37 = vector.broadcast %36 : vector<1x256xf32> to vector<256x256xf32>
    %38 = arith.addf %35, %37 : vector<256x256xf32>
    %cst_32 = arith.constant 0.000000e+00 : f32
    %39 = vector.broadcast %cst_32 : f32 to vector<256x256xf32>
    %40 = arith.maximumf %38, %39 : vector<256x256xf32>
    %41 = vector.shape_cast %40 : vector<256x256xf32> to vector<32x8x256xf32>
    %42 = vector.shape_cast %41 : vector<32x8x256xf32> to vector<8x4x8x256xf32>
    %43 = vector.extract_strided_slice %42 {offsets = [0, 0, 0, 0], sizes = [8, 1, 8, 256], strides = [1, 1, 1, 1]} : vector<8x4x8x256xf32> to vector<8x1x8x256xf32>
    %44 = vector.shape_cast %43 : vector<8x1x8x256xf32> to vector<8x8x256xf32>
    %45 = vector.extract_strided_slice %42 {offsets = [0, 1, 0, 0], sizes = [8, 1, 8, 256], strides = [1, 1, 1, 1]} : vector<8x4x8x256xf32> to vector<8x1x8x256xf32>
    %46 = vector.shape_cast %45 : vector<8x1x8x256xf32> to vector<8x8x256xf32>
    %47 = arith.maximumf %44, %46 : vector<8x8x256xf32>
    %48 = vector.extract_strided_slice %42 {offsets = [0, 2, 0, 0], sizes = [8, 1, 8, 256], strides = [1, 1, 1, 1]} : vector<8x4x8x256xf32> to vector<8x1x8x256xf32>
    %49 = vector.shape_cast %48 : vector<8x1x8x256xf32> to vector<8x8x256xf32>
    %50 = arith.maximumf %47, %49 : vector<8x8x256xf32>
    %51 = vector.extract_strided_slice %42 {offsets = [0, 3, 0, 0], sizes = [8, 1, 8, 256], strides = [1, 1, 1, 1]} : vector<8x4x8x256xf32> to vector<8x1x8x256xf32>
    %52 = vector.shape_cast %51 : vector<8x1x8x256xf32> to vector<8x8x256xf32>
    %53 = arith.maximumf %50, %52 : vector<8x8x256xf32>
    %54 = vector.extract_strided_slice %53 {offsets = [0, 0, 8], sizes = [8, 8, 248], strides = [1, 1, 1]} : vector<8x8x256xf32> to vector<8x8x248xf32>
    %55 = vector.extract_strided_slice %53 {offsets = [0, 0, 0], sizes = [8, 8, 8], strides = [1, 1, 1]} : vector<8x8x256xf32> to vector<8x8x8xf32>
    %56 = tpu.concatenate %54, %55 in 2 : vector<8x8x248xf32>, vector<8x8x8xf32> -> vector<8x8x256xf32>
    %57 = arith.maximumf %53, %56 : vector<8x8x256xf32>
    %58 = vector.extract_strided_slice %53 {offsets = [0, 0, 16], sizes = [8, 8, 240], strides = [1, 1, 1]} : vector<8x8x256xf32> to vector<8x8x240xf32>
    %59 = vector.extract_strided_slice %53 {offsets = [0, 0, 0], sizes = [8, 8, 16], strides = [1, 1, 1]} : vector<8x8x256xf32> to vector<8x8x16xf32>
    %60 = tpu.concatenate %58, %59 in 2 : vector<8x8x240xf32>, vector<8x8x16xf32> -> vector<8x8x256xf32>
    %61 = arith.maximumf %57, %60 : vector<8x8x256xf32>
    %62 = vector.extract_strided_slice %53 {offsets = [0, 0, 24], sizes = [8, 8, 232], strides = [1, 1, 1]} : vector<8x8x256xf32> to vector<8x8x232xf32>
    %63 = vector.extract_strided_slice %53 {offsets = [0, 0, 0], sizes = [8, 8, 24], strides = [1, 1, 1]} : vector<8x8x256xf32> to vector<8x8x24xf32>
    %64 = tpu.concatenate %62, %63 in 2 : vector<8x8x232xf32>, vector<8x8x24xf32> -> vector<8x8x256xf32>
    %65 = arith.maximumf %61, %64 : vector<8x8x256xf32>
    %cst_33 = arith.constant 0.000000e+00 : f32
    %66 = vector.broadcast %cst_33 : f32 to vector<2x8x256xf32>
    %67 = tpu.concatenate %66, %65, %66 in 0 : vector<2x8x256xf32>, vector<8x8x256xf32>, vector<2x8x256xf32> -> vector<12x8x256xf32>
    %cst_34 = arith.constant 0.000000e+00 : f32
    %68 = vector.broadcast %cst_34 : f32 to vector<64x128xf32>
    %69 = vector.extract_strided_slice %67 {offsets = [0, 0, 0], sizes = [8, 8, 256], strides = [1, 1, 1]} : vector<12x8x256xf32> to vector<8x8x256xf32>
    %70 = vector.shape_cast %69 : vector<8x8x256xf32> to vector<64x256xf32>
    %71 = arith.truncf %70 : vector<64x256xf32> to vector<64x256xbf16>
    %c0_35 = arith.constant 0 : index
    %c0_36 = arith.constant 0 : index
    %c0_37 = arith.constant 0 : index
    %72 = vector.load %arg4[%c0_35, %c0_36, %c0_37] : memref<5x256x128xbf16, #tpu.memory_space<vmem>>, vector<1x256x128xbf16>
    %73 = vector.shape_cast %72 : vector<1x256x128xbf16> to vector<256x128xbf16>
    %cst_38 = arith.constant dense<0.000000e+00> : vector<64x128xf32>
    %74 = tpu.matmul %71, %73, %cst_38 {dimension_numbers = #tpu.dot_dimension_numbers<[1], [0], [0], [1], [0, 0, 1, 1], [], []>} : vector<64x256xbf16>, vector<256x128xbf16>, vector<64x128xf32> -> vector<64x128xf32>
    %75 = arith.addf %68, %74 : vector<64x128xf32>
    %76 = vector.extract_strided_slice %67 {offsets = [1, 0, 0], sizes = [8, 8, 256], strides = [1, 1, 1]} : vector<12x8x256xf32> to vector<8x8x256xf32>
    %77 = vector.shape_cast %76 : vector<8x8x256xf32> to vector<64x256xf32>
    %78 = arith.truncf %77 : vector<64x256xf32> to vector<64x256xbf16>
    %c1_39 = arith.constant 1 : index
    %c0_40 = arith.constant 0 : index
    %c0_41 = arith.constant 0 : index
    %79 = vector.load %arg4[%c1_39, %c0_40, %c0_41] : memref<5x256x128xbf16, #tpu.memory_space<vmem>>, vector<1x256x128xbf16>
    %80 = vector.shape_cast %79 : vector<1x256x128xbf16> to vector<256x128xbf16>
    %cst_42 = arith.constant dense<0.000000e+00> : vector<64x128xf32>
    %81 = tpu.matmul %78, %80, %cst_42 {dimension_numbers = #tpu.dot_dimension_numbers<[1], [0], [0], [1], [0, 0, 1, 1], [], []>} : vector<64x256xbf16>, vector<256x128xbf16>, vector<64x128xf32> -> vector<64x128xf32>
    %82 = arith.addf %75, %81 : vector<64x128xf32>
    %83 = vector.extract_strided_slice %67 {offsets = [2, 0, 0], sizes = [8, 8, 256], strides = [1, 1, 1]} : vector<12x8x256xf32> to vector<8x8x256xf32>
    %84 = vector.shape_cast %83 : vector<8x8x256xf32> to vector<64x256xf32>
    %85 = arith.truncf %84 : vector<64x256xf32> to vector<64x256xbf16>
    %c2_43 = arith.constant 2 : index
    %c0_44 = arith.constant 0 : index
    %c0_45 = arith.constant 0 : index
    %86 = vector.load %arg4[%c2_43, %c0_44, %c0_45] : memref<5x256x128xbf16, #tpu.memory_space<vmem>>, vector<1x256x128xbf16>
    %87 = vector.shape_cast %86 : vector<1x256x128xbf16> to vector<256x128xbf16>
    %cst_46 = arith.constant dense<0.000000e+00> : vector<64x128xf32>
    %88 = tpu.matmul %85, %87, %cst_46 {dimension_numbers = #tpu.dot_dimension_numbers<[1], [0], [0], [1], [0, 0, 1, 1], [], []>} : vector<64x256xbf16>, vector<256x128xbf16>, vector<64x128xf32> -> vector<64x128xf32>
    %89 = arith.addf %82, %88 : vector<64x128xf32>
    %90 = vector.extract_strided_slice %67 {offsets = [3, 0, 0], sizes = [8, 8, 256], strides = [1, 1, 1]} : vector<12x8x256xf32> to vector<8x8x256xf32>
    %91 = vector.shape_cast %90 : vector<8x8x256xf32> to vector<64x256xf32>
    %92 = arith.truncf %91 : vector<64x256xf32> to vector<64x256xbf16>
    %c3_47 = arith.constant 3 : index
    %c0_48 = arith.constant 0 : index
    %c0_49 = arith.constant 0 : index
    %93 = vector.load %arg4[%c3_47, %c0_48, %c0_49] : memref<5x256x128xbf16, #tpu.memory_space<vmem>>, vector<1x256x128xbf16>
    %94 = vector.shape_cast %93 : vector<1x256x128xbf16> to vector<256x128xbf16>
    %cst_50 = arith.constant dense<0.000000e+00> : vector<64x128xf32>
    %95 = tpu.matmul %92, %94, %cst_50 {dimension_numbers = #tpu.dot_dimension_numbers<[1], [0], [0], [1], [0, 0, 1, 1], [], []>} : vector<64x256xbf16>, vector<256x128xbf16>, vector<64x128xf32> -> vector<64x128xf32>
    %96 = arith.addf %89, %95 : vector<64x128xf32>
    %97 = vector.extract_strided_slice %67 {offsets = [4, 0, 0], sizes = [8, 8, 256], strides = [1, 1, 1]} : vector<12x8x256xf32> to vector<8x8x256xf32>
    %98 = vector.shape_cast %97 : vector<8x8x256xf32> to vector<64x256xf32>
    %99 = arith.truncf %98 : vector<64x256xf32> to vector<64x256xbf16>
    %c4_51 = arith.constant 4 : index
    %c0_52 = arith.constant 0 : index
    %c0_53 = arith.constant 0 : index
    %100 = vector.load %arg4[%c4_51, %c0_52, %c0_53] : memref<5x256x128xbf16, #tpu.memory_space<vmem>>, vector<1x256x128xbf16>
    %101 = vector.shape_cast %100 : vector<1x256x128xbf16> to vector<256x128xbf16>
    %cst_54 = arith.constant dense<0.000000e+00> : vector<64x128xf32>
    %102 = tpu.matmul %99, %101, %cst_54 {dimension_numbers = #tpu.dot_dimension_numbers<[1], [0], [0], [1], [0, 0, 1, 1], [], []>} : vector<64x256xbf16>, vector<256x128xbf16>, vector<64x128xf32> -> vector<64x128xf32>
    %103 = arith.addf %96, %102 : vector<64x128xf32>
    %c0_55 = arith.constant 0 : index
    %c0_56 = arith.constant 0 : index
    %104 = vector.load %arg5[%c0_55, %c0_56] : memref<1x128xf32, #tpu.memory_space<vmem>>, vector<1x128xf32>
    %105 = vector.broadcast %104 : vector<1x128xf32> to vector<64x128xf32>
    %106 = arith.addf %103, %105 : vector<64x128xf32>
    %cst_57 = arith.constant 0.000000e+00 : f32
    %107 = vector.broadcast %cst_57 : f32 to vector<64x128xf32>
    %108 = arith.maximumf %106, %107 : vector<64x128xf32>
    %109 = vector.shape_cast %108 : vector<64x128xf32> to vector<8x8x128xf32>
    %110 = vector.shape_cast %109 : vector<8x8x128xf32> to vector<2x4x8x128xf32>
    %111 = vector.extract_strided_slice %110 {offsets = [0, 0, 0, 0], sizes = [2, 1, 8, 128], strides = [1, 1, 1, 1]} : vector<2x4x8x128xf32> to vector<2x1x8x128xf32>
    %112 = vector.shape_cast %111 : vector<2x1x8x128xf32> to vector<2x8x128xf32>
    %113 = vector.extract_strided_slice %110 {offsets = [0, 1, 0, 0], sizes = [2, 1, 8, 128], strides = [1, 1, 1, 1]} : vector<2x4x8x128xf32> to vector<2x1x8x128xf32>
    %114 = vector.shape_cast %113 : vector<2x1x8x128xf32> to vector<2x8x128xf32>
    %115 = arith.maximumf %112, %114 : vector<2x8x128xf32>
    %116 = vector.extract_strided_slice %110 {offsets = [0, 2, 0, 0], sizes = [2, 1, 8, 128], strides = [1, 1, 1, 1]} : vector<2x4x8x128xf32> to vector<2x1x8x128xf32>
    %117 = vector.shape_cast %116 : vector<2x1x8x128xf32> to vector<2x8x128xf32>
    %118 = arith.maximumf %115, %117 : vector<2x8x128xf32>
    %119 = vector.extract_strided_slice %110 {offsets = [0, 3, 0, 0], sizes = [2, 1, 8, 128], strides = [1, 1, 1, 1]} : vector<2x4x8x128xf32> to vector<2x1x8x128xf32>
    %120 = vector.shape_cast %119 : vector<2x1x8x128xf32> to vector<2x8x128xf32>
    %121 = arith.maximumf %118, %120 : vector<2x8x128xf32>
    %122 = vector.extract_strided_slice %121 {offsets = [0, 0, 16], sizes = [2, 8, 112], strides = [1, 1, 1]} : vector<2x8x128xf32> to vector<2x8x112xf32>
    %123 = vector.extract_strided_slice %121 {offsets = [0, 0, 0], sizes = [2, 8, 16], strides = [1, 1, 1]} : vector<2x8x128xf32> to vector<2x8x16xf32>
    %124 = tpu.concatenate %122, %123 in 2 : vector<2x8x112xf32>, vector<2x8x16xf32> -> vector<2x8x128xf32>
    %125 = arith.maximumf %121, %124 : vector<2x8x128xf32>
    %126 = vector.extract_strided_slice %121 {offsets = [0, 0, 32], sizes = [2, 8, 96], strides = [1, 1, 1]} : vector<2x8x128xf32> to vector<2x8x96xf32>
    %127 = vector.extract_strided_slice %121 {offsets = [0, 0, 0], sizes = [2, 8, 32], strides = [1, 1, 1]} : vector<2x8x128xf32> to vector<2x8x32xf32>
    %128 = tpu.concatenate %126, %127 in 2 : vector<2x8x96xf32>, vector<2x8x32xf32> -> vector<2x8x128xf32>
    %129 = arith.maximumf %125, %128 : vector<2x8x128xf32>
    %130 = vector.extract_strided_slice %121 {offsets = [0, 0, 48], sizes = [2, 8, 80], strides = [1, 1, 1]} : vector<2x8x128xf32> to vector<2x8x80xf32>
    %131 = vector.extract_strided_slice %121 {offsets = [0, 0, 0], sizes = [2, 8, 48], strides = [1, 1, 1]} : vector<2x8x128xf32> to vector<2x8x48xf32>
    %132 = tpu.concatenate %130, %131 in 2 : vector<2x8x80xf32>, vector<2x8x48xf32> -> vector<2x8x128xf32>
    %133 = arith.maximumf %129, %132 : vector<2x8x128xf32>
    %134 = vector.extract_strided_slice %133 {offsets = [0, 0, 0], sizes = [1, 8, 128], strides = [1, 1, 1]} : vector<2x8x128xf32> to vector<1x8x128xf32>
    %135 = vector.shape_cast %134 : vector<1x8x128xf32> to vector<8x128xf32>
    %136 = vector.extract_strided_slice %133 {offsets = [1, 0, 0], sizes = [1, 8, 128], strides = [1, 1, 1]} : vector<2x8x128xf32> to vector<1x8x128xf32>
    %137 = vector.shape_cast %136 : vector<1x8x128xf32> to vector<8x128xf32>
    %138 = tpu.concatenate %135, %137 in 1 : vector<8x128xf32>, vector<8x128xf32> -> vector<8x256xf32>
    %139 = arith.truncf %138 : vector<8x256xf32> to vector<8x256xbf16>
    %c0_58 = arith.constant 0 : index
    %c0_59 = arith.constant 0 : index
    %140 = vector.load %arg6[%c0_58, %c0_59] : memref<256x64xbf16, #tpu.memory_space<vmem>>, vector<256x64xbf16>
    %cst_60 = arith.constant dense<0.000000e+00> : vector<8x64xf32>
    %141 = tpu.matmul %139, %140, %cst_60 {dimension_numbers = #tpu.dot_dimension_numbers<[1], [0], [0], [1], [0, 0, 1, 1], [], []>} : vector<8x256xbf16>, vector<256x64xbf16>, vector<8x64xf32> -> vector<8x64xf32>
    %c0_61 = arith.constant 0 : index
    %c0_62 = arith.constant 0 : index
    %142 = vector.load %arg7[%c0_61, %c0_62] : memref<1x64xf32, #tpu.memory_space<vmem>>, vector<1x64xf32>
    %143 = vector.broadcast %142 : vector<1x64xf32> to vector<8x64xf32>
    %144 = arith.addf %141, %143 : vector<8x64xf32>
    %cst_63 = arith.constant 0.000000e+00 : f32
    %145 = vector.broadcast %cst_63 : f32 to vector<8x64xf32>
    %146 = arith.maximumf %144, %145 : vector<8x64xf32>
    %147 = arith.truncf %146 : vector<8x64xf32> to vector<8x64xbf16>
    %c0_64 = arith.constant 0 : index
    %c0_65 = arith.constant 0 : index
    %148 = vector.load %arg8[%c0_64, %c0_65] : memref<64x32xbf16, #tpu.memory_space<vmem>>, vector<64x32xbf16>
    %cst_66 = arith.constant dense<0.000000e+00> : vector<8x32xf32>
    %149 = tpu.matmul %147, %148, %cst_66 {dimension_numbers = #tpu.dot_dimension_numbers<[1], [0], [0], [1], [0, 0, 1, 1], [], []>} : vector<8x64xbf16>, vector<64x32xbf16>, vector<8x32xf32> -> vector<8x32xf32>
    %c0_67 = arith.constant 0 : index
    %c0_68 = arith.constant 0 : index
    %150 = vector.load %arg9[%c0_67, %c0_68] : memref<1x32xf32, #tpu.memory_space<vmem>>, vector<1x32xf32>
    %151 = vector.broadcast %150 : vector<1x32xf32> to vector<8x32xf32>
    %152 = arith.addf %149, %151 : vector<8x32xf32>
    %cst_69 = arith.constant 0.000000e+00 : f32
    %153 = vector.broadcast %cst_69 : f32 to vector<8x32xf32>
    %154 = arith.maximumf %152, %153 : vector<8x32xf32>
    %155 = arith.truncf %154 : vector<8x32xf32> to vector<8x32xbf16>
    %c0_70 = arith.constant 0 : index
    %c0_71 = arith.constant 0 : index
    %156 = vector.load %arg10[%c0_70, %c0_71] : memref<32x128xbf16, #tpu.memory_space<vmem>>, vector<32x128xbf16>
    %cst_72 = arith.constant dense<0.000000e+00> : vector<8x128xf32>
    %157 = tpu.matmul %155, %156, %cst_72 {dimension_numbers = #tpu.dot_dimension_numbers<[1], [0], [0], [1], [0, 0, 1, 1], [], []>} : vector<8x32xbf16>, vector<32x128xbf16>, vector<8x128xf32> -> vector<8x128xf32>
    %c0_73 = arith.constant 0 : index
    %c0_74 = arith.constant 0 : index
    %158 = vector.load %arg11[%c0_73, %c0_74] : memref<1x128xf32, #tpu.memory_space<vmem>>, vector<1x128xf32>
    %159 = vector.broadcast %158 : vector<1x128xf32> to vector<8x128xf32>
    %160 = arith.addf %157, %159 : vector<8x128xf32>
    %c0_75 = arith.constant 0 : index
    %c0_76 = arith.constant 0 : index
    %c0_77 = arith.constant 0 : index
    %161 = vector.load %arg12[%c0_75, %c0_76, %c0_77] : memref<1x8x128xf32, #tpu.memory_space<vmem>>, vector<1x8x128xf32>
    %162 = vector.shape_cast %161 : vector<1x8x128xf32> to vector<8x128xf32>
    %163 = vector.shape_cast %160 : vector<8x128xf32> to vector<1x8x128xf32>
    tpu.vector_store %arg12[%c0_75, %c0_76, %c0_77], %163 {strides = array<i32>} : memref<1x8x128xf32, #tpu.memory_space<vmem>>, vector<1x8x128xf32>,
    return
  }
  func.func @transform_0(%arg0: i32) -> (i32, i32, i32) {
    %c0_i32 = arith.constant 0 : i32
    %c0_i32_0 = arith.constant 0 : i32
    %c0_i32_1 = arith.constant 0 : i32
    return %c0_i32, %arg0, %c0_i32_0 : i32, i32, i32
  }
  func.func @transform_1(%arg0: i32) -> (i32, i32, i32) {
    %c0_i32 = arith.constant 0 : i32
    %c0_i32_0 = arith.constant 0 : i32
    %c0_i32_1 = arith.constant 0 : i32
    %c0_i32_2 = arith.constant 0 : i32
    return %c0_i32, %c0_i32_0, %c0_i32_1 : i32, i32, i32
  }
  func.func @transform_2(%arg0: i32) -> (i32, i32) {
    %c0_i32 = arith.constant 0 : i32
    %c0_i32_0 = arith.constant 0 : i32
    %c0_i32_1 = arith.constant 0 : i32
    return %c0_i32, %c0_i32_0 : i32, i32
  }
  func.func @transform_3(%arg0: i32) -> (i32, i32, i32) {
    %c0_i32 = arith.constant 0 : i32
    %c0_i32_0 = arith.constant 0 : i32
    %c0_i32_1 = arith.constant 0 : i32
    %c0_i32_2 = arith.constant 0 : i32
    return %c0_i32, %c0_i32_0, %c0_i32_1 : i32, i32, i32
  }
  func.func @transform_4(%arg0: i32) -> (i32, i32) {
    %c0_i32 = arith.constant 0 : i32
    %c0_i32_0 = arith.constant 0 : i32
    %c0_i32_1 = arith.constant 0 : i32
    return %c0_i32, %c0_i32_0 : i32, i32
  }
  func.func @transform_5(%arg0: i32) -> (i32, i32) {
    %c0_i32 = arith.constant 0 : i32
    %c0_i32_0 = arith.constant 0 : i32
    %c0_i32_1 = arith.constant 0 : i32
    return %c0_i32, %c0_i32_0 : i32, i32
  }
  func.func @transform_6(%arg0: i32) -> (i32, i32) {
    %c0_i32 = arith.constant 0 : i32
    %c0_i32_0 = arith.constant 0 : i32
    %c0_i32_1 = arith.constant 0 : i32
    return %c0_i32, %c0_i32_0 : i32, i32
  }
  func.func @transform_7(%arg0: i32) -> (i32, i32) {
    %c0_i32 = arith.constant 0 : i32
    %c0_i32_0 = arith.constant 0 : i32
    %c0_i32_1 = arith.constant 0 : i32
    return %c0_i32, %c0_i32_0 : i32, i32
  }
  func.func @transform_8(%arg0: i32) -> (i32, i32) {
    %c0_i32 = arith.constant 0 : i32
    %c0_i32_0 = arith.constant 0 : i32
    %c0_i32_1 = arith.constant 0 : i32
    return %c0_i32, %c0_i32_0 : i32, i32
  }
  func.func @transform_9(%arg0: i32) -> (i32, i32) {
    %c0_i32 = arith.constant 0 : i32
    %c0_i32_0 = arith.constant 0 : i32
    %c0_i32_1 = arith.constant 0 : i32
    return %c0_i32, %c0_i32_0 : i32, i32
  }
  func.func @transform_10(%arg0: i32) -> (i32, i32) {
    %c0_i32 = arith.constant 0 : i32
    %c0_i32_0 = arith.constant 0 : i32
    %c0_i32_1 = arith.constant 0 : i32
    return %c0_i32, %c0_i32_0 : i32, i32
  }
  func.func @transform_11(%arg0: i32) -> (i32, i32, i32) {
    %c0_i32 = arith.constant 0 : i32
    %c0_i32_0 = arith.constant 0 : i32
    %c0_i32_1 = arith.constant 0 : i32
    return %arg0, %c0_i32, %c0_i32_0 : i32, i32, i32
  }
}

</mosaic_0001>

<llo_original>
// kernel: model_synthetic_forward.1
$region0: #{model_synthetic_forward.1}
  #allocation0 [shape = 'u32[]', space=smem, size = 0x4, offset = 0x4, fixed_abs, tag = 'smem constant byte address 0x4 - core index']
  #allocation1 [shape = 'u32[144,128]{1,0:T(1,128)}', space=vmem, size = 0x12000, scoped, tag = 'internal scratch']
  %s0 = inlined_call_operand.vmem [shape: f32[36,16,32], index: 0, kind: input, shape index: {}]
  %s1 = inlined_call_operand.vmem [shape: bf16[5,32,256], index: 1, kind: input, shape index: {}]
  %s2 = inlined_call_operand.vmem [shape: f32[1,256], index: 2, kind: input, shape index: {}]
  %s3 = inlined_call_operand.vmem [shape: bf16[5,256,128], index: 3, kind: input, shape index: {}]
  %s4 = inlined_call_operand.vmem [shape: f32[1,128], index: 4, kind: input, shape index: {}]
  %s5 = inlined_call_operand.vmem [shape: bf16[256,64], index: 5, kind: input, shape index: {}]
  %s6 = inlined_call_operand.vmem [shape: f32[1,64], index: 6, kind: input, shape index: {}]
  %s7 = inlined_call_operand.vmem [shape: bf16[64,32], index: 7, kind: input, shape index: {}]
  %s8 = inlined_call_operand.vmem [shape: f32[1,32], index: 8, kind: input, shape index: {}]
  %s9 = inlined_call_operand.vmem [shape: bf16[32,128], index: 9, kind: input, shape index: {}]
  %s10 = inlined_call_operand.vmem [shape: f32[1,128], index: 10, kind: input, shape index: {}]
  %s11 = inlined_call_operand.vmem [shape: f32[2,8,128], index: 11, kind: output, shape index: {}]
  %s12 = sld [smem:[#allocation0]]
  $region115: #{model_synthetic_forward.1} parent=0
    _
  %s14 = ssub.s32 1, %s12
  %s15 = scalar_select 0, %s14, %s12
  $region1: #{model_synthetic_forward.1} parent=0
    #allocation2 [shape = 'u8[294912]{0}', space=vmem, size = 0x48000, scoped, tag = 'input window, operand 0']
    loop: start=0, step=1, limit=4
    $region2: #{model_synthetic_forward.1} parent=1 // loop_pre_header
      _
    $region3: #{model_synthetic_forward.1} parent=1 // loop_header
      %s17 = sphi 0, %s21
      %p18 = scmp.ge.s32.totalorder %s17, 4
      %s27 = sphi 0, %s29
      %s30 = sphi 0, %s27
      %s31 = sphi 0, %s30
      %s47 = sphi 0, %s31
      %s51 = sphi 0, %s51
      %s53 = sphi 0, %s51
      %s54 = sphi 0, %s53
      %s68 = sphi 0, %s54
      %s72 = sphi 0, %s72
      %s74 = sphi 0, %s72
      %s75 = sphi 0, %s74
      %s89 = sphi 0, %s75
      %s93 = sphi 0, %s93
      %s95 = sphi 0, %s93
      %s96 = sphi 0, %s95
      %s110 = sphi 0, %s96
      %s114 = sphi 0, %s114
      %s116 = sphi 0, %s114
      %s117 = sphi 0, %s116
      %s131 = sphi 0, %s117
      %s135 = sphi 0, %s135
      %s137 = sphi 0, %s135
      %s138 = sphi 0, %s137
      %s152 = sphi 0, %s138
      %s156 = sphi 0, %s156
      %s158 = sphi 0, %s156
      %s159 = sphi 0, %s158
      %s173 = sphi 0, %s159
      %s177 = sphi 0, %s177
      %s179 = sphi 0, %s177
      %s180 = sphi 0, %s179
      %s194 = sphi 0, %s180
      %s198 = sphi 0, %s198
      %s200 = sphi 0, %s198
      %s201 = sphi 0, %s200
      %s215 = sphi 0, %s201
      %s219 = sphi 0, %s219
      %s221 = sphi 0, %s219
      %s222 = sphi 0, %s221
      %s236 = sphi 0, %s222
      %s240 = sphi 0, %s240
      %s242 = sphi 0, %s240
      %s243 = sphi 0, %s242
      %s257 = sphi 0, %s243
      %s263 = sphi 0, %s265
      %s266 = sphi 0, %s263
      %s267 = sphi 0, %s266
      %s283 = sphi 0, %s267
    $region4: #{model_synthetic_forward.1} parent=1 // loop_header_branch
      %20 = sbr.rel (%p18) target = $region8
    $region5: #{model_synthetic_forward.1} parent=1 // loop_body
      %s22 = ssub.s32 %s17, 1
      %s23 = ssub.s32 %s17, 2
      %s24 = sadd.s32 %s17, 1
      %s25 = ssub.s32 %s17, %s24
      %p26 = scmp.eq.s32.totalorder %s25, 0
      %s28 = sadd.s32 %s27, 1
      %s29 = scalar_select %p26, %s27, %s28
      %p32 = pneg %p26
      %p33 = scmp.eq.s32.totalorder %s17, 1
      %p34 = por %p32, %p33
      %p35 = scmp.ne.s32.totalorder %s27, %s30
      %p36 = scmp.eq.s32.totalorder %s17, 0
      %p37 = por %p35, %p36
      %p38 = scmp.ne.s32.totalorder %s27, %s30
      %p39 = scmp.eq.s32.totalorder %s22, 1
      %p40 = por %p38, %p39
      %p41 = scmp.ne.s32.totalorder %s30, %s31
      %p42 = scmp.eq.s32.totalorder %s22, 0
      %p43 = por %p41, %p42
      %p44 = scmp.ne.s32.totalorder %s30, %s31
      %p45 = scmp.eq.s32.totalorder %s23, 1
      %p46 = por %p44, %p45
      %p48 = scmp.ne.s32.totalorder %s31, %s47
      %p49 = scmp.eq.s32.totalorder %s23, 0
      %p50 = por %p48, %p49
      %s52 = sadd.s32 %s51, 1
      %p55 = scmp.eq.s32.totalorder %s17, 1
      %p56 = scmp.ne.s32.totalorder %s51, %s53
      %p57 = scmp.eq.s32.totalorder %s17, 0
      %p58 = por %p56, %p57
      %p59 = scmp.ne.s32.totalorder %s51, %s53
      %p60 = scmp.eq.s32.totalorder %s22, 1
      %p61 = por %p59, %p60
      %p62 = scmp.ne.s32.totalorder %s53, %s54
      %p63 = scmp.eq.s32.totalorder %s22, 0
      %p64 = por %p62, %p63
      %p65 = scmp.ne.s32.totalorder %s53, %s54
      %p66 = scmp.eq.s32.totalorder %s23, 1
      %p67 = por %p65, %p66
      %p69 = scmp.ne.s32.totalorder %s54, %s68
      %p70 = scmp.eq.s32.totalorder %s23, 0
      %p71 = por %p69, %p70
      %s73 = sadd.s32 %s72, 1
      %p76 = scmp.eq.s32.totalorder %s17, 1
      %p77 = scmp.ne.s32.totalorder %s72, %s74
      %p78 = scmp.eq.s32.totalorder %s17, 0
      %p79 = por %p77, %p78
      %p80 = scmp.ne.s32.totalorder %s72, %s74
      %p81 = scmp.eq.s32.totalorder %s22, 1
      %p82 = por %p80, %p81
      %p83 = scmp.ne.s32.totalorder %s74, %s75
      %p84 = scmp.eq.s32.totalorder %s22, 0
      %p85 = por %p83, %p84
      %p86 = scmp.ne.s32.totalorder %s74, %s75
      %p87 = scmp.eq.s32.totalorder %s23, 1
      %p88 = por %p86, %p87
      %p90 = scmp.ne.s32.totalorder %s75, %s89
      %p91 = scmp.eq.s32.totalorder %s23, 0
      %p92 = por %p90, %p91
      %s94 = sadd.s32 %s93, 1
      %p97 = scmp.eq.s32.totalorder %s17, 1
      %p98 = scmp.ne.s32.totalorder %s93, %s95
      %p99 = scmp.eq.s32.totalorder %s17, 0
      %p100 = por %p98, %p99
      %p101 = scmp.ne.s32.totalorder %s93, %s95
      %p102 = scmp.eq.s32.totalorder %s22, 1
      %p103 = por %p101, %p102
      %p104 = scmp.ne.s32.totalorder %s95, %s96
      %p105 = scmp.eq.s32.totalorder %s22, 0
      %p106 = por %p104, %p105
      %p107 = scmp.ne.s32.totalorder %s95, %s96
      %p108 = scmp.eq.s32.totalorder %s23, 1
      %p109 = por %p107, %p108
      %p111 = scmp.ne.s32.totalorder %s96, %s110
      %p112 = scmp.eq.s32.totalorder %s23, 0
      %p113 = por %p111, %p112
      %s115 = sadd.s32 %s114, 1
      %p118 = scmp.eq.s32.totalorder %s17, 1
      %p119 = scmp.ne.s32.totalorder %s114, %s116
      %p120 = scmp.eq.s32.totalorder %s17, 0
      %p121 = por %p119, %p120
      %p122 = scmp.ne.s32.totalorder %s114, %s116
      %p123 = scmp.eq.s32.totalorder %s22, 1
      %p124 = por %p122, %p123
      %p125 = scmp.ne.s32.totalorder %s116, %s117
      %p126 = scmp.eq.s32.totalorder %s22, 0
      %p127 = por %p125, %p126
      %p128 = scmp.ne.s32.totalorder %s116, %s117
      %p129 = scmp.eq.s32.totalorder %s23, 1
      %p130 = por %p128, %p129
      %p132 = scmp.ne.s32.totalorder %s117, %s131
      %p133 = scmp.eq.s32.totalorder %s23, 0
      %p134 = por %p132, %p133
      %s136 = sadd.s32 %s135, 1
      %p139 = scmp.eq.s32.totalorder %s17, 1
      %p140 = scmp.ne.s32.totalorder %s135, %s137
      %p141 = scmp.eq.s32.totalorder %s17, 0
      %p142 = por %p140, %p141
      %p143 = scmp.ne.s32.totalorder %s135, %s137
      %p144 = scmp.eq.s32.totalorder %s22, 1
      %p145 = por %p143, %p144
      %p146 = scmp.ne.s32.totalorder %s137, %s138
      %p147 = scmp.eq.s32.totalorder %s22, 0
      %p148 = por %p146, %p147
      %p149 = scmp.ne.s32.totalorder %s137, %s138
      %p150 = scmp.eq.s32.totalorder %s23, 1
      %p151 = por %p149, %p150
      %p153 = scmp.ne.s32.totalorder %s138, %s152
      %p154 = scmp.eq.s32.totalorder %s23, 0
      %p155 = por %p153, %p154
      %s157 = sadd.s32 %s156, 1
      %p160 = scmp.eq.s32.totalorder %s17, 1
      %p161 = scmp.ne.s32.totalorder %s156, %s158
      %p162 = scmp.eq.s32.totalorder %s17, 0
      %p163 = por %p161, %p162
      %p164 = scmp.ne.s32.totalorder %s156, %s158
      %p165 = scmp.eq.s32.totalorder %s22, 1
      %p166 = por %p164, %p165
      %p167 = scmp.ne.s32.totalorder %s158, %s159
      %p168 = scmp.eq.s32.totalorder %s22, 0
      %p169 = por %p167, %p168
      %p170 = scmp.ne.s32.totalorder %s158, %s159
      %p171 = scmp.eq.s32.totalorder %s23, 1
      %p172 = por %p170, %p171
      %p174 = scmp.ne.s32.totalorder %s159, %s173
      %p175 = scmp.eq.s32.totalorder %s23, 0
      %p176 = por %p174, %p175
      %s178 = sadd.s32 %s177, 1
      %p181 = scmp.eq.s32.totalorder %s17, 1
      %p182 = scmp.ne.s32.totalorder %s177, %s179
      %p183 = scmp.eq.s32.totalorder %s17, 0
      %p184 = por %p182, %p183
      %p185 = scmp.ne.s32.totalorder %s177, %s179
      %p186 = scmp.eq.s32.totalorder %s22, 1
      %p187 = por %p185, %p186
      %p188 = scmp.ne.s32.totalorder %s179, %s180
      %p189 = scmp.eq.s32.totalorder %s22, 0
      %p190 = por %p188, %p189
      %p191 = scmp.ne.s32.totalorder %s179, %s180
      %p192 = scmp.eq.s32.totalorder %s23, 1
      %p193 = por %p191, %p192
      %p195 = scmp.ne.s32.totalorder %s180, %s194
      %p196 = scmp.eq.s32.totalorder %s23, 0
      %p197 = por %p195, %p196
      %s199 = sadd.s32 %s198, 1
      %p202 = scmp.eq.s32.totalorder %s17, 1
      %p203 = scmp.ne.s32.totalorder %s198, %s200
      %p204 = scmp.eq.s32.totalorder %s17, 0
      %p205 = por %p203, %p204
      %p206 = scmp.ne.s32.totalorder %s198, %s200
      %p207 = scmp.eq.s32.totalorder %s22, 1
      %p208 = por %p206, %p207
      %p209 = scmp.ne.s32.totalorder %s200, %s201
      %p210 = scmp.eq.s32.totalorder %s22, 0
      %p211 = por %p209, %p210
      %p212 = scmp.ne.s32.totalorder %s200, %s201
      %p213 = scmp.eq.s32.totalorder %s23, 1
      %p214 = por %p212, %p213
      %p216 = scmp.ne.s32.totalorder %s201, %s215
      %p217 = scmp.eq.s32.totalorder %s23, 0
      %p218 = por %p216, %p217
      %s220 = sadd.s32 %s219, 1
      %p223 = scmp.eq.s32.totalorder %s17, 1
      %p224 = scmp.ne.s32.totalorder %s219, %s221
      %p225 = scmp.eq.s32.totalorder %s17, 0
      %p226 = por %p224, %p225
      %p227 = scmp.ne.s32.totalorder %s219, %s221
      %p228 = scmp.eq.s32.totalorder %s22, 1
      %p229 = por %p227, %p228
      %p230 = scmp.ne.s32.totalorder %s221, %s222
      %p231 = scmp.eq.s32.totalorder %s22, 0
      %p232 = por %p230, %p231
      %p233 = scmp.ne.s32.totalorder %s221, %s222
      %p234 = scmp.eq.s32.totalorder %s23, 1
      %p235 = por %p233, %p234
      %p237 = scmp.ne.s32.totalorder %s222, %s236
      %p238 = scmp.eq.s32.totalorder %s23, 0
      %p239 = por %p237, %p238
      %s241 = sadd.s32 %s240, 1
      %p244 = scmp.eq.s32.totalorder %s17, 1
      %p245 = scmp.ne.s32.totalorder %s240, %s242
      %p246 = scmp.eq.s32.totalorder %s17, 0
      %p247 = por %p245, %p246
      %p248 = scmp.ne.s32.totalorder %s240, %s242
      %p249 = scmp.eq.s32.totalorder %s22, 1
      %p250 = por %p248, %p249
      %p251 = scmp.ne.s32.totalorder %s242, %s243
      %p252 = scmp.eq.s32.totalorder %s22, 0
      %p253 = por %p251, %p252
      %p254 = scmp.ne.s32.totalorder %s242, %s243
      %p255 = scmp.eq.s32.totalorder %s23, 1
      %p256 = por %p254, %p255
      %p258 = scmp.ne.s32.totalorder %s243, %s257
      %p259 = scmp.eq.s32.totalorder %s23, 0
      %p260 = por %p258, %p259
      %s261 = ssub.s32 %s17, %s24
      %p262 = scmp.eq.s32.totalorder %s261, 0
      %s264 = sadd.s32 %s263, 1
      %s265 = scalar_select %p262, %s263, %s264
      %p268 = pneg %p262
      %p269 = scmp.eq.s32.totalorder %s17, 1
      %p270 = por %p268, %p269
      %p271 = scmp.ne.s32.totalorder %s263, %s266
      %p272 = scmp.eq.s32.totalorder %s17, 0
      %p273 = por %p271, %p272
      %p274 = scmp.ne.s32.totalorder %s263, %s266
      %p275 = scmp.eq.s32.totalorder %s22, 1
      %p276 = por %p274, %p275
      %p277 = scmp.ne.s32.totalorder %s266, %s267
      %p278 = scmp.eq.s32.totalorder %s22, 0
      %p279 = por %p277, %p278
      %p280 = scmp.ne.s32.totalorder %s266, %s267
      %p281 = scmp.eq.s32.totalorder %s23, 1
      %p282 = por %p280, %p281
      %p284 = scmp.ne.s32.totalorder %s267, %s283
      %p285 = scmp.eq.s32.totalorder %s23, 0
      %p286 = por %p284, %p285
      %p287 = scmp.le.s32.totalorder 1, %s17
      %p288 = scmp.lt.s32.totalorder %s17, 3
      %p289 = pnand %p287, %p288
      %p290 = pneg %p289
      // Predicated region
      $region9: #{model_synthetic_forward.1} parent=5 // pred_check
        _
      $region10: #{model_synthetic_forward.1} parent=5 // pred_check_branch
        %292 = sbr.rel (%p289) target = $region12
      $region11: #{model_synthetic_forward.1} parent=5 // pred_region
        %s293 = ssub.s32 %s17, 1
        // Predicated region
        $region13: #{model_synthetic_forward.1} parent=11 // pred_check
          %p294 = pneg %p64
        $region14: #{model_synthetic_forward.1} parent=11 // pred_check_branch
          %296 = sbr.rel (%p294) target = $region16
        $region15: #{model_synthetic_forward.1} parent=11 // pred_region
          _
        $region16: #{model_synthetic_forward.1} parent=11 // pred_fallthru
          _
        // Predicated region
        $region17: #{model_synthetic_forward.1} parent=11 // pred_check
          %p297 = pneg %p85
        $region18: #{model_synthetic_forward.1} parent=11 // pred_check_branch
          %299 = sbr.rel (%p297) target = $region20
        $region19: #{model_synthetic_forward.1} parent=11 // pred_region
          _
        $region20: #{model_synthetic_forward.1} parent=11 // pred_fallthru
          _
        // Predicated region
        $region21: #{model_synthetic_forward.1} parent=11 // pred_check
          %p300 = pneg %p106
        $region22: #{model_synthetic_forward.1} parent=11 // pred_check_branch
          %302 = sbr.rel (%p300) target = $region24
        $region23: #{model_synthetic_forward.1} parent=11 // pred_region
          _
        $region24: #{model_synthetic_forward.1} parent=11 // pred_fallthru
          _
        // Predicated region
        $region25: #{model_synthetic_forward.1} parent=11 // pred_check
          %p303 = pneg %p127
        $region26: #{model_synthetic_forward.1} parent=11 // pred_check_branch
          %305 = sbr.rel (%p303) target = $region28
        $region27: #{model_synthetic_forward.1} parent=11 // pred_region
          _
        $region28: #{model_synthetic_forward.1} parent=11 // pred_fallthru
          _
        // Predicated region
        $region29: #{model_synthetic_forward.1} parent=11 // pred_check
          %p306 = pneg %p148
        $region30: #{model_synthetic_forward.1} parent=11 // pred_check_branch
          %308 = sbr.rel (%p306) target = $region32
        $region31: #{model_synthetic_forward.1} parent=11 // pred_region
          _
        $region32: #{model_synthetic_forward.1} parent=11 // pred_fallthru
          _
        // Predicated region
        $region33: #{model_synthetic_forward.1} parent=11 // pred_check
          %p309 = pneg %p169
        $region34: #{model_synthetic_forward.1} parent=11 // pred_check_branch
          %311 = sbr.rel (%p309) target = $region36
        $region35: #{model_synthetic_forward.1} parent=11 // pred_region
          _
        $region36: #{model_synthetic_forward.1} parent=11 // pred_fallthru
          _
        // Predicated region
        $region37: #{model_synthetic_forward.1} parent=11 // pred_check
          %p312 = pneg %p190
        $region38: #{model_synthetic_forward.1} parent=11 // pred_check_branch
          %314 = sbr.rel (%p312) target = $region40
        $region39: #{model_synthetic_forward.1} parent=11 // pred_region
          _
        $region40: #{model_synthetic_forward.1} parent=11 // pred_fallthru
          _
        // Predicated region
        $region41: #{model_synthetic_forward.1} parent=11 // pred_check
          %p315 = pneg %p211
        $region42: #{model_synthetic_forward.1} parent=11 // pred_check_branch
          %317 = sbr.rel (%p315) target = $region44
        $region43: #{model_synthetic_forward.1} parent=11 // pred_region
          _
        $region44: #{model_synthetic_forward.1} parent=11 // pred_fallthru
          _
        // Predicated region
        $region45: #{model_synthetic_forward.1} parent=11 // pred_check
          %p318 = pneg %p232
        $region46: #{model_synthetic_forward.1} parent=11 // pred_check_branch
          %320 = sbr.rel (%p318) target = $region48
        $region47: #{model_synthetic_forward.1} parent=11 // pred_region
          _
        $region48: #{model_synthetic_forward.1} parent=11 // pred_fallthru
          _
        // Predicated region
        $region49: #{model_synthetic_forward.1} parent=11 // pred_check
          %p321 = pneg %p253
        $region50: #{model_synthetic_forward.1} parent=11 // pred_check_branch
          %323 = sbr.rel (%p321) target = $region52
        $region51: #{model_synthetic_forward.1} parent=11 // pred_region
          _
        $region52: #{model_synthetic_forward.1} parent=11 // pred_fallthru
          _
      $region12: #{model_synthetic_forward.1} parent=5 // pred_fallthru
        _
      %p324 = scmp.lt.s32.totalorder %s17, 2
      // Predicated region
      $region53: #{model_synthetic_forward.1} parent=5 // pred_check
        %p325 = pneg %p324
      $region54: #{model_synthetic_forward.1} parent=5 // pred_check_branch
        %327 = sbr.rel (%p325) target = $region56
      $region55: #{model_synthetic_forward.1} parent=5 // pred_region
        // Predicated region
        $region57: #{model_synthetic_forward.1} parent=55 // pred_check
          %p328 = pneg %p37
        $region58: #{model_synthetic_forward.1} parent=55 // pred_check_branch
          %330 = sbr.rel (%p328) target = $region60
        $region59: #{model_synthetic_forward.1} parent=55 // pred_region
          %s331 = sand.u32 %s27, 1
          %s332 = sand.u32 %s27, 1
          %s333 = smul.addr %s332, 288
          %s334 = scalar_lea.vmem [#allocation2], %s333
          %s335 = smul.addr %s17, 8
          %s336 = scalar_lea.vmem %s0, %s335
          // Predicated region
          $region61: #{model_synthetic_forward.1} parent=59 // pred_check
            _
          $region62: #{model_synthetic_forward.1} parent=59 // pred_check_branch
            %338 = sbr.rel (0) target = $region64
          $region63: #{model_synthetic_forward.1} parent=59 // pred_region
            // Predicated region
            $region65: #{model_synthetic_forward.1} parent=63 // pred_check
              _
            $region66: #{model_synthetic_forward.1} parent=63 // pred_check_branch
              %340 = sbr.rel (0) target = $region68
            $region67: #{model_synthetic_forward.1} parent=63 // pred_region
              // Predicated region
              $region80: #{model_synthetic_forward.1} parent=67 // pred_check
                _
              $region81: #{model_synthetic_forward.1} parent=67 // pred_check_branch
                %425 = sbr.rel (0) target = $region83
              $region82: #{model_synthetic_forward.1} parent=67 // pred_region
                loop: start=0, step=1, limit=1
                $region84: #{model_synthetic_forward.1} parent=82 // loop_pre_header
                  _
                $region85: #{model_synthetic_forward.1} parent=82 // loop_header
                  %s427 = sphi 0, %s431
                  %p428 = scmp.ge.s32.totalorder %s427, 1
                  %s432 = sphi %s336, %s336
                  %s433 = sphi %s334, %s334
                $region86: #{model_synthetic_forward.1} parent=82 // loop_header_branch
                  %430 = sbr.rel (%p428) target = $region90
                $region87: #{model_synthetic_forward.1} parent=82 // loop_body
                  %v434 = vld [vmem:[%s432] sm:$0xff]
                  %435 = vst [vmem:[%s433] sm:$0xff] %v434
                  %v436 = vld [vmem:[%s432 + $0x10] sm:$0xff]
                  %437 = vst [vmem:[%s433 + $0x8] sm:$0xff] %v436
                  %v438 = vld [vmem:[%s432 + $0x20] sm:$0xff]
                  %439 = vst [vmem:[%s433 + $0x10] sm:$0xff] %v438
                  %v440 = vld [vmem:[%s432 + $0x30] sm:$0xff]
                  %441 = vst [vmem:[%s433 + $0x18] sm:$0xff] %v440
                  %v442 = vld [vmem:[%s432 + $0x40] sm:$0xff]
                  %443 = vst [vmem:[%s433 + $0x20] sm:$0xff] %v442
                  %v444 = vld [vmem:[%s432 + $0x50] sm:$0xff]
                  %445 = vst [vmem:[%s433 + $0x28] sm:$0xff] %v444
                  %v446 = vld [vmem:[%s432 + $0x60] sm:$0xff]
                  %447 = vst [vmem:[%s433 + $0x30] sm:$0xff] %v446
                  %v448 = vld [vmem:[%s432 + $0x70] sm:$0xff]
                  %449 = vst [vmem:[%s433 + $0x38] sm:$0xff] %v448
                  %v450 = vld [vmem:[%s432 + $0x80] sm:$0xff]
                  %451 = vst [vmem:[%s433 + $0x40] sm:$0xff] %v450
                  %v452 = vld [vmem:[%s432 + $0x90] sm:$0xff]
                  %453 = vst [vmem:[%s433 + $0x48] sm:$0xff] %v452
                  %v454 = vld [vmem:[%s432 + $0xa0] sm:$0xff]
                  %455 = vst [vmem:[%s433 + $0x50] sm:$0xff] %v454
                  %v456 = vld [vmem:[%s432 + $0xb0] sm:$0xff]
                  %457 = vst [vmem:[%s433 + $0x58] sm:$0xff] %v456
                  %v458 = vld [vmem:[%s432 + $0xc0] sm:$0xff]
                  %459 = vst [vmem:[%s433 + $0x60] sm:$0xff] %v458
                  %v460 = vld [vmem:[%s432 + $0xd0] sm:$0xff]
                  %461 = vst [vmem:[%s433 + $0x68] sm:$0xff] %v460
                  %v462 = vld [vmem:[%s432 + $0xe0] sm:$0xff]
                  %463 = vst [vmem:[%s433 + $0x70] sm:$0xff] %v462
                  %v464 = vld [vmem:[%s432 + $0xf0] sm:$0xff]
                  %465 = vst [vmem:[%s433 + $0x78] sm:$0xff] %v464
                  %v466 = vld [vmem:[%s432 + $0x100] sm:$0xff]
                  %467 = vst [vmem:[%s433 + $0x80] sm:$0xff] %v466
                  %v468 = vld [vmem:[%s432 + $0x110] sm:$0xff]
                  %469 = vst [vmem:[%s433 + $0x88] sm:$0xff] %v468
                  %v470 = vld [vmem:[%s432 + $0x120] sm:$0xff]
                  %471 = vst [vmem:[%s433 + $0x90] sm:$0xff] %v470
                  %v472 = vld [vmem:[%s432 + $0x130] sm:$0xff]
                  %473 = vst [vmem:[%s433 + $0x98] sm:$0xff] %v472
                  %v474 = vld [vmem:[%s432 + $0x140] sm:$0xff]
                  %475 = vst [vmem:[%s433 + $0xa0] sm:$0xff] %v474
                  %v476 = vld [vmem:[%s432 + $0x150] sm:$0xff]
                  %477 = vst [vmem:[%s433 + $0xa8] sm:$0xff] %v476
                  %v478 = vld [vmem:[%s432 + $0x160] sm:$0xff]
                  %479 = vst [vmem:[%s433 + $0xb0] sm:$0xff] %v478
                  %v480 = vld [vmem:[%s432 + $0x170] sm:$0xff]
                  %481 = vst [vmem:[%s433 + $0xb8] sm:$0xff] %v480
                  %v482 = vld [vmem:[%s432 + $0x180] sm:$0xff]
                  %483 = vst [vmem:[%s433 + $0xc0] sm:$0xff] %v482
                  %v484 = vld [vmem:[%s432 + $0x190] sm:$0xff]
                  %485 = vst [vmem:[%s433 + $0xc8] sm:$0xff] %v484
                  %v486 = vld [vmem:[%s432 + $0x1a0] sm:$0xff]
                  %487 = vst [vmem:[%s433 + $0xd0] sm:$0xff] %v486
                  %v488 = vld [vmem:[%s432 + $0x1b0] sm:$0xff]
                  %489 = vst [vmem:[%s433 + $0xd8] sm:$0xff] %v488
                  %v490 = vld [vmem:[%s432 + $0x1c0] sm:$0xff]
                  %491 = vst [vmem:[%s433 + $0xe0] sm:$0xff] %v490
                  %v492 = vld [vmem:[%s432 + $0x1d0] sm:$0xff]
                  %493 = vst [vmem:[%s433 + $0xe8] sm:$0xff] %v492
                  %v494 = vld [vmem:[%s432 + $0x1e0] sm:$0xff]
                  %495 = vst [vmem:[%s433 + $0xf0] sm:$0xff] %v494
                  %v496 = vld [vmem:[%s432 + $0x1f0] sm:$0xff]
                  %497 = vst [vmem:[%s433 + $0xf8] sm:$0xff] %v496
                  %v498 = vld [vmem:[%s432 + $0x200] sm:$0xff]
                  %499 = vst [vmem:[%s433 + $0x100] sm:$0xff] %v498
                  %v500 = vld [vmem:[%s432 + $0x210] sm:$0xff]
                  %501 = vst [vmem:[%s433 + $0x108] sm:$0xff] %v500
                  %v502 = vld [vmem:[%s432 + $0x220] sm:$0xff]
                  %503 = vst [vmem:[%s433 + $0x110] sm:$0xff] %v502
                  %v504 = vld [vmem:[%s432 + $0x230] sm:$0xff]
                  %505 = vst [vmem:[%s433 + $0x118] sm:$0xff] %v504
                $region88: #{model_synthetic_forward.1} parent=82 // loop_footer
                  %s431 = sadd.s32 1, %s427
                $region89: #{model_synthetic_forward.1} parent=82 // loop_footer_branch
                  %426 = sbr.rel target = $region85
                $region90: #{model_synthetic_forward.1} parent=82 // loop_exit
                  _
              $region83: #{model_synthetic_forward.1} parent=67 // pred_fallthru
                _
              // Predicated region
              $region91: #{model_synthetic_forward.1} parent=67 // pred_check
                _
              $region92: #{model_synthetic_forward.1} parent=67 // pred_check_branch
                %507 = sbr.rel target = $region94
              $region93: #{model_synthetic_forward.1} parent=67 // pred_region
                _
              $region94: #{model_synthetic_forward.1} parent=67 // pred_fallthru
                _
            $region68: #{model_synthetic_forward.1} parent=63 // pred_fallthru
              _
            // Predicated region
            $region69: #{model_synthetic_forward.1} parent=63 // pred_check
              _
            $region70: #{model_synthetic_forward.1} parent=63 // pred_check_branch
              %342 = sbr.rel target = $region72
            $region71: #{model_synthetic_forward.1} parent=63 // pred_region
              loop: start=0, step=1, limit=1
              $region73: #{model_synthetic_forward.1} parent=71 // loop_pre_header
                _
              $region74: #{model_synthetic_forward.1} parent=71 // loop_header
                %s345 = sphi 0, %s349
                %p346 = scmp.ge.s32.totalorder %s345, 1
                %s350 = sphi %s336, %s336
                %s351 = sphi %s334, %s334
              $region75: #{model_synthetic_forward.1} parent=71 // loop_header_branch
                %348 = sbr.rel (%p346) target = $region79
              $region76: #{model_synthetic_forward.1} parent=71 // loop_body
                %v352 = vld [vmem:[%s350] sm:$0xff]
                %353 = vst [vmem:[%s351] sm:$0xff] %v352
                %v354 = vld [vmem:[%s350 + $0x10] sm:$0xff]
                %355 = vst [vmem:[%s351 + $0x8] sm:$0xff] %v354
                %v356 = vld [vmem:[%s350 + $0x20] sm:$0xff]
                %357 = vst [vmem:[%s351 + $0x10] sm:$0xff] %v356
                %v358 = vld [vmem:[%s350 + $0x30] sm:$0xff]
                %359 = vst [vmem:[%s351 + $0x18] sm:$0xff] %v358
                %v360 = vld [vmem:[%s350 + $0x40] sm:$0xff]
                %361 = vst [vmem:[%s351 + $0x20] sm:$0xff] %v360
                %v362 = vld [vmem:[%s350 + $0x50] sm:$0xff]
                %363 = vst [vmem:[%s351 + $0x28] sm:$0xff] %v362
                %v364 = vld [vmem:[%s350 + $0x60] sm:$0xff]
                %365 = vst [vmem:[%s351 + $0x30] sm:$0xff] %v364
                %v366 = vld [vmem:[%s350 + $0x70] sm:$0xff]
                %367 = vst [vmem:[%s351 + $0x38] sm:$0xff] %v366
                %v368 = vld [vmem:[%s350 + $0x80] sm:$0xff]
                %369 = vst [vmem:[%s351 + $0x40] sm:$0xff] %v368
                %v370 = vld [vmem:[%s350 + $0x90] sm:$0xff]
                %371 = vst [vmem:[%s351 + $0x48] sm:$0xff] %v370
                %v372 = vld [vmem:[%s350 + $0xa0] sm:$0xff]
                %373 = vst [vmem:[%s351 + $0x50] sm:$0xff] %v372
                %v374 = vld [vmem:[%s350 + $0xb0] sm:$0xff]
                %375 = vst [vmem:[%s351 + $0x58] sm:$0xff] %v374
                %v376 = vld [vmem:[%s350 + $0xc0] sm:$0xff]
                %377 = vst [vmem:[%s351 + $0x60] sm:$0xff] %v376
                %v378 = vld [vmem:[%s350 + $0xd0] sm:$0xff]
                %379 = vst [vmem:[%s351 + $0x68] sm:$0xff] %v378
                %v380 = vld [vmem:[%s350 + $0xe0] sm:$0xff]
                %381 = vst [vmem:[%s351 + $0x70] sm:$0xff] %v380
                %v382 = vld [vmem:[%s350 + $0xf0] sm:$0xff]
                %383 = vst [vmem:[%s351 + $0x78] sm:$0xff] %v382
                %v384 = vld [vmem:[%s350 + $0x100] sm:$0xff]
                %385 = vst [vmem:[%s351 + $0x80] sm:$0xff] %v384
                %v386 = vld [vmem:[%s350 + $0x110] sm:$0xff]
                %387 = vst [vmem:[%s351 + $0x88] sm:$0xff] %v386
                %v388 = vld [vmem:[%s350 + $0x120] sm:$0xff]
                %389 = vst [vmem:[%s351 + $0x90] sm:$0xff] %v388
                %v390 = vld [vmem:[%s350 + $0x130] sm:$0xff]
                %391 = vst [vmem:[%s351 + $0x98] sm:$0xff] %v390
                %v392 = vld [vmem:[%s350 + $0x140] sm:$0xff]
                %393 = vst [vmem:[%s351 + $0xa0] sm:$0xff] %v392
                %v394 = vld [vmem:[%s350 + $0x150] sm:$0xff]
                %395 = vst [vmem:[%s351 + $0xa8] sm:$0xff] %v394
                %v396 = vld [vmem:[%s350 + $0x160] sm:$0xff]
                %397 = vst [vmem:[%s351 + $0xb0] sm:$0xff] %v396
                %v398 = vld [vmem:[%s350 + $0x170] sm:$0xff]
                %399 = vst [vmem:[%s351 + $0xb8] sm:$0xff] %v398
                %v400 = vld [vmem:[%s350 + $0x180] sm:$0xff]
                %401 = vst [vmem:[%s351 + $0xc0] sm:$0xff] %v400
                %v402 = vld [vmem:[%s350 + $0x190] sm:$0xff]
                %403 = vst [vmem:[%s351 + $0xc8] sm:$0xff] %v402
                %v404 = vld [vmem:[%s350 + $0x1a0] sm:$0xff]
                %405 = vst [vmem:[%s351 + $0xd0] sm:$0xff] %v404
                %v406 = vld [vmem:[%s350 + $0x1b0] sm:$0xff]
                %407 = vst [vmem:[%s351 + $0xd8] sm:$0xff] %v406
                %v408 = vld [vmem:[%s350 + $0x1c0] sm:$0xff]
                %409 = vst [vmem:[%s351 + $0xe0] sm:$0xff] %v408
                %v410 = vld [vmem:[%s350 + $0x1d0] sm:$0xff]
                %411 = vst [vmem:[%s351 + $0xe8] sm:$0xff] %v410
                %v412 = vld [vmem:[%s350 + $0x1e0] sm:$0xff]
                %413 = vst [vmem:[%s351 + $0xf0] sm:$0xff] %v412
                %v414 = vld [vmem:[%s350 + $0x1f0] sm:$0xff]
                %415 = vst [vmem:[%s351 + $0xf8] sm:$0xff] %v414
                %v416 = vld [vmem:[%s350 + $0x200] sm:$0xff]
                %417 = vst [vmem:[%s351 + $0x100] sm:$0xff] %v416
                %v418 = vld [vmem:[%s350 + $0x210] sm:$0xff]
                %419 = vst [vmem:[%s351 + $0x108] sm:$0xff] %v418
                %v420 = vld [vmem:[%s350 + $0x220] sm:$0xff]
                %421 = vst [vmem:[%s351 + $0x110] sm:$0xff] %v420
                %v422 = vld [vmem:[%s350 + $0x230] sm:$0xff]
                %423 = vst [vmem:[%s351 + $0x118] sm:$0xff] %v422
              $region77: #{model_synthetic_forward.1} parent=71 // loop_footer
                %s349 = sadd.s32 1, %s345
              $region78: #{model_synthetic_forward.1} parent=71 // loop_footer_branch
                %344 = sbr.rel target = $region74
              $region79: #{model_synthetic_forward.1} parent=71 // loop_exit
                _
            $region72: #{model_synthetic_forward.1} parent=63 // pred_fallthru
              _
          $region64: #{model_synthetic_forward.1} parent=59 // pred_fallthru
            _
          %508 = vnop
        $region60: #{model_synthetic_forward.1} parent=55 // pred_fallthru
          _
      $region56: #{model_synthetic_forward.1} parent=5 // pred_fallthru
        _
      %p509 = scmp.le.s32.totalorder 1, %s17
      %p510 = scmp.lt.s32.totalorder %s17, 3
      %p511 = pnand %p509, %p510
      %p512 = pneg %p511
      // Predicated region
      $region95: #{model_synthetic_forward.1} parent=5 // pred_check
        _
      $region96: #{model_synthetic_forward.1} parent=5 // pred_check_branch
        %514 = sbr.rel (%p511) target = $region98
      $region97: #{model_synthetic_forward.1} parent=5 // pred_region
        %s515 = ssub.s32 %s17, 1
        %s516 = sand.u32 %s30, 1
        %s517 = sand.u32 %s30, 1
        %s518 = smul.addr %s517, 288
        %s519 = scalar_lea.vmem [#allocation2], %s518
        // Predicated region
        $region99: #{model_synthetic_forward.1} parent=97 // pred_check
          %p520 = pneg %p43
        $region100: #{model_synthetic_forward.1} parent=97 // pred_check_branch
          %522 = sbr.rel (%p520) target = $region102
        $region101: #{model_synthetic_forward.1} parent=97 // pred_region
          _
        $region102: #{model_synthetic_forward.1} parent=97 // pred_fallthru
          _
        %s523 = sand.u32 %s30, 1
        %s524 = sand.u32 %s30, 1
        %s525 = smul.addr %s524, 288
        %s526 = scalar_lea.vmem [#allocation2], %s525
        %p527 = pneg %p43
        %p528 = pneg %p40
        %p529 = pneg %p64
        %p530 = pneg %p61
        %p531 = pneg %p85
        %p532 = pneg %p82
        %p533 = pneg %p106
        %p534 = pneg %p103
        %p535 = pneg %p127
        %p536 = pneg %p124
        %p537 = pneg %p148
        %p538 = pneg %p145
        %p539 = pneg %p169
        %p540 = pneg %p166
        %p541 = pneg %p190
        %p542 = pneg %p187
        %p543 = pneg %p211
        %p544 = pneg %p208
        %p545 = pneg %p232
        %p546 = pneg %p229
        %p547 = pneg %p253
        %p548 = pneg %p250
        %p549 = pneg %p279
        %p550 = pneg %p276
        %p551 = scmp.lt.s32.totalorder %s22, 1
        %s552 = scalar_select %p551, %s22, 1
        %s553 = smul.addr %s552, 8
        %s554 = scalar_lea.vmem %s11, %s553
        %p555 = scmp.lt.s32.totalorder %s22, 1
        %s556 = scalar_select %p555, %s22, 1
        %s557 = smul.addr %s556, 8
        %s558 = scalar_lea.vmem %s11, %s557
        %v560 = vld [vmem:[%s519] sm:$0xff]
        %v561 = vld [vmem:[%s519 + $0x8] sm:$0xff]
        %v562 = vld [vmem:[%s519 + $0x10] sm:$0xff]
        %v563 = vld [vmem:[%s519 + $0x18] sm:$0xff]
        %v564 = vld [vmem:[%s519 + $0x20] sm:$0xff]
        %v565 = vld [vmem:[%s519 + $0x28] sm:$0xff]
        %v566 = vld [vmem:[%s519 + $0x30] sm:$0xff]
        %v567 = vld [vmem:[%s519 + $0x38] sm:$0xff]
        %v568 = vld [vmem:[%s519 + $0x40] sm:$0xff]
        %v569 = vld [vmem:[%s519 + $0x48] sm:$0xff]
        %v570 = vld [vmem:[%s519 + $0x50] sm:$0xff]
        %v571 = vld [vmem:[%s519 + $0x58] sm:$0xff]
        %v572 = vld [vmem:[%s519 + $0x60] sm:$0xff]
        %v573 = vld [vmem:[%s519 + $0x68] sm:$0xff]
        %v574 = vld [vmem:[%s519 + $0x70] sm:$0xff]
        %v575 = vld [vmem:[%s519 + $0x78] sm:$0xff]
        %v576 = vld [vmem:[%s519 + $0x80] sm:$0xff]
        %v577 = vld [vmem:[%s519 + $0x88] sm:$0xff]
        %v578 = vld [vmem:[%s519 + $0x90] sm:$0xff]
        %v579 = vld [vmem:[%s519 + $0x98] sm:$0xff]
        %v580 = vld [vmem:[%s519 + $0xa0] sm:$0xff]
        %v581 = vld [vmem:[%s519 + $0xa8] sm:$0xff]
        %v582 = vld [vmem:[%s519 + $0xb0] sm:$0xff]
        %v583 = vld [vmem:[%s519 + $0xb8] sm:$0xff]
        %v584 = vld [vmem:[%s519 + $0xc0] sm:$0xff]
        %v585 = vld [vmem:[%s519 + $0xc8] sm:$0xff]
        %v586 = vld [vmem:[%s519 + $0xd0] sm:$0xff]
        %v587 = vld [vmem:[%s519 + $0xd8] sm:$0xff]
        %v588 = vld [vmem:[%s519 + $0xe0] sm:$0xff]
        %v589 = vld [vmem:[%s519 + $0xe8] sm:$0xff]
        %v590 = vld [vmem:[%s519 + $0xf0] sm:$0xff]
        %v591 = vld [vmem:[%s519 + $0xf8] sm:$0xff]
        %v592 = vpack.c.bf16 %v561, %v560
        %v593 = vpack.c.bf16 %v563, %v562
        %v594 = vpack.c.bf16 %v565, %v564
        %v595 = vpack.c.bf16 %v567, %v566
        %v596 = vpack.c.bf16 %v569, %v568
        %v597 = vpack.c.bf16 %v571, %v570
        %v598 = vpack.c.bf16 %v573, %v572
        %v599 = vpack.c.bf16 %v575, %v574
        %v600 = vpack.c.bf16 %v577, %v576
        %v601 = vpack.c.bf16 %v579, %v578
        %v602 = vpack.c.bf16 %v581, %v580
        %v603 = vpack.c.bf16 %v583, %v582
        %v604 = vpack.c.bf16 %v585, %v584
        %v605 = vpack.c.bf16 %v587, %v586
        %v606 = vpack.c.bf16 %v589, %v588
        %v607 = vpack.c.bf16 %v591, %v590
        %v608 = vld [vmem:[%s1] sm:$0xff]
        %v609 = vld [vmem:[%s1 + $0x8] sm:$0xff]
        %v610 = vld [vmem:[%s1 + $0x10] sm:$0xff]
        %v611 = vld [vmem:[%s1 + $0x18] sm:$0xff]
        %s612 = scalar_lea.vmem %s519, 8 [#allocation2]
        %v613 = vld [vmem:[%s612] sm:$0xff]
        %v614 = vld [vmem:[%s612 + $0x8] sm:$0xff]
        %v615 = vld [vmem:[%s612 + $0x10] sm:$0xff]
        %v616 = vld [vmem:[%s612 + $0x18] sm:$0xff]
        %v617 = vld [vmem:[%s612 + $0x20] sm:$0xff]
        %v618 = vld [vmem:[%s612 + $0x28] sm:$0xff]
        %v619 = vld [vmem:[%s612 + $0x30] sm:$0xff]
        %v620 = vld [vmem:[%s612 + $0x38] sm:$0xff]
        %v621 = vld [vmem:[%s612 + $0x40] sm:$0xff]
        %v622 = vld [vmem:[%s612 + $0x48] sm:$0xff]
        %v623 = vld [vmem:[%s612 + $0x50] sm:$0xff]
        %v624 = vld [vmem:[%s612 + $0x58] sm:$0xff]
        %v625 = vld [vmem:[%s612 + $0x60] sm:$0xff]
        %v626 = vld [vmem:[%s612 + $0x68] sm:$0xff]
        %v627 = vld [vmem:[%s612 + $0x70] sm:$0xff]
        %v628 = vld [vmem:[%s612 + $0x78] sm:$0xff]
        %v629 = vld [vmem:[%s612 + $0x80] sm:$0xff]
        %v630 = vld [vmem:[%s612 + $0x88] sm:$0xff]
        %v631 = vld [vmem:[%s612 + $0x90] sm:$0xff]
        %v632 = vld [vmem:[%s612 + $0x98] sm:$0xff]
        %v633 = vld [vmem:[%s612 + $0xa0] sm:$0xff]
        %v634 = vld [vmem:[%s612 + $0xa8] sm:$0xff]
        %v635 = vld [vmem:[%s612 + $0xb0] sm:$0xff]
        %v636 = vld [vmem:[%s612 + $0xb8] sm:$0xff]
        %v637 = vld [vmem:[%s612 + $0xc0] sm:$0xff]
        %v638 = vld [vmem:[%s612 + $0xc8] sm:$0xff]
        %v639 = vld [vmem:[%s612 + $0xd0] sm:$0xff]
        %v640 = vld [vmem:[%s612 + $0xd8] sm:$0xff]
        %v641 = vld [vmem:[%s612 + $0xe0] sm:$0xff]
        %v642 = vld [vmem:[%s612 + $0xe8] sm:$0xff]
        %v643 = vld [vmem:[%s612 + $0xf0] sm:$0xff]
        %v644 = vld [vmem:[%s612 + $0xf8] sm:$0xff]
        %v645 = vpack.c.bf16 %v614, %v613
        %v646 = vpack.c.bf16 %v616, %v615
        %v647 = vpack.c.bf16 %v618, %v617
        %v648 = vpack.c.bf16 %v620, %v619
        %v649 = vpack.c.bf16 %v622, %v621
        %v650 = vpack.c.bf16 %v624, %v623
        %v651 = vpack.c.bf16 %v626, %v625
        %v652 = vpack.c.bf16 %v628, %v627
        %v653 = vpack.c.bf16 %v630, %v629
        %v654 = vpack.c.bf16 %v632, %v631
        %v655 = vpack.c.bf16 %v634, %v633
        %v656 = vpack.c.bf16 %v636, %v635
        %v657 = vpack.c.bf16 %v638, %v637
        %v658 = vpack.c.bf16 %v640, %v639
        %v659 = vpack.c.bf16 %v642, %v641
        %v660 = vpack.c.bf16 %v644, %v643
        %s661 = scalar_lea.vmem %s1, 32
        %v662 = vld [vmem:[%s661] sm:$0xff]
        %v663 = vld [vmem:[%s661 + $0x8] sm:$0xff]
        %v664 = vld [vmem:[%s661 + $0x10] sm:$0xff]
        %v665 = vld [vmem:[%s661 + $0x18] sm:$0xff]
        %v670 = vunpack.c.l.b16 %v662
        %v671 = vunpack.c.h.b16 %v662
        %v672 = vunpack.c.l.b16 %v663
        %v673 = vunpack.c.h.b16 %v663
        %v674 = vunpack.c.l.b16 %v664
        %v675 = vunpack.c.h.b16 %v664
        %v676 = vunpack.c.l.b16 %v665
        %v677 = vunpack.c.h.b16 %v665
        %v678 = vpack.c.b16 %v672, %v670
        %v679 = vpack.c.b16 %v673, %v671
        %v680 = vpack.c.b16 %v676, %v674
        %v681 = vpack.c.b16 %v677, %v675
        %vm686 = vcmask 261120
        %v688 = vsel %vm686, %v645, 0
        %v691 = vsel %vm686, %v646, 0
        %v694 = vsel %vm686, %v647, 0
        %v697 = vsel %vm686, %v648, 0
        %v700 = vsel %vm686, %v649, 0
        %v703 = vsel %vm686, %v650, 0
        %v706 = vsel %vm686, %v651, 0
        %v709 = vsel %vm686, %v652, 0
        %v712 = vsel %vm686, %v653, 0
        %v715 = vsel %vm686, %v654, 0
        %v718 = vsel %vm686, %v655, 0
        %v721 = vsel %vm686, %v656, 0
        %v724 = vsel %vm686, %v657, 0
        %v727 = vsel %vm686, %v658, 0
        %v730 = vsel %vm686, %v659, 0
        %v733 = vsel %vm686, %v660, 0
        %735 = vmatprep.subr.bf16.mxu0 %v679
        %736 = vmatpush1.bf16.msra.mxu0 %v678
        %737 = vmatprep.subr.bf16.mxu0 %v681
        %738 = vmatpush1.bf16.msra.mxu0 %v680
        %739 = vmatprep.subr.bf16.mxu0 0
        %740 = vmatpush1.bf16.msra.mxu0 0
        %741 = vmatprep.subr.bf16.mxu0 0
        %742 = vmatpush1.bf16.msra.mxu0 0
        %743 = vmatprep.subr.bf16.mxu0 0
        %744 = vmatpush1.bf16.msra.mxu0 0
        %745 = vmatprep.subr.bf16.mxu0 0
        %746 = vmatpush1.bf16.msra.mxu0 0
        %747 = vmatprep.subr.bf16.mxu0 0
        %748 = vmatpush1.bf16.msra.mxu0 0
        %749 = vmatprep.subr.bf16.mxu0 0
        %750 = vmatpush1.bf16.msra.mxu0 0
        %751 = vmatprep.subr.bf16.mxu0 0
        %752 = vmatpush1.bf16.msra.mxu0 0
        %753 = vmatprep.subr.bf16.mxu0 0
        %754 = vmatpush1.bf16.msra.mxu0 0
        %755 = vmatprep.subr.bf16.mxu0 0
        %756 = vmatpush1.bf16.msra.mxu0 0
        %757 = vmatprep.subr.bf16.mxu0 0
        %758 = vmatpush1.bf16.msra.mxu0 0
        %759 = vmatprep.subr.bf16.mxu0 0
        %760 = vmatpush1.bf16.msra.mxu0 0
        %761 = vmatprep.subr.bf16.mxu0 0
        %762 = vmatpush1.bf16.msra.mxu0 0
        %763 = vmatprep.subr.bf16.mxu0 0
        %764 = vmatpush1.bf16.msra.mxu0 0
        %765 = vmatprep.subr.bf16.mxu0 0
        %766 = vmatpush1.bf16.msra.mxu0 0
        %767 = vmatprep.mubr.bf16.mxu0 0
        %768 = vmatmul.mubr.bf16.gmra.mrb[0].mxu0 %v688
        %v769 = vpop.f32.mrb[0].mxu0
        %v770 = vadd.f32 0.0, %v769
        %v771 = vpop.f32.mrb[0].mxu0
        %v772 = vadd.f32 0.0, %v771
        %v773 = vpop.f32.mrb[0].mxu0
        %v774 = vadd.f32 0.0, %v773
        %v775 = vpop.f32.mrb[0].mxu0
        %v776 = vadd.f32 0.0, %v775
        %777 = vmatprep.mubr.bf16.mxu0 0
        %778 = vmatmul.mubr.bf16.gmra.mrb[0].mxu0 %v691
        %v779 = vpop.f32.mrb[0].mxu0
        %v780 = vadd.f32 0.0, %v779
        %v781 = vpop.f32.mrb[0].mxu0
        %v782 = vadd.f32 0.0, %v781
        %v783 = vpop.f32.mrb[0].mxu0
        %v784 = vadd.f32 0.0, %v783
        %v785 = vpop.f32.mrb[0].mxu0
        %v786 = vadd.f32 0.0, %v785
        %787 = vmatprep.mubr.bf16.mxu0 0
        %788 = vmatmul.mubr.bf16.gmra.mrb[0].mxu0 %v694
        %v789 = vpop.f32.mrb[0].mxu0
        %v790 = vadd.f32 0.0, %v789
        %v791 = vpop.f32.mrb[0].mxu0
        %v792 = vadd.f32 0.0, %v791
        %v793 = vpop.f32.mrb[0].mxu0
        %v794 = vadd.f32 0.0, %v793
        %v795 = vpop.f32.mrb[0].mxu0
        %v796 = vadd.f32 0.0, %v795
        %797 = vmatprep.mubr.bf16.mxu0 0
        %798 = vmatmul.mubr.bf16.gmra.mrb[0].mxu0 %v697
        %v799 = vpop.f32.mrb[0].mxu0
        %v800 = vadd.f32 0.0, %v799
        %v801 = vpop.f32.mrb[0].mxu0
        %v802 = vadd.f32 0.0, %v801
        %v803 = vpop.f32.mrb[0].mxu0
        %v804 = vadd.f32 0.0, %v803
        %v805 = vpop.f32.mrb[0].mxu0
        %v806 = vadd.f32 0.0, %v805
        %807 = vmatprep.mubr.bf16.mxu0 0
        %808 = vmatmul.mubr.bf16.gmra.mrb[0].mxu0 %v700
        %v809 = vpop.f32.mrb[0].mxu0
        %v810 = vadd.f32 0.0, %v809
        %v811 = vpop.f32.mrb[0].mxu0
        %v812 = vadd.f32 0.0, %v811
        %v813 = vpop.f32.mrb[0].mxu0
        %v814 = vadd.f32 0.0, %v813
        %v815 = vpop.f32.mrb[0].mxu0
        %v816 = vadd.f32 0.0, %v815
        %817 = vmatprep.mubr.bf16.mxu0 0
        %818 = vmatmul.mubr.bf16.gmra.mrb[0].mxu0 %v703
        %v819 = vpop.f32.mrb[0].mxu0
        %v820 = vadd.f32 0.0, %v819
        %v821 = vpop.f32.mrb[0].mxu0
        %v822 = vadd.f32 0.0, %v821
        %v823 = vpop.f32.mrb[0].mxu0
        %v824 = vadd.f32 0.0, %v823
        %v825 = vpop.f32.mrb[0].mxu0
        %v826 = vadd.f32 0.0, %v825
        %827 = vmatprep.mubr.bf16.mxu0 0
        %828 = vmatmul.mubr.bf16.gmra.mrb[0].mxu0 %v706
        %v829 = vpop.f32.mrb[0].mxu0
        %v830 = vadd.f32 0.0, %v829
        %v831 = vpop.f32.mrb[0].mxu0
        %v832 = vadd.f32 0.0, %v831
        %v833 = vpop.f32.mrb[0].mxu0
        %v834 = vadd.f32 0.0, %v833
        %v835 = vpop.f32.mrb[0].mxu0
        %v836 = vadd.f32 0.0, %v835
        %837 = vmatprep.mubr.bf16.mxu0 0
        %838 = vmatmul.mubr.bf16.gmra.mrb[0].mxu0 %v709
        %v839 = vpop.f32.mrb[0].mxu0
        %v840 = vadd.f32 0.0, %v839
        %v841 = vpop.f32.mrb[0].mxu0
        %v842 = vadd.f32 0.0, %v841
        %v843 = vpop.f32.mrb[0].mxu0
        %v844 = vadd.f32 0.0, %v843
        %v845 = vpop.f32.mrb[0].mxu0
        %v846 = vadd.f32 0.0, %v845
        %847 = vmatprep.mubr.bf16.mxu0 0
        %848 = vmatmul.mubr.bf16.gmra.mrb[0].mxu0 %v712
        %v849 = vpop.f32.mrb[0].mxu0
        %v850 = vadd.f32 0.0, %v849
        %v851 = vpop.f32.mrb[0].mxu0
        %v852 = vadd.f32 0.0, %v851
        %v853 = vpop.f32.mrb[0].mxu0
        %v854 = vadd.f32 0.0, %v853
        %v855 = vpop.f32.mrb[0].mxu0
        %v856 = vadd.f32 0.0, %v855
        %857 = vmatprep.mubr.bf16.mxu0 0
        %858 = vmatmul.mubr.bf16.gmra.mrb[0].mxu0 %v715
        %v859 = vpop.f32.mrb[0].mxu0
        %v860 = vadd.f32 0.0, %v859
        %v861 = vpop.f32.mrb[0].mxu0
        %v862 = vadd.f32 0.0, %v861
        %v863 = vpop.f32.mrb[0].mxu0
        %v864 = vadd.f32 0.0, %v863
        %v865 = vpop.f32.mrb[0].mxu0
        %v866 = vadd.f32 0.0, %v865
        %867 = vmatprep.mubr.bf16.mxu0 0
        %868 = vmatmul.mubr.bf16.gmra.mrb[0].mxu0 %v718
        %v869 = vpop.f32.mrb[0].mxu0
        %v870 = vadd.f32 0.0, %v869
        %v871 = vpop.f32.mrb[0].mxu0
        %v872 = vadd.f32 0.0, %v871
        %v873 = vpop.f32.mrb[0].mxu0
        %v874 = vadd.f32 0.0, %v873
        %v875 = vpop.f32.mrb[0].mxu0
        %v876 = vadd.f32 0.0, %v875
        %877 = vmatprep.mubr.bf16.mxu0 0
        %878 = vmatmul.mubr.bf16.gmra.mrb[0].mxu0 %v721
        %v879 = vpop.f32.mrb[0].mxu0
        %v880 = vadd.f32 0.0, %v879
        %v881 = vpop.f32.mrb[0].mxu0
        %v882 = vadd.f32 0.0, %v881
        %v883 = vpop.f32.mrb[0].mxu0
        %v884 = vadd.f32 0.0, %v883
        %v885 = vpop.f32.mrb[0].mxu0
        %v886 = vadd.f32 0.0, %v885
        %887 = vmatprep.mubr.bf16.mxu0 0
        %888 = vmatmul.mubr.bf16.gmra.mrb[0].mxu0 %v724
        %v889 = vpop.f32.mrb[0].mxu0
        %v890 = vadd.f32 0.0, %v889
        %v891 = vpop.f32.mrb[0].mxu0
        %v892 = vadd.f32 0.0, %v891
        %v893 = vpop.f32.mrb[0].mxu0
        %v894 = vadd.f32 0.0, %v893
        %v895 = vpop.f32.mrb[0].mxu0
        %v896 = vadd.f32 0.0, %v895
        %897 = vmatprep.mubr.bf16.mxu0 0
        %898 = vmatmul.mubr.bf16.gmra.mrb[0].mxu0 %v727
        %v899 = vpop.f32.mrb[0].mxu0
        %v900 = vadd.f32 0.0, %v899
        %v901 = vpop.f32.mrb[0].mxu0
        %v902 = vadd.f32 0.0, %v901
        %v903 = vpop.f32.mrb[0].mxu0
        %v904 = vadd.f32 0.0, %v903
        %v905 = vpop.f32.mrb[0].mxu0
        %v906 = vadd.f32 0.0, %v905
        %907 = vmatprep.mubr.bf16.mxu0 0
        %908 = vmatmul.mubr.bf16.gmra.mrb[0].mxu0 %v730
        %v909 = vpop.f32.mrb[0].mxu0
        %v910 = vadd.f32 0.0, %v909
        %v911 = vpop.f32.mrb[0].mxu0
        %v912 = vadd.f32 0.0, %v911
        %v913 = vpop.f32.mrb[0].mxu0
        %v914 = vadd.f32 0.0, %v913
        %v915 = vpop.f32.mrb[0].mxu0
        %v916 = vadd.f32 0.0, %v915
        %917 = vmatprep.mubr.bf16.mxu0 0
        %918 = vmatmul.mubr.bf16.gmra.mrb[0].mxu0 %v733
        %v919 = vpop.f32.mrb[0].mxu0
        %v920 = vadd.f32 0.0, %v919
        %v921 = vpop.f32.mrb[0].mxu0
        %v922 = vadd.f32 0.0, %v921
        %v923 = vpop.f32.mrb[0].mxu0
        %v924 = vadd.f32 0.0, %v923
        %v925 = vpop.f32.mrb[0].mxu0
        %v926 = vadd.f32 0.0, %v925
        %927 = vdwg.mxu0
        %v932 = vunpack.c.l.b16 %v608
        %v933 = vunpack.c.h.b16 %v608
        %v934 = vunpack.c.l.b16 %v609
        %v935 = vunpack.c.h.b16 %v609
        %v936 = vunpack.c.l.b16 %v610
        %v937 = vunpack.c.h.b16 %v610
        %v938 = vunpack.c.l.b16 %v611
        %v939 = vunpack.c.h.b16 %v611
        %v940 = vpack.c.b16 %v934, %v932
        %v941 = vpack.c.b16 %v935, %v933
        %v942 = vpack.c.b16 %v938, %v936
        %v943 = vpack.c.b16 %v939, %v937
        %v949 = vsel %vm686, %v592, 0
        %v952 = vsel %vm686, %v593, 0
        %v955 = vsel %vm686, %v594, 0
        %v958 = vsel %vm686, %v595, 0
        %v961 = vsel %vm686, %v596, 0
        %v964 = vsel %vm686, %v597, 0
        %v967 = vsel %vm686, %v598, 0
        %v970 = vsel %vm686, %v599, 0
        %v973 = vsel %vm686, %v600, 0
        %v976 = vsel %vm686, %v601, 0
        %v979 = vsel %vm686, %v602, 0
        %v982 = vsel %vm686, %v603, 0
        %v985 = vsel %vm686, %v604, 0
        %v988 = vsel %vm686, %v605, 0
        %v991 = vsel %vm686, %v606, 0
        %v994 = vsel %vm686, %v607, 0
        %996 = vmatprep.subr.bf16.mxu0 %v941
        %997 = vmatpush1.bf16.msra.mxu0 %v940
        %998 = vmatprep.subr.bf16.mxu0 %v943
        %999 = vmatpush1.bf16.msra.mxu0 %v942
        %1000 = vmatprep.subr.bf16.mxu0 0
        %1001 = vmatpush1.bf16.msra.mxu0 0
        %1002 = vmatprep.subr.bf16.mxu0 0
        %1003 = vmatpush1.bf16.msra.mxu0 0
        %1004 = vmatprep.subr.bf16.mxu0 0
        %1005 = vmatpush1.bf16.msra.mxu0 0
        %1006 = vmatprep.subr.bf16.mxu0 0
        %1007 = vmatpush1.bf16.msra.mxu0 0
        %1008 = vmatprep.subr.bf16.mxu0 0
        %1009 = vmatpush1.bf16.msra.mxu0 0
        %1010 = vmatprep.subr.bf16.mxu0 0
        %1011 = vmatpush1.bf16.msra.mxu0 0
        %1012 = vmatprep.subr.bf16.mxu0 0
        %1013 = vmatpush1.bf16.msra.mxu0 0
        %1014 = vmatprep.subr.bf16.mxu0 0
        %1015 = vmatpush1.bf16.msra.mxu0 0
        %1016 = vmatprep.subr.bf16.mxu0 0
        %1017 = vmatpush1.bf16.msra.mxu0 0
        %1018 = vmatprep.subr.bf16.mxu0 0
        %1019 = vmatpush1.bf16.msra.mxu0 0
        %1020 = vmatprep.subr.bf16.mxu0 0
        %1021 = vmatpush1.bf16.msra.mxu0 0
        %1022 = vmatprep.subr.bf16.mxu0 0
        %1023 = vmatpush1.bf16.msra.mxu0 0
        %1024 = vmatprep.subr.bf16.mxu0 0
        %1025 = vmatpush1.bf16.msra.mxu0 0
        %1026 = vmatprep.subr.bf16.mxu0 0
        %1027 = vmatpush1.bf16.msra.mxu0 0
        %1028 = vmatprep.mubr.bf16.mxu0 0
        %1029 = vmatmul.mubr.bf16.gmra.mrb[0].mxu0 %v949
        %v1030 = vpop.f32.mrb[0].mxu0
        %v1031 = vadd.f32 %v770, %v1030
        %v1032 = vpop.f32.mrb[0].mxu0
        %v1033 = vadd.f32 %v772, %v1032
        %v1034 = vpop.f32.mrb[0].mxu0
        %v1035 = vadd.f32 %v774, %v1034
        %v1036 = vpop.f32.mrb[0].mxu0
        %v1037 = vadd.f32 %v776, %v1036
        %1038 = vmatprep.mubr.bf16.mxu0 0
        %1039 = vmatmul.mubr.bf16.gmra.mrb[0].mxu0 %v952
        %v1040 = vpop.f32.mrb[0].mxu0
        %v1041 = vadd.f32 %v780, %v1040
        %v1042 = vpop.f32.mrb[0].mxu0
        %v1043 = vadd.f32 %v782, %v1042
        %v1044 = vpop.f32.mrb[0].mxu0
        %v1045 = vadd.f32 %v784, %v1044
        %v1046 = vpop.f32.mrb[0].mxu0
        %v1047 = vadd.f32 %v786, %v1046
        %1048 = vmatprep.mubr.bf16.mxu0 0
        %1049 = vmatmul.mubr.bf16.gmra.mrb[0].mxu0 %v955
        %v1050 = vpop.f32.mrb[0].mxu0
        %v1051 = vadd.f32 %v790, %v1050
        %v1052 = vpop.f32.mrb[0].mxu0
        %v1053 = vadd.f32 %v792, %v1052
        %v1054 = vpop.f32.mrb[0].mxu0
        %v1055 = vadd.f32 %v794, %v1054
        %v1056 = vpop.f32.mrb[0].mxu0
        %v1057 = vadd.f32 %v796, %v1056
        %1058 = vmatprep.mubr.bf16.mxu0 0
        %1059 = vmatmul.mubr.bf16.gmra.mrb[0].mxu0 %v958
        %v1060 = vpop.f32.mrb[0].mxu0
        %v1061 = vadd.f32 %v800, %v1060
        %v1062 = vpop.f32.mrb[0].mxu0
        %v1063 = vadd.f32 %v802, %v1062
        %v1064 = vpop.f32.mrb[0].mxu0
        %v1065 = vadd.f32 %v804, %v1064
        %v1066 = vpop.f32.mrb[0].mxu0
        %v1067 = vadd.f32 %v806, %v1066
        %1068 = vmatprep.mubr.bf16.mxu0 0
        %1069 = vmatmul.mubr.bf16.gmra.mrb[0].mxu0 %v961
        %v1070 = vpop.f32.mrb[0].mxu0
        %v1071 = vadd.f32 %v810, %v1070
        %v1072 = vpop.f32.mrb[0].mxu0
        %v1073 = vadd.f32 %v812, %v1072
        %v1074 = vpop.f32.mrb[0].mxu0
        %v1075 = vadd.f32 %v814, %v1074
        %v1076 = vpop.f32.mrb[0].mxu0
        %v1077 = vadd.f32 %v816, %v1076
        %1078 = vmatprep.mubr.bf16.mxu0 0
        %1079 = vmatmul.mubr.bf16.gmra.mrb[0].mxu0 %v964
        %v1080 = vpop.f32.mrb[0].mxu0
        %v1081 = vadd.f32 %v820, %v1080
        %v1082 = vpop.f32.mrb[0].mxu0
        %v1083 = vadd.f32 %v822, %v1082
        %v1084 = vpop.f32.mrb[0].mxu0
        %v1085 = vadd.f32 %v824, %v1084
        %v1086 = vpop.f32.mrb[0].mxu0
        %v1087 = vadd.f32 %v826, %v1086
        %1088 = vmatprep.mubr.bf16.mxu0 0
        %1089 = vmatmul.mubr.bf16.gmra.mrb[0].mxu0 %v967
        %v1090 = vpop.f32.mrb[0].mxu0
        %v1091 = vadd.f32 %v830, %v1090
        %v1092 = vpop.f32.mrb[0].mxu0
        %v1093 = vadd.f32 %v832, %v1092
        %v1094 = vpop.f32.mrb[0].mxu0
        %v1095 = vadd.f32 %v834, %v1094
        %v1096 = vpop.f32.mrb[0].mxu0
        %v1097 = vadd.f32 %v836, %v1096
        %1098 = vmatprep.mubr.bf16.mxu0 0
        %1099 = vmatmul.mubr.bf16.gmra.mrb[0].mxu0 %v970
        %v1100 = vpop.f32.mrb[0].mxu0
        %v1101 = vadd.f32 %v840, %v1100
        %v1102 = vpop.f32.mrb[0].mxu0
        %v1103 = vadd.f32 %v842, %v1102
        %v1104 = vpop.f32.mrb[0].mxu0
        %v1105 = vadd.f32 %v844, %v1104
        %v1106 = vpop.f32.mrb[0].mxu0
        %v1107 = vadd.f32 %v846, %v1106
        %1108 = vmatprep.mubr.bf16.mxu0 0
        %1109 = vmatmul.mubr.bf16.gmra.mrb[0].mxu0 %v973
        %v1110 = vpop.f32.mrb[0].mxu0
        %v1111 = vadd.f32 %v850, %v1110
        %v1112 = vpop.f32.mrb[0].mxu0
        %v1113 = vadd.f32 %v852, %v1112
        %v1114 = vpop.f32.mrb[0].mxu0
        %v1115 = vadd.f32 %v854, %v1114
        %v1116 = vpop.f32.mrb[0].mxu0
        %v1117 = vadd.f32 %v856, %v1116
        %1118 = vmatprep.mubr.bf16.mxu0 0
        %1119 = vmatmul.mubr.bf16.gmra.mrb[0].mxu0 %v976
        %v1120 = vpop.f32.mrb[0].mxu0
        %v1121 = vadd.f32 %v860, %v1120
        %v1122 = vpop.f32.mrb[0].mxu0
        %v1123 = vadd.f32 %v862, %v1122
        %v1124 = vpop.f32.mrb[0].mxu0
        %v1125 = vadd.f32 %v864, %v1124
        %v1126 = vpop.f32.mrb[0].mxu0
        %v1127 = vadd.f32 %v866, %v1126
        %1128 = vmatprep.mubr.bf16.mxu0 0
        %1129 = vmatmul.mubr.bf16.gmra.mrb[0].mxu0 %v979
        %v1130 = vpop.f32.mrb[0].mxu0
        %v1131 = vadd.f32 %v870, %v1130
        %v1132 = vpop.f32.mrb[0].mxu0
        %v1133 = vadd.f32 %v872, %v1132
        %v1134 = vpop.f32.mrb[0].mxu0
        %v1135 = vadd.f32 %v874, %v1134
        %v1136 = vpop.f32.mrb[0].mxu0
        %v1137 = vadd.f32 %v876, %v1136
        %1138 = vmatprep.mubr.bf16.mxu0 0
        %1139 = vmatmul.mubr.bf16.gmra.mrb[0].mxu0 %v982
        %v1140 = vpop.f32.mrb[0].mxu0
        %v1141 = vadd.f32 %v880, %v1140
        %v1142 = vpop.f32.mrb[0].mxu0
        %v1143 = vadd.f32 %v882, %v1142
        %v1144 = vpop.f32.mrb[0].mxu0
        %v1145 = vadd.f32 %v884, %v1144
        %v1146 = vpop.f32.mrb[0].mxu0
        %v1147 = vadd.f32 %v886, %v1146
        %1148 = vmatprep.mubr.bf16.mxu0 0
        %1149 = vmatmul.mubr.bf16.gmra.mrb[0].mxu0 %v985
        %v1150 = vpop.f32.mrb[0].mxu0
        %v1151 = vadd.f32 %v890, %v1150
        %v1152 = vpop.f32.mrb[0].mxu0
        %v1153 = vadd.f32 %v892, %v1152
        %v1154 = vpop.f32.mrb[0].mxu0
        %v1155 = vadd.f32 %v894, %v1154
        %v1156 = vpop.f32.mrb[0].mxu0
        %v1157 = vadd.f32 %v896, %v1156
        %1158 = vmatprep.mubr.bf16.mxu0 0
        %1159 = vmatmul.mubr.bf16.gmra.mrb[0].mxu0 %v988
        %v1160 = vpop.f32.mrb[0].mxu0
        %v1161 = vadd.f32 %v900, %v1160
        %v1162 = vpop.f32.mrb[0].mxu0
        %v1163 = vadd.f32 %v902, %v1162
        %v1164 = vpop.f32.mrb[0].mxu0
        %v1165 = vadd.f32 %v904, %v1164
        %v1166 = vpop.f32.mrb[0].mxu0
        %v1167 = vadd.f32 %v906, %v1166
        %1168 = vmatprep.mubr.bf16.mxu0 0
        %1169 = vmatmul.mubr.bf16.gmra.mrb[0].mxu0 %v991
        %v1170 = vpop.f32.mrb[0].mxu0
        %v1171 = vadd.f32 %v910, %v1170
        %v1172 = vpop.f32.mrb[0].mxu0
        %v1173 = vadd.f32 %v912, %v1172
        %v1174 = vpop.f32.mrb[0].mxu0
        %v1175 = vadd.f32 %v914, %v1174
        %v1176 = vpop.f32.mrb[0].mxu0
        %v1177 = vadd.f32 %v916, %v1176
        %1178 = vmatprep.mubr.bf16.mxu0 0
        %1179 = vmatmul.mubr.bf16.gmra.mrb[0].mxu0 %v994
        %v1180 = vpop.f32.mrb[0].mxu0
        %v1181 = vadd.f32 %v920, %v1180
        %v1182 = vpop.f32.mrb[0].mxu0
        %v1183 = vadd.f32 %v922, %v1182
        %v1184 = vpop.f32.mrb[0].mxu0
        %v1185 = vadd.f32 %v924, %v1184
        %v1186 = vpop.f32.mrb[0].mxu0
        %v1187 = vadd.f32 %v926, %v1186
        %1188 = vdwg.mxu0
        %s1189 = scalar_lea.vmem %s519, 16 [#allocation2]
        %v1190 = vld [vmem:[%s1189] sm:$0xff]
        %v1191 = vld [vmem:[%s1189 + $0x8] sm:$0xff]
        %v1192 = vld [vmem:[%s1189 + $0x10] sm:$0xff]
        %v1193 = vld [vmem:[%s1189 + $0x18] sm:$0xff]
        %v1194 = vld [vmem:[%s1189 + $0x20] sm:$0xff]
        %v1195 = vld [vmem:[%s1189 + $0x28] sm:$0xff]
        %v1196 = vld [vmem:[%s1189 + $0x30] sm:$0xff]
        %v1197 = vld [vmem:[%s1189 + $0x38] sm:$0xff]
        %v1198 = vld [vmem:[%s1189 + $0x40] sm:$0xff]
        %v1199 = vld [vmem:[%s1189 + $0x48] sm:$0xff]
        %v1200 = vld [vmem:[%s1189 + $0x50] sm:$0xff]
        %v1201 = vld [vmem:[%s1189 + $0x58] sm:$0xff]
        %v1202 = vld [vmem:[%s1189 + $0x60] sm:$0xff]
        %v1203 = vld [vmem:[%s1189 + $0x68] sm:$0xff]
        %v1204 = vld [vmem:[%s1189 + $0x70] sm:$0xff]
        %v1205 = vld [vmem:[%s1189 + $0x78] sm:$0xff]
        %v1206 = vld [vmem:[%s1189 + $0x80] sm:$0xff]
        %v1207 = vld [vmem:[%s1189 + $0x88] sm:$0xff]
        %v1208 = vld [vmem:[%s1189 + $0x90] sm:$0xff]
        %v1209 = vld [vmem:[%s1189 + $0x98] sm:$0xff]
        %v1210 = vld [vmem:[%s1189 + $0xa0] sm:$0xff]
        %v1211 = vld [vmem:[%s1189 + $0xa8] sm:$0xff]
        %v1212 = vld [vmem:[%s1189 + $0xb0] sm:$0xff]
        %v1213 = vld [vmem:[%s1189 + $0xb8] sm:$0xff]
        %v1214 = vld [vmem:[%s1189 + $0xc0] sm:$0xff]
        %v1215 = vld [vmem:[%s1189 + $0xc8] sm:$0xff]
        %v1216 = vld [vmem:[%s1189 + $0xd0] sm:$0xff]
        %v1217 = vld [vmem:[%s1189 + $0xd8] sm:$0xff]
        %v1218 = vld [vmem:[%s1189 + $0xe0] sm:$0xff]
        %v1219 = vld [vmem:[%s1189 + $0xe8] sm:$0xff]
        %v1220 = vld [vmem:[%s1189 + $0xf0] sm:$0xff]
        %v1221 = vld [vmem:[%s1189 + $0xf8] sm:$0xff]
        %v1222 = vpack.c.bf16 %v1191, %v1190
        %v1223 = vpack.c.bf16 %v1193, %v1192
        %v1224 = vpack.c.bf16 %v1195, %v1194
        %v1225 = vpack.c.bf16 %v1197, %v1196
        %v1226 = vpack.c.bf16 %v1199, %v1198
        %v1227 = vpack.c.bf16 %v1201, %v1200
        %v1228 = vpack.c.bf16 %v1203, %v1202
        %v1229 = vpack.c.bf16 %v1205, %v1204
        %v1230 = vpack.c.bf16 %v1207, %v1206
        %v1231 = vpack.c.bf16 %v1209, %v1208
        %v1232 = vpack.c.bf16 %v1211, %v1210
        %v1233 = vpack.c.bf16 %v1213, %v1212
        %v1234 = vpack.c.bf16 %v1215, %v1214
        %v1235 = vpack.c.bf16 %v1217, %v1216
        %v1236 = vpack.c.bf16 %v1219, %v1218
        %v1237 = vpack.c.bf16 %v1221, %v1220
        %s1238 = scalar_lea.vmem %s1, 64
        %v1239 = vld [vmem:[%s1238] sm:$0xff]
        %v1240 = vld [vmem:[%s1238 + $0x8] sm:$0xff]
        %v1241 = vld [vmem:[%s1238 + $0x10] sm:$0xff]
        %v1242 = vld [vmem:[%s1238 + $0x18] sm:$0xff]
        %v1247 = vunpack.c.l.b16 %v1239
        %v1248 = vunpack.c.h.b16 %v1239
        %v1249 = vunpack.c.l.b16 %v1240
        %v1250 = vunpack.c.h.b16 %v1240
        %v1251 = vunpack.c.l.b16 %v1241
        %v1252 = vunpack.c.h.b16 %v1241
        %v1253 = vunpack.c.l.b16 %v1242
        %v1254 = vunpack.c.h.b16 %v1242
        %v1255 = vpack.c.b16 %v1249, %v1247
        %v1256 = vpack.c.b16 %v1250, %v1248
        %v1257 = vpack.c.b16 %v1253, %v1251
        %v1258 = vpack.c.b16 %v1254, %v1252
        %v1264 = vsel %vm686, %v1222, 0
        %v1267 = vsel %vm686, %v1223, 0
        %v1270 = vsel %vm686, %v1224, 0
        %v1273 = vsel %vm686, %v1225, 0
        %v1276 = vsel %vm686, %v1226, 0
        %v1279 = vsel %vm686, %v1227, 0
        %v1282 = vsel %vm686, %v1228, 0
        %v1285 = vsel %vm686, %v1229, 0
        %v1288 = vsel %vm686, %v1230, 0
        %v1291 = vsel %vm686, %v1231, 0
        %v1294 = vsel %vm686, %v1232, 0
        %v1297 = vsel %vm686, %v1233, 0
        %v1300 = vsel %vm686, %v1234, 0
        %v1303 = vsel %vm686, %v1235, 0
        %v1306 = vsel %vm686, %v1236, 0
        %v1309 = vsel %vm686, %v1237, 0
        %1311 = vmatprep.subr.bf16.mxu0 %v1256
        %1312 = vmatpush1.bf16.msra.mxu0 %v1255
        %1313 = vmatprep.subr.bf16.mxu0 %v1258
        %1314 = vmatpush1.bf16.msra.mxu0 %v1257
        %1315 = vmatprep.subr.bf16.mxu0 0
        %1316 = vmatpush1.bf16.msra.mxu0 0
        %1317 = vmatprep.subr.bf16.mxu0 0
        %1318 = vmatpush1.bf16.msra.mxu0 0
        %1319 = vmatprep.subr.bf16.mxu0 0
        %1320 = vmatpush1.bf16.msra.mxu0 0
        %1321 = vmatprep.subr.bf16.mxu0 0
        %1322 = vmatpush1.bf16.msra.mxu0 0
        %1323 = vmatprep.subr.bf16.mxu0 0
        %1324 = vmatpush1.bf16.msra.mxu0 0
        %1325 = vmatprep.subr.bf16.mxu0 0
        %1326 = vmatpush1.bf16.msra.mxu0 0
        %1327 = vmatprep.subr.bf16.mxu0 0
        %1328 = vmatpush1.bf16.msra.mxu0 0
        %1329 = vmatprep.subr.bf16.mxu0 0
        %1330 = vmatpush1.bf16.msra.mxu0 0
        %1331 = vmatprep.subr.bf16.mxu0 0
        %1332 = vmatpush1.bf16.msra.mxu0 0
        %1333 = vmatprep.subr.bf16.mxu0 0
        %1334 = vmatpush1.bf16.msra.mxu0 0
        %1335 = vmatprep.subr.bf16.mxu0 0
        %1336 = vmatpush1.bf16.msra.mxu0 0
        %1337 = vmatprep.subr.bf16.mxu0 0
        %1338 = vmatpush1.bf16.msra.mxu0 0
        %1339 = vmatprep.subr.bf16.mxu0 0
        %1340 = vmatpush1.bf16.msra.mxu0 0
        %1341 = vmatprep.subr.bf16.mxu0 0
        %1342 = vmatpush1.bf16.msra.mxu0 0
        %1343 = vmatprep.mubr.bf16.mxu0 0
        %1344 = vmatmul.mubr.bf16.gmra.mrb[0].mxu0 %v1264
        %v1345 = vpop.f32.mrb[0].mxu0
        %v1346 = vadd.f32 0.0, %v1345
        %v1347 = vpop.f32.mrb[0].mxu0
        %v1348 = vadd.f32 0.0, %v1347
        %v1349 = vpop.f32.mrb[0].mxu0
        %v1350 = vadd.f32 0.0, %v1349
        %v1351 = vpop.f32.mrb[0].mxu0
        %v1352 = vadd.f32 0.0, %v1351
        %1353 = vmatprep.mubr.bf16.mxu0 0
        %1354 = vmatmul.mubr.bf16.gmra.mrb[0].mxu0 %v1267
        %v1355 = vpop.f32.mrb[0].mxu0
        %v1356 = vadd.f32 0.0, %v1355
        %v1357 = vpop.f32.mrb[0].mxu0
        %v1358 = vadd.f32 0.0, %v1357
        %v1359 = vpop.f32.mrb[0].mxu0
        %v1360 = vadd.f32 0.0, %v1359
        %v1361 = vpop.f32.mrb[0].mxu0
        %v1362 = vadd.f32 0.0, %v1361
        %1363 = vmatprep.mubr.bf16.mxu0 0
        %1364 = vmatmul.mubr.bf16.gmra.mrb[0].mxu0 %v1270
        %v1365 = vpop.f32.mrb[0].mxu0
        %v1366 = vadd.f32 0.0, %v1365
        %v1367 = vpop.f32.mrb[0].mxu0
        %v1368 = vadd.f32 0.0, %v1367
        %v1369 = vpop.f32.mrb[0].mxu0
        %v1370 = vadd.f32 0.0, %v1369
        %v1371 = vpop.f32.mrb[0].mxu0
        %v1372 = vadd.f32 0.0, %v1371
        %1373 = vmatprep.mubr.bf16.mxu0 0
        %1374 = vmatmul.mubr.bf16.gmra.mrb[0].mxu0 %v1273
        %v1375 = vpop.f32.mrb[0].mxu0
        %v1376 = vadd.f32 0.0, %v1375
        %v1377 = vpop.f32.mrb[0].mxu0
        %v1378 = vadd.f32 0.0, %v1377
        %v1379 = vpop.f32.mrb[0].mxu0
        %v1380 = vadd.f32 0.0, %v1379
        %v1381 = vpop.f32.mrb[0].mxu0
        %v1382 = vadd.f32 0.0, %v1381
        %1383 = vmatprep.mubr.bf16.mxu0 0
        %1384 = vmatmul.mubr.bf16.gmra.mrb[0].mxu0 %v1276
        %v1385 = vpop.f32.mrb[0].mxu0
        %v1386 = vadd.f32 0.0, %v1385
        %v1387 = vpop.f32.mrb[0].mxu0
        %v1388 = vadd.f32 0.0, %v1387
        %v1389 = vpop.f32.mrb[0].mxu0
        %v1390 = vadd.f32 0.0, %v1389
        %v1391 = vpop.f32.mrb[0].mxu0
        %v1392 = vadd.f32 0.0, %v1391
        %1393 = vmatprep.mubr.bf16.mxu0 0
        %1394 = vmatmul.mubr.bf16.gmra.mrb[0].mxu0 %v1279
        %v1395 = vpop.f32.mrb[0].mxu0
        %v1396 = vadd.f32 0.0, %v1395
        %v1397 = vpop.f32.mrb[0].mxu0
        %v1398 = vadd.f32 0.0, %v1397
        %v1399 = vpop.f32.mrb[0].mxu0
        %v1400 = vadd.f32 0.0, %v1399
        %v1401 = vpop.f32.mrb[0].mxu0
        %v1402 = vadd.f32 0.0, %v1401
        %1403 = vmatprep.mubr.bf16.mxu0 0
        %1404 = vmatmul.mubr.bf16.gmra.mrb[0].mxu0 %v1282
        %v1405 = vpop.f32.mrb[0].mxu0
        %v1406 = vadd.f32 0.0, %v1405
        %v1407 = vpop.f32.mrb[0].mxu0
        %v1408 = vadd.f32 0.0, %v1407
        %v1409 = vpop.f32.mrb[0].mxu0
        %v1410 = vadd.f32 0.0, %v1409
        %v1411 = vpop.f32.mrb[0].mxu0
        %v1412 = vadd.f32 0.0, %v1411
        %1413 = vmatprep.mubr.bf16.mxu0 0
        %1414 = vmatmul.mubr.bf16.gmra.mrb[0].mxu0 %v1285
        %v1415 = vpop.f32.mrb[0].mxu0
        %v1416 = vadd.f32 0.0, %v1415
        %v1417 = vpop.f32.mrb[0].mxu0
        %v1418 = vadd.f32 0.0, %v1417
        %v1419 = vpop.f32.mrb[0].mxu0
        %v1420 = vadd.f32 0.0, %v1419
        %v1421 = vpop.f32.mrb[0].mxu0
        %v1422 = vadd.f32 0.0, %v1421
        %1423 = vmatprep.mubr.bf16.mxu0 0
        %1424 = vmatmul.mubr.bf16.gmra.mrb[0].mxu0 %v1288
        %v1425 = vpop.f32.mrb[0].mxu0
        %v1426 = vadd.f32 0.0, %v1425
        %v1427 = vpop.f32.mrb[0].mxu0
        %v1428 = vadd.f32 0.0, %v1427
        %v1429 = vpop.f32.mrb[0].mxu0
        %v1430 = vadd.f32 0.0, %v1429
        %v1431 = vpop.f32.mrb[0].mxu0
        %v1432 = vadd.f32 0.0, %v1431
        %1433 = vmatprep.mubr.bf16.mxu0 0
        %1434 = vmatmul.mubr.bf16.gmra.mrb[0].mxu0 %v1291
        %v1435 = vpop.f32.mrb[0].mxu0
        %v1436 = vadd.f32 0.0, %v1435
        %v1437 = vpop.f32.mrb[0].mxu0
        %v1438 = vadd.f32 0.0, %v1437
        %v1439 = vpop.f32.mrb[0].mxu0
        %v1440 = vadd.f32 0.0, %v1439
        %v1441 = vpop.f32.mrb[0].mxu0
        %v1442 = vadd.f32 0.0, %v1441
        %1443 = vmatprep.mubr.bf16.mxu0 0
        %1444 = vmatmul.mubr.bf16.gmra.mrb[0].mxu0 %v1294
        %v1445 = vpop.f32.mrb[0].mxu0
        %v1446 = vadd.f32 0.0, %v1445
        %v1447 = vpop.f32.mrb[0].mxu0
        %v1448 = vadd.f32 0.0, %v1447
        %v1449 = vpop.f32.mrb[0].mxu0
        %v1450 = vadd.f32 0.0, %v1449
        %v1451 = vpop.f32.mrb[0].mxu0
        %v1452 = vadd.f32 0.0, %v1451
        %1453 = vmatprep.mubr.bf16.mxu0 0
        %1454 = vmatmul.mubr.bf16.gmra.mrb[0].mxu0 %v1297
        %v1455 = vpop.f32.mrb[0].mxu0
        %v1456 = vadd.f32 0.0, %v1455
        %v1457 = vpop.f32.mrb[0].mxu0
        %v1458 = vadd.f32 0.0, %v1457
        %v1459 = vpop.f32.mrb[0].mxu0
        %v1460 = vadd.f32 0.0, %v1459
        %v1461 = vpop.f32.mrb[0].mxu0
        %v1462 = vadd.f32 0.0, %v1461
        %1463 = vmatprep.mubr.bf16.mxu0 0
        %1464 = vmatmul.mubr.bf16.gmra.mrb[0].mxu0 %v1300
        %v1465 = vpop.f32.mrb[0].mxu0
        %v1466 = vadd.f32 0.0, %v1465
        %v1467 = vpop.f32.mrb[0].mxu0
        %v1468 = vadd.f32 0.0, %v1467
        %v1469 = vpop.f32.mrb[0].mxu0
        %v1470 = vadd.f32 0.0, %v1469
        %v1471 = vpop.f32.mrb[0].mxu0
        %v1472 = vadd.f32 0.0, %v1471
        %1473 = vmatprep.mubr.bf16.mxu0 0
        %1474 = vmatmul.mubr.bf16.gmra.mrb[0].mxu0 %v1303
        %v1475 = vpop.f32.mrb[0].mxu0
        %v1476 = vadd.f32 0.0, %v1475
        %v1477 = vpop.f32.mrb[0].mxu0
        %v1478 = vadd.f32 0.0, %v1477
        %v1479 = vpop.f32.mrb[0].mxu0
        %v1480 = vadd.f32 0.0, %v1479
        %v1481 = vpop.f32.mrb[0].mxu0
        %v1482 = vadd.f32 0.0, %v1481
        %1483 = vmatprep.mubr.bf16.mxu0 0
        %1484 = vmatmul.mubr.bf16.gmra.mrb[0].mxu0 %v1306
        %v1485 = vpop.f32.mrb[0].mxu0
        %v1486 = vadd.f32 0.0, %v1485
        %v1487 = vpop.f32.mrb[0].mxu0
        %v1488 = vadd.f32 0.0, %v1487
        %v1489 = vpop.f32.mrb[0].mxu0
        %v1490 = vadd.f32 0.0, %v1489
        %v1491 = vpop.f32.mrb[0].mxu0
        %v1492 = vadd.f32 0.0, %v1491
        %1493 = vmatprep.mubr.bf16.mxu0 0
        %1494 = vmatmul.mubr.bf16.gmra.mrb[0].mxu0 %v1309
        %v1495 = vpop.f32.mrb[0].mxu0
        %v1496 = vadd.f32 0.0, %v1495
        %v1497 = vpop.f32.mrb[0].mxu0
        %v1498 = vadd.f32 0.0, %v1497
        %v1499 = vpop.f32.mrb[0].mxu0
        %v1500 = vadd.f32 0.0, %v1499
        %v1501 = vpop.f32.mrb[0].mxu0
        %v1502 = vadd.f32 0.0, %v1501
        %1503 = vdwg.mxu0
        %v1504 = vadd.f32 %v1031, %v1346
        %v1505 = vadd.f32 %v1033, %v1348
        %v1506 = vadd.f32 %v1035, %v1350
        %v1507 = vadd.f32 %v1037, %v1352
        %v1508 = vadd.f32 %v1041, %v1356
        %v1509 = vadd.f32 %v1043, %v1358
        %v1510 = vadd.f32 %v1045, %v1360
        %v1511 = vadd.f32 %v1047, %v1362
        %v1512 = vadd.f32 %v1051, %v1366
        %v1513 = vadd.f32 %v1053, %v1368
        %v1514 = vadd.f32 %v1055, %v1370
        %v1515 = vadd.f32 %v1057, %v1372
        %v1516 = vadd.f32 %v1061, %v1376
        %v1517 = vadd.f32 %v1063, %v1378
        %v1518 = vadd.f32 %v1065, %v1380
        %v1519 = vadd.f32 %v1067, %v1382
        %v1520 = vadd.f32 %v1071, %v1386
        %v1521 = vadd.f32 %v1073, %v1388
        %v1522 = vadd.f32 %v1075, %v1390
        %v1523 = vadd.f32 %v1077, %v1392
        %v1524 = vadd.f32 %v1081, %v1396
        %v1525 = vadd.f32 %v1083, %v1398
        %v1526 = vadd.f32 %v1085, %v1400
        %v1527 = vadd.f32 %v1087, %v1402
        %v1528 = vadd.f32 %v1091, %v1406
        %v1529 = vadd.f32 %v1093, %v1408
        %v1530 = vadd.f32 %v1095, %v1410
        %v1531 = vadd.f32 %v1097, %v1412
        %v1532 = vadd.f32 %v1101, %v1416
        %v1533 = vadd.f32 %v1103, %v1418
        %v1534 = vadd.f32 %v1105, %v1420
        %v1535 = vadd.f32 %v1107, %v1422
        %v1536 = vadd.f32 %v1111, %v1426
        %v1537 = vadd.f32 %v1113, %v1428
        %v1538 = vadd.f32 %v1115, %v1430
        %v1539 = vadd.f32 %v1117, %v1432
        %v1540 = vadd.f32 %v1121, %v1436
        %v1541 = vadd.f32 %v1123, %v1438
        %v1542 = vadd.f32 %v1125, %v1440
        %v1543 = vadd.f32 %v1127, %v1442
        %v1544 = vadd.f32 %v1131, %v1446
        %v1545 = vadd.f32 %v1133, %v1448
        %v1546 = vadd.f32 %v1135, %v1450
        %v1547 = vadd.f32 %v1137, %v1452
        %v1548 = vadd.f32 %v1141, %v1456
        %v1549 = vadd.f32 %v1143, %v1458
        %v1550 = vadd.f32 %v1145, %v1460
        %v1551 = vadd.f32 %v1147, %v1462
        %v1552 = vadd.f32 %v1151, %v1466
        %v1553 = vadd.f32 %v1153, %v1468
        %v1554 = vadd.f32 %v1155, %v1470
        %v1555 = vadd.f32 %v1157, %v1472
        %v1556 = vadd.f32 %v1161, %v1476
        %v1557 = vadd.f32 %v1163, %v1478
        %v1558 = vadd.f32 %v1165, %v1480
        %v1559 = vadd.f32 %v1167, %v1482
        %v1560 = vadd.f32 %v1171, %v1486
        %v1561 = vadd.f32 %v1173, %v1488
        %v1562 = vadd.f32 %v1175, %v1490
        %v1563 = vadd.f32 %v1177, %v1492
        %v1564 = vadd.f32 %v1181, %v1496
        %v1565 = vadd.f32 %v1183, %v1498
        %v1566 = vadd.f32 %v1185, %v1500
        %v1567 = vadd.f32 %v1187, %v1502
        %s1568 = scalar_lea.vmem %s519, 24 [#allocation2]
        %v1569 = vld [vmem:[%s1568] sm:$0xff]
        %v1570 = vld [vmem:[%s1568 + $0x8] sm:$0xff]
        %v1571 = vld [vmem:[%s1568 + $0x10] sm:$0xff]
        %v1572 = vld [vmem:[%s1568 + $0x18] sm:$0xff]
        %v1573 = vld [vmem:[%s1568 + $0x20] sm:$0xff]
        %v1574 = vld [vmem:[%s1568 + $0x28] sm:$0xff]
        %v1575 = vld [vmem:[%s1568 + $0x30] sm:$0xff]
        %v1576 = vld [vmem:[%s1568 + $0x38] sm:$0xff]
        %v1577 = vld [vmem:[%s1568 + $0x40] sm:$0xff]
        %v1578 = vld [vmem:[%s1568 + $0x48] sm:$0xff]
        %v1579 = vld [vmem:[%s1568 + $0x50] sm:$0xff]
        %v1580 = vld [vmem:[%s1568 + $0x58] sm:$0xff]
        %v1581 = vld [vmem:[%s1568 + $0x60] sm:$0xff]
        %v1582 = vld [vmem:[%s1568 + $0x68] sm:$0xff]
        %v1583 = vld [vmem:[%s1568 + $0x70] sm:$0xff]
        %v1584 = vld [vmem:[%s1568 + $0x78] sm:$0xff]
        %v1585 = vld [vmem:[%s1568 + $0x80] sm:$0xff]
        %v1586 = vld [vmem:[%s1568 + $0x88] sm:$0xff]
        %v1587 = vld [vmem:[%s1568 + $0x90] sm:$0xff]
        %v1588 = vld [vmem:[%s1568 + $0x98] sm:$0xff]
        %v1589 = vld [vmem:[%s1568 + $0xa0] sm:$0xff]
        %v1590 = vld [vmem:[%s1568 + $0xa8] sm:$0xff]
        %v1591 = vld [vmem:[%s1568 + $0xb0] sm:$0xff]
        %v1592 = vld [vmem:[%s1568 + $0xb8] sm:$0xff]
        %v1593 = vld [vmem:[%s1568 + $0xc0] sm:$0xff]
        %v1594 = vld [vmem:[%s1568 + $0xc8] sm:$0xff]
        %v1595 = vld [vmem:[%s1568 + $0xd0] sm:$0xff]
        %v1596 = vld [vmem:[%s1568 + $0xd8] sm:$0xff]
        %v1597 = vld [vmem:[%s1568 + $0xe0] sm:$0xff]
        %v1598 = vld [vmem:[%s1568 + $0xe8] sm:$0xff]
        %v1599 = vld [vmem:[%s1568 + $0xf0] sm:$0xff]
        %v1600 = vld [vmem:[%s1568 + $0xf8] sm:$0xff]
        %v1601 = vpack.c.bf16 %v1570, %v1569
        %v1602 = vpack.c.bf16 %v1572, %v1571
        %v1603 = vpack.c.bf16 %v1574, %v1573
        %v1604 = vpack.c.bf16 %v1576, %v1575
        %v1605 = vpack.c.bf16 %v1578, %v1577
        %v1606 = vpack.c.bf16 %v1580, %v1579
        %v1607 = vpack.c.bf16 %v1582, %v1581
        %v1608 = vpack.c.bf16 %v1584, %v1583
        %v1609 = vpack.c.bf16 %v1586, %v1585
        %v1610 = vpack.c.bf16 %v1588, %v1587
        %v1611 = vpack.c.bf16 %v1590, %v1589
        %v1612 = vpack.c.bf16 %v1592, %v1591
        %v1613 = vpack.c.bf16 %v1594, %v1593
        %v1614 = vpack.c.bf16 %v1596, %v1595
        %v1615 = vpack.c.bf16 %v1598, %v1597
        %v1616 = vpack.c.bf16 %v1600, %v1599
        %s1617 = scalar_lea.vmem %s1, 96
        %v1618 = vld [vmem:[%s1617] sm:$0xff]
        %v1619 = vld [vmem:[%s1617 + $0x8] sm:$0xff]
        %v1620 = vld [vmem:[%s1617 + $0x10] sm:$0xff]
        %v1621 = vld [vmem:[%s1617 + $0x18] sm:$0xff]
        %v1626 = vunpack.c.l.b16 %v1618
        %v1627 = vunpack.c.h.b16 %v1618
        %v1628 = vunpack.c.l.b16 %v1619
        %v1629 = vunpack.c.h.b16 %v1619
        %v1630 = vunpack.c.l.b16 %v1620
        %v1631 = vunpack.c.h.b16 %v1620
        %v1632 = vunpack.c.l.b16 %v1621
        %v1633 = vunpack.c.h.b16 %v1621
        %v1634 = vpack.c.b16 %v1628, %v1626
        %v1635 = vpack.c.b16 %v1629, %v1627
        %v1636 = vpack.c.b16 %v1632, %v1630
        %v1637 = vpack.c.b16 %v1633, %v1631
        %v1643 = vsel %vm686, %v1601, 0
        %v1646 = vsel %vm686, %v1602, 0
        %v1649 = vsel %vm686, %v1603, 0
        %v1652 = vsel %vm686, %v1604, 0
        %v1655 = vsel %vm686, %v1605, 0
        %v1658 = vsel %vm686, %v1606, 0
        %v1661 = vsel %vm686, %v1607, 0
        %v1664 = vsel %vm686, %v1608, 0
        %v1667 = vsel %vm686, %v1609, 0
        %v1670 = vsel %vm686, %v1610, 0
        %v1673 = vsel %vm686, %v1611, 0
        %v1676 = vsel %vm686, %v1612, 0
        %v1679 = vsel %vm686, %v1613, 0
        %v1682 = vsel %vm686, %v1614, 0
        %v1685 = vsel %vm686, %v1615, 0
        %v1688 = vsel %vm686, %v1616, 0
        %1690 = vmatprep.subr.bf16.mxu0 %v1635
        %1691 = vmatpush1.bf16.msra.mxu0 %v1634
        %1692 = vmatprep.subr.bf16.mxu0 %v1637
        %1693 = vmatpush1.bf16.msra.mxu0 %v1636
        %1694 = vmatprep.subr.bf16.mxu0 0
        %1695 = vmatpush1.bf16.msra.mxu0 0
        %1696 = vmatprep.subr.bf16.mxu0 0
        %1697 = vmatpush1.bf16.msra.mxu0 0
        %1698 = vmatprep.subr.bf16.mxu0 0
        %1699 = vmatpush1.bf16.msra.mxu0 0
        %1700 = vmatprep.subr.bf16.mxu0 0
        %1701 = vmatpush1.bf16.msra.mxu0 0
        %1702 = vmatprep.subr.bf16.mxu0 0
        %1703 = vmatpush1.bf16.msra.mxu0 0
        %1704 = vmatprep.subr.bf16.mxu0 0
        %1705 = vmatpush1.bf16.msra.mxu0 0
        %1706 = vmatprep.subr.bf16.mxu0 0
        %1707 = vmatpush1.bf16.msra.mxu0 0
        %1708 = vmatprep.subr.bf16.mxu0 0
        %1709 = vmatpush1.bf16.msra.mxu0 0
        %1710 = vmatprep.subr.bf16.mxu0 0
        %1711 = vmatpush1.bf16.msra.mxu0 0
        %1712 = vmatprep.subr.bf16.mxu0 0
        %1713 = vmatpush1.bf16.msra.mxu0 0
        %1714 = vmatprep.subr.bf16.mxu0 0
        %1715 = vmatpush1.bf16.msra.mxu0 0
        %1716 = vmatprep.subr.bf16.mxu0 0
        %1717 = vmatpush1.bf16.msra.mxu0 0
        %1718 = vmatprep.subr.bf16.mxu0 0
        %1719 = vmatpush1.bf16.msra.mxu0 0
        %1720 = vmatprep.subr.bf16.mxu0 0
        %1721 = vmatpush1.bf16.msra.mxu0 0
        %1722 = vmatprep.mubr.bf16.mxu0 0
        %1723 = vmatmul.mubr.bf16.gmra.mrb[0].mxu0 %v1643
        %v1724 = vpop.f32.mrb[0].mxu0
        %v1725 = vadd.f32 0.0, %v1724
        %v1726 = vpop.f32.mrb[0].mxu0
        %v1727 = vadd.f32 0.0, %v1726
        %v1728 = vpop.f32.mrb[0].mxu0
        %v1729 = vadd.f32 0.0, %v1728
        %v1730 = vpop.f32.mrb[0].mxu0
        %v1731 = vadd.f32 0.0, %v1730
        %1732 = vmatprep.mubr.bf16.mxu0 0
        %1733 = vmatmul.mubr.bf16.gmra.mrb[0].mxu0 %v1646
        %v1734 = vpop.f32.mrb[0].mxu0
        %v1735 = vadd.f32 0.0, %v1734
        %v1736 = vpop.f32.mrb[0].mxu0
        %v1737 = vadd.f32 0.0, %v1736
        %v1738 = vpop.f32.mrb[0].mxu0
        %v1739 = vadd.f32 0.0, %v1738
        %v1740 = vpop.f32.mrb[0].mxu0
        %v1741 = vadd.f32 0.0, %v1740
        %1742 = vmatprep.mubr.bf16.mxu0 0
        %1743 = vmatmul.mubr.bf16.gmra.mrb[0].mxu0 %v1649
        %v1744 = vpop.f32.mrb[0].mxu0
        %v1745 = vadd.f32 0.0, %v1744
        %v1746 = vpop.f32.mrb[0].mxu0
        %v1747 = vadd.f32 0.0, %v1746
        %v1748 = vpop.f32.mrb[0].mxu0
        %v1749 = vadd.f32 0.0, %v1748
        %v1750 = vpop.f32.mrb[0].mxu0
        %v1751 = vadd.f32 0.0, %v1750
        %1752 = vmatprep.mubr.bf16.mxu0 0
        %1753 = vmatmul.mubr.bf16.gmra.mrb[0].mxu0 %v1652
        %v1754 = vpop.f32.mrb[0].mxu0
        %v1755 = vadd.f32 0.0, %v1754
        %v1756 = vpop.f32.mrb[0].mxu0
        %v1757 = vadd.f32 0.0, %v1756
        %v1758 = vpop.f32.mrb[0].mxu0
        %v1759 = vadd.f32 0.0, %v1758
        %v1760 = vpop.f32.mrb[0].mxu0
        %v1761 = vadd.f32 0.0, %v1760
        %1762 = vmatprep.mubr.bf16.mxu0 0
        %1763 = vmatmul.mubr.bf16.gmra.mrb[0].mxu0 %v1655
        %v1764 = vpop.f32.mrb[0].mxu0
        %v1765 = vadd.f32 0.0, %v1764
        %v1766 = vpop.f32.mrb[0].mxu0
        %v1767 = vadd.f32 0.0, %v1766
        %v1768 = vpop.f32.mrb[0].mxu0
        %v1769 = vadd.f32 0.0, %v1768
        %v1770 = vpop.f32.mrb[0].mxu0
        %v1771 = vadd.f32 0.0, %v1770
        %1772 = vmatprep.mubr.bf16.mxu0 0
        %1773 = vmatmul.mubr.bf16.gmra.mrb[0].mxu0 %v1658
        %v1774 = vpop.f32.mrb[0].mxu0
        %v1775 = vadd.f32 0.0, %v1774
        %v1776 = vpop.f32.mrb[0].mxu0
        %v1777 = vadd.f32 0.0, %v1776
        %v1778 = vpop.f32.mrb[0].mxu0
        %v1779 = vadd.f32 0.0, %v1778
        %v1780 = vpop.f32.mrb[0].mxu0
        %v1781 = vadd.f32 0.0, %v1780
        %1782 = vmatprep.mubr.bf16.mxu0 0
        %1783 = vmatmul.mubr.bf16.gmra.mrb[0].mxu0 %v1661
        %v1784 = vpop.f32.mrb[0].mxu0
        %v1785 = vadd.f32 0.0, %v1784
        %v1786 = vpop.f32.mrb[0].mxu0
        %v1787 = vadd.f32 0.0, %v1786
        %v1788 = vpop.f32.mrb[0].mxu0
        %v1789 = vadd.f32 0.0, %v1788
        %v1790 = vpop.f32.mrb[0].mxu0
        %v1791 = vadd.f32 0.0, %v1790
        %1792 = vmatprep.mubr.bf16.mxu0 0
        %1793 = vmatmul.mubr.bf16.gmra.mrb[0].mxu0 %v1664
        %v1794 = vpop.f32.mrb[0].mxu0
        %v1795 = vadd.f32 0.0, %v1794
        %v1796 = vpop.f32.mrb[0].mxu0
        %v1797 = vadd.f32 0.0, %v1796
        %v1798 = vpop.f32.mrb[0].mxu0
        %v1799 = vadd.f32 0.0, %v1798
        %v1800 = vpop.f32.mrb[0].mxu0
        %v1801 = vadd.f32 0.0, %v1800
        %1802 = vmatprep.mubr.bf16.mxu0 0
        %1803 = vmatmul.mubr.bf16.gmra.mrb[0].mxu0 %v1667
        %v1804 = vpop.f32.mrb[0].mxu0
        %v1805 = vadd.f32 0.0, %v1804
        %v1806 = vpop.f32.mrb[0].mxu0
        %v1807 = vadd.f32 0.0, %v1806
        %v1808 = vpop.f32.mrb[0].mxu0
        %v1809 = vadd.f32 0.0, %v1808
        %v1810 = vpop.f32.mrb[0].mxu0
        %v1811 = vadd.f32 0.0, %v1810
        %1812 = vmatprep.mubr.bf16.mxu0 0
        %1813 = vmatmul.mubr.bf16.gmra.mrb[0].mxu0 %v1670
        %v1814 = vpop.f32.mrb[0].mxu0
        %v1815 = vadd.f32 0.0, %v1814
        %v1816 = vpop.f32.mrb[0].mxu0
        %v1817 = vadd.f32 0.0, %v1816
        %v1818 = vpop.f32.mrb[0].mxu0
        %v1819 = vadd.f32 0.0, %v1818
        %v1820 = vpop.f32.mrb[0].mxu0
        %v1821 = vadd.f32 0.0, %v1820
        %1822 = vmatprep.mubr.bf16.mxu0 0
        %1823 = vmatmul.mubr.bf16.gmra.mrb[0].mxu0 %v1673
        %v1824 = vpop.f32.mrb[0].mxu0
        %v1825 = vadd.f32 0.0, %v1824
        %v1826 = vpop.f32.mrb[0].mxu0
        %v1827 = vadd.f32 0.0, %v1826
        %v1828 = vpop.f32.mrb[0].mxu0
        %v1829 = vadd.f32 0.0, %v1828
        %v1830 = vpop.f32.mrb[0].mxu0
        %v1831 = vadd.f32 0.0, %v1830
        %1832 = vmatprep.mubr.bf16.mxu0 0
        %1833 = vmatmul.mubr.bf16.gmra.mrb[0].mxu0 %v1676
        %v1834 = vpop.f32.mrb[0].mxu0
        %v1835 = vadd.f32 0.0, %v1834
        %v1836 = vpop.f32.mrb[0].mxu0
        %v1837 = vadd.f32 0.0, %v1836
        %v1838 = vpop.f32.mrb[0].mxu0
        %v1839 = vadd.f32 0.0, %v1838
        %v1840 = vpop.f32.mrb[0].mxu0
        %v1841 = vadd.f32 0.0, %v1840
        %1842 = vmatprep.mubr.bf16.mxu0 0
        %1843 = vmatmul.mubr.bf16.gmra.mrb[0].mxu0 %v1679
        %v1844 = vpop.f32.mrb[0].mxu0
        %v1845 = vadd.f32 0.0, %v1844
        %v1846 = vpop.f32.mrb[0].mxu0
        %v1847 = vadd.f32 0.0, %v1846
        %v1848 = vpop.f32.mrb[0].mxu0
        %v1849 = vadd.f32 0.0, %v1848
        %v1850 = vpop.f32.mrb[0].mxu0
        %v1851 = vadd.f32 0.0, %v1850
        %1852 = vmatprep.mubr.bf16.mxu0 0
        %1853 = vmatmul.mubr.bf16.gmra.mrb[0].mxu0 %v1682
        %v1854 = vpop.f32.mrb[0].mxu0
        %v1855 = vadd.f32 0.0, %v1854
        %v1856 = vpop.f32.mrb[0].mxu0
        %v1857 = vadd.f32 0.0, %v1856
        %v1858 = vpop.f32.mrb[0].mxu0
        %v1859 = vadd.f32 0.0, %v1858
        %v1860 = vpop.f32.mrb[0].mxu0
        %v1861 = vadd.f32 0.0, %v1860
        %1862 = vmatprep.mubr.bf16.mxu0 0
        %1863 = vmatmul.mubr.bf16.gmra.mrb[0].mxu0 %v1685
        %v1864 = vpop.f32.mrb[0].mxu0
        %v1865 = vadd.f32 0.0, %v1864
        %v1866 = vpop.f32.mrb[0].mxu0
        %v1867 = vadd.f32 0.0, %v1866
        %v1868 = vpop.f32.mrb[0].mxu0
        %v1869 = vadd.f32 0.0, %v1868
        %v1870 = vpop.f32.mrb[0].mxu0
        %v1871 = vadd.f32 0.0, %v1870
        %1872 = vmatprep.mubr.bf16.mxu0 0
        %1873 = vmatmul.mubr.bf16.gmra.mrb[0].mxu0 %v1688
        %v1874 = vpop.f32.mrb[0].mxu0
        %v1875 = vadd.f32 0.0, %v1874
        %v1876 = vpop.f32.mrb[0].mxu0
        %v1877 = vadd.f32 0.0, %v1876
        %v1878 = vpop.f32.mrb[0].mxu0
        %v1879 = vadd.f32 0.0, %v1878
        %v1880 = vpop.f32.mrb[0].mxu0
        %v1881 = vadd.f32 0.0, %v1880
        %1882 = vdwg.mxu0
        %v1883 = vadd.f32 %v1504, %v1725
        %v1884 = vadd.f32 %v1505, %v1727
        %v1885 = vadd.f32 %v1506, %v1729
        %v1886 = vadd.f32 %v1507, %v1731
        %v1887 = vadd.f32 %v1508, %v1735
        %v1888 = vadd.f32 %v1509, %v1737
        %v1889 = vadd.f32 %v1510, %v1739
        %v1890 = vadd.f32 %v1511, %v1741
        %v1891 = vadd.f32 %v1512, %v1745
        %v1892 = vadd.f32 %v1513, %v1747
        %v1893 = vadd.f32 %v1514, %v1749
        %v1894 = vadd.f32 %v1515, %v1751
        %v1895 = vadd.f32 %v1516, %v1755
        %v1896 = vadd.f32 %v1517, %v1757
        %v1897 = vadd.f32 %v1518, %v1759
        %v1898 = vadd.f32 %v1519, %v1761
        %v1899 = vadd.f32 %v1520, %v1765
        %v1900 = vadd.f32 %v1521, %v1767
        %v1901 = vadd.f32 %v1522, %v1769
        %v1902 = vadd.f32 %v1523, %v1771
        %v1903 = vadd.f32 %v1524, %v1775
        %v1904 = vadd.f32 %v1525, %v1777
        %v1905 = vadd.f32 %v1526, %v1779
        %v1906 = vadd.f32 %v1527, %v1781
        %v1907 = vadd.f32 %v1528, %v1785
        %v1908 = vadd.f32 %v1529, %v1787
        %v1909 = vadd.f32 %v1530, %v1789
        %v1910 = vadd.f32 %v1531, %v1791
        %v1911 = vadd.f32 %v1532, %v1795
        %v1912 = vadd.f32 %v1533, %v1797
        %v1913 = vadd.f32 %v1534, %v1799
        %v1914 = vadd.f32 %v1535, %v1801
        %v1915 = vadd.f32 %v1536, %v1805
        %v1916 = vadd.f32 %v1537, %v1807
        %v1917 = vadd.f32 %v1538, %v1809
        %v1918 = vadd.f32 %v1539, %v1811
        %v1919 = vadd.f32 %v1540, %v1815
        %v1920 = vadd.f32 %v1541, %v1817
        %v1921 = vadd.f32 %v1542, %v1819
        %v1922 = vadd.f32 %v1543, %v1821
        %v1923 = vadd.f32 %v1544, %v1825
        %v1924 = vadd.f32 %v1545, %v1827
        %v1925 = vadd.f32 %v1546, %v1829
        %v1926 = vadd.f32 %v1547, %v1831
        %v1927 = vadd.f32 %v1548, %v1835
        %v1928 = vadd.f32 %v1549, %v1837
        %v1929 = vadd.f32 %v1550, %v1839
        %v1930 = vadd.f32 %v1551, %v1841
        %v1931 = vadd.f32 %v1552, %v1845
        %v1932 = vadd.f32 %v1553, %v1847
        %v1933 = vadd.f32 %v1554, %v1849
        %v1934 = vadd.f32 %v1555, %v1851
        %v1935 = vadd.f32 %v1556, %v1855
        %v1936 = vadd.f32 %v1557, %v1857
        %v1937 = vadd.f32 %v1558, %v1859
        %v1938 = vadd.f32 %v1559, %v1861
        %v1939 = vadd.f32 %v1560, %v1865
        %v1940 = vadd.f32 %v1561, %v1867
        %v1941 = vadd.f32 %v1562, %v1869
        %v1942 = vadd.f32 %v1563, %v1871
        %v1943 = vadd.f32 %v1564, %v1875
        %v1944 = vadd.f32 %v1565, %v1877
        %v1945 = vadd.f32 %v1566, %v1879
        %v1946 = vadd.f32 %v1567, %v1881
        %s1947 = scalar_lea.vmem %s519, 32 [#allocation2]
        %v1948 = vld [vmem:[%s1947] sm:$0xff]
        %v1949 = vld [vmem:[%s1947 + $0x8] sm:$0xff]
        %v1950 = vld [vmem:[%s1947 + $0x10] sm:$0xff]
        %v1951 = vld [vmem:[%s1947 + $0x18] sm:$0xff]
        %v1952 = vld [vmem:[%s1947 + $0x20] sm:$0xff]
        %v1953 = vld [vmem:[%s1947 + $0x28] sm:$0xff]
        %v1954 = vld [vmem:[%s1947 + $0x30] sm:$0xff]
        %v1955 = vld [vmem:[%s1947 + $0x38] sm:$0xff]
        %v1956 = vld [vmem:[%s1947 + $0x40] sm:$0xff]
        %v1957 = vld [vmem:[%s1947 + $0x48] sm:$0xff]
        %v1958 = vld [vmem:[%s1947 + $0x50] sm:$0xff]
        %v1959 = vld [vmem:[%s1947 + $0x58] sm:$0xff]
        %v1960 = vld [vmem:[%s1947 + $0x60] sm:$0xff]
        %v1961 = vld [vmem:[%s1947 + $0x68] sm:$0xff]
        %v1962 = vld [vmem:[%s1947 + $0x70] sm:$0xff]
        %v1963 = vld [vmem:[%s1947 + $0x78] sm:$0xff]
        %v1964 = vld [vmem:[%s1947 + $0x80] sm:$0xff]
        %v1965 = vld [vmem:[%s1947 + $0x88] sm:$0xff]
        %v1966 = vld [vmem:[%s1947 + $0x90] sm:$0xff]
        %v1967 = vld [vmem:[%s1947 + $0x98] sm:$0xff]
        %v1968 = vld [vmem:[%s1947 + $0xa0] sm:$0xff]
        %v1969 = vld [vmem:[%s1947 + $0xa8] sm:$0xff]
        %v1970 = vld [vmem:[%s1947 + $0xb0] sm:$0xff]
        %v1971 = vld [vmem:[%s1947 + $0xb8] sm:$0xff]
        %v1972 = vld [vmem:[%s1947 + $0xc0] sm:$0xff]
        %v1973 = vld [vmem:[%s1947 + $0xc8] sm:$0xff]
        %v1974 = vld [vmem:[%s1947 + $0xd0] sm:$0xff]
        %v1975 = vld [vmem:[%s1947 + $0xd8] sm:$0xff]
        %v1976 = vld [vmem:[%s1947 + $0xe0] sm:$0xff]
        %v1977 = vld [vmem:[%s1947 + $0xe8] sm:$0xff]
        %v1978 = vld [vmem:[%s1947 + $0xf0] sm:$0xff]
        %v1979 = vld [vmem:[%s1947 + $0xf8] sm:$0xff]
        %v1980 = vpack.c.bf16 %v1949, %v1948
        %v1981 = vpack.c.bf16 %v1951, %v1950
        %v1982 = vpack.c.bf16 %v1953, %v1952
        %v1983 = vpack.c.bf16 %v1955, %v1954
        %v1984 = vpack.c.bf16 %v1957, %v1956
        %v1985 = vpack.c.bf16 %v1959, %v1958
        %v1986 = vpack.c.bf16 %v1961, %v1960
        %v1987 = vpack.c.bf16 %v1963, %v1962
        %v1988 = vpack.c.bf16 %v1965, %v1964
        %v1989 = vpack.c.bf16 %v1967, %v1966
        %v1990 = vpack.c.bf16 %v1969, %v1968
        %v1991 = vpack.c.bf16 %v1971, %v1970
        %v1992 = vpack.c.bf16 %v1973, %v1972
        %v1993 = vpack.c.bf16 %v1975, %v1974
        %v1994 = vpack.c.bf16 %v1977, %v1976
        %v1995 = vpack.c.bf16 %v1979, %v1978
        %s1996 = scalar_lea.vmem %s1, 128
        %v1997 = vld [vmem:[%s1996] sm:$0xff]
        %v1998 = vld [vmem:[%s1996 + $0x8] sm:$0xff]
        %v1999 = vld [vmem:[%s1996 + $0x10] sm:$0xff]
        %v2000 = vld [vmem:[%s1996 + $0x18] sm:$0xff]
        %v2005 = vunpack.c.l.b16 %v1997
        %v2006 = vunpack.c.h.b16 %v1997
        %v2007 = vunpack.c.l.b16 %v1998
        %v2008 = vunpack.c.h.b16 %v1998
        %v2009 = vunpack.c.l.b16 %v1999
        %v2010 = vunpack.c.h.b16 %v1999
        %v2011 = vunpack.c.l.b16 %v2000
        %v2012 = vunpack.c.h.b16 %v2000
        %v2013 = vpack.c.b16 %v2007, %v2005
        %v2014 = vpack.c.b16 %v2008, %v2006
        %v2015 = vpack.c.b16 %v2011, %v2009
        %v2016 = vpack.c.b16 %v2012, %v2010
        %v2022 = vsel %vm686, %v1980, 0
        %v2025 = vsel %vm686, %v1981, 0
        %v2028 = vsel %vm686, %v1982, 0
        %v2031 = vsel %vm686, %v1983, 0
        %v2034 = vsel %vm686, %v1984, 0
        %v2037 = vsel %vm686, %v1985, 0
        %v2040 = vsel %vm686, %v1986, 0
        %v2043 = vsel %vm686, %v1987, 0
        %v2046 = vsel %vm686, %v1988, 0
        %v2049 = vsel %vm686, %v1989, 0
        %v2052 = vsel %vm686, %v1990, 0
        %v2055 = vsel %vm686, %v1991, 0
        %v2058 = vsel %vm686, %v1992, 0
        %v2061 = vsel %vm686, %v1993, 0
        %v2064 = vsel %vm686, %v1994, 0
        %v2067 = vsel %vm686, %v1995, 0
        %2069 = vmatprep.subr.bf16.mxu0 %v2014
        %2070 = vmatpush1.bf16.msra.mxu0 %v2013
        %2071 = vmatprep.subr.bf16.mxu0 %v2016
        %2072 = vmatpush1.bf16.msra.mxu0 %v2015
        %2073 = vmatprep.subr.bf16.mxu0 0
        %2074 = vmatpush1.bf16.msra.mxu0 0
        %2075 = vmatprep.subr.bf16.mxu0 0
        %2076 = vmatpush1.bf16.msra.mxu0 0
        %2077 = vmatprep.subr.bf16.mxu0 0
        %2078 = vmatpush1.bf16.msra.mxu0 0
        %2079 = vmatprep.subr.bf16.mxu0 0
        %2080 = vmatpush1.bf16.msra.mxu0 0
        %2081 = vmatprep.subr.bf16.mxu0 0
        %2082 = vmatpush1.bf16.msra.mxu0 0
        %2083 = vmatprep.subr.bf16.mxu0 0
        %2084 = vmatpush1.bf16.msra.mxu0 0
        %2085 = vmatprep.subr.bf16.mxu0 0
        %2086 = vmatpush1.bf16.msra.mxu0 0
        %2087 = vmatprep.subr.bf16.mxu0 0
        %2088 = vmatpush1.bf16.msra.mxu0 0
        %2089 = vmatprep.subr.bf16.mxu0 0
        %2090 = vmatpush1.bf16.msra.mxu0 0
        %2091 = vmatprep.subr.bf16.mxu0 0
        %2092 = vmatpush1.bf16.msra.mxu0 0
        %2093 = vmatprep.subr.bf16.mxu0 0
        %2094 = vmatpush1.bf16.msra.mxu0 0
        %2095 = vmatprep.subr.bf16.mxu0 0
        %2096 = vmatpush1.bf16.msra.mxu0 0
        %2097 = vmatprep.subr.bf16.mxu0 0
        %2098 = vmatpush1.bf16.msra.mxu0 0
        %2099 = vmatprep.subr.bf16.mxu0 0
        %2100 = vmatpush1.bf16.msra.mxu0 0
        %2101 = vmatprep.mubr.bf16.mxu0 0
        %2102 = vmatmul.mubr.bf16.gmra.mrb[0].mxu0 %v2022
        %v2103 = vpop.f32.mrb[0].mxu0
        %v2104 = vadd.f32 0.0, %v2103
        %v2105 = vpop.f32.mrb[0].mxu0
        %v2106 = vadd.f32 0.0, %v2105
        %v2107 = vpop.f32.mrb[0].mxu0
        %v2108 = vadd.f32 0.0, %v2107
        %v2109 = vpop.f32.mrb[0].mxu0
        %v2110 = vadd.f32 0.0, %v2109
        %2111 = vmatprep.mubr.bf16.mxu0 0
        %2112 = vmatmul.mubr.bf16.gmra.mrb[0].mxu0 %v2025
        %v2113 = vpop.f32.mrb[0].mxu0
        %v2114 = vadd.f32 0.0, %v2113
        %v2115 = vpop.f32.mrb[0].mxu0
        %v2116 = vadd.f32 0.0, %v2115
        %v2117 = vpop.f32.mrb[0].mxu0
        %v2118 = vadd.f32 0.0, %v2117
        %v2119 = vpop.f32.mrb[0].mxu0
        %v2120 = vadd.f32 0.0, %v2119
        %2121 = vmatprep.mubr.bf16.mxu0 0
        %2122 = vmatmul.mubr.bf16.gmra.mrb[0].mxu0 %v2028
        %v2123 = vpop.f32.mrb[0].mxu0
        %v2124 = vadd.f32 0.0, %v2123
        %v2125 = vpop.f32.mrb[0].mxu0
        %v2126 = vadd.f32 0.0, %v2125
        %v2127 = vpop.f32.mrb[0].mxu0
        %v2128 = vadd.f32 0.0, %v2127
        %v2129 = vpop.f32.mrb[0].mxu0
        %v2130 = vadd.f32 0.0, %v2129
        %2131 = vmatprep.mubr.bf16.mxu0 0
        %2132 = vmatmul.mubr.bf16.gmra.mrb[0].mxu0 %v2031
        %v2133 = vpop.f32.mrb[0].mxu0
        %v2134 = vadd.f32 0.0, %v2133
        %v2135 = vpop.f32.mrb[0].mxu0
        %v2136 = vadd.f32 0.0, %v2135
        %v2137 = vpop.f32.mrb[0].mxu0
        %v2138 = vadd.f32 0.0, %v2137
        %v2139 = vpop.f32.mrb[0].mxu0
        %v2140 = vadd.f32 0.0, %v2139
        %2141 = vmatprep.mubr.bf16.mxu0 0
        %2142 = vmatmul.mubr.bf16.gmra.mrb[0].mxu0 %v2034
        %v2143 = vpop.f32.mrb[0].mxu0
        %v2144 = vadd.f32 0.0, %v2143
        %v2145 = vpop.f32.mrb[0].mxu0
        %v2146 = vadd.f32 0.0, %v2145
        %v2147 = vpop.f32.mrb[0].mxu0
        %v2148 = vadd.f32 0.0, %v2147
        %v2149 = vpop.f32.mrb[0].mxu0
        %v2150 = vadd.f32 0.0, %v2149
        %2151 = vmatprep.mubr.bf16.mxu0 0
        %2152 = vmatmul.mubr.bf16.gmra.mrb[0].mxu0 %v2037
        %v2153 = vpop.f32.mrb[0].mxu0
        %v2154 = vadd.f32 0.0, %v2153
        %v2155 = vpop.f32.mrb[0].mxu0
        %v2156 = vadd.f32 0.0, %v2155
        %v2157 = vpop.f32.mrb[0].mxu0
        %v2158 = vadd.f32 0.0, %v2157
        %v2159 = vpop.f32.mrb[0].mxu0
        %v2160 = vadd.f32 0.0, %v2159
        %2161 = vmatprep.mubr.bf16.mxu0 0
        %2162 = vmatmul.mubr.bf16.gmra.mrb[0].mxu0 %v2040
        %v2163 = vpop.f32.mrb[0].mxu0
        %v2164 = vadd.f32 0.0, %v2163
        %v2165 = vpop.f32.mrb[0].mxu0
        %v2166 = vadd.f32 0.0, %v2165
        %v2167 = vpop.f32.mrb[0].mxu0
        %v2168 = vadd.f32 0.0, %v2167
        %v2169 = vpop.f32.mrb[0].mxu0
        %v2170 = vadd.f32 0.0, %v2169
        %2171 = vmatprep.mubr.bf16.mxu0 0
        %2172 = vmatmul.mubr.bf16.gmra.mrb[0].mxu0 %v2043
        %v2173 = vpop.f32.mrb[0].mxu0
        %v2174 = vadd.f32 0.0, %v2173
        %v2175 = vpop.f32.mrb[0].mxu0
        %v2176 = vadd.f32 0.0, %v2175
        %v2177 = vpop.f32.mrb[0].mxu0
        %v2178 = vadd.f32 0.0, %v2177
        %v2179 = vpop.f32.mrb[0].mxu0
        %v2180 = vadd.f32 0.0, %v2179
        %2181 = vmatprep.mubr.bf16.mxu0 0
        %2182 = vmatmul.mubr.bf16.gmra.mrb[0].mxu0 %v2046
        %v2183 = vpop.f32.mrb[0].mxu0
        %v2184 = vadd.f32 0.0, %v2183
        %v2185 = vpop.f32.mrb[0].mxu0
        %v2186 = vadd.f32 0.0, %v2185
        %v2187 = vpop.f32.mrb[0].mxu0
        %v2188 = vadd.f32 0.0, %v2187
        %v2189 = vpop.f32.mrb[0].mxu0
        %v2190 = vadd.f32 0.0, %v2189
        %2191 = vmatprep.mubr.bf16.mxu0 0
        %2192 = vmatmul.mubr.bf16.gmra.mrb[0].mxu0 %v2049
        %v2193 = vpop.f32.mrb[0].mxu0
        %v2194 = vadd.f32 0.0, %v2193
        %v2195 = vpop.f32.mrb[0].mxu0
        %v2196 = vadd.f32 0.0, %v2195
        %v2197 = vpop.f32.mrb[0].mxu0
        %v2198 = vadd.f32 0.0, %v2197
        %v2199 = vpop.f32.mrb[0].mxu0
        %v2200 = vadd.f32 0.0, %v2199
        %2201 = vmatprep.mubr.bf16.mxu0 0
        %2202 = vmatmul.mubr.bf16.gmra.mrb[0].mxu0 %v2052
        %v2203 = vpop.f32.mrb[0].mxu0
        %v2204 = vadd.f32 0.0, %v2203
        %v2205 = vpop.f32.mrb[0].mxu0
        %v2206 = vadd.f32 0.0, %v2205
        %v2207 = vpop.f32.mrb[0].mxu0
        %v2208 = vadd.f32 0.0, %v2207
        %v2209 = vpop.f32.mrb[0].mxu0
        %v2210 = vadd.f32 0.0, %v2209
        %2211 = vmatprep.mubr.bf16.mxu0 0
        %2212 = vmatmul.mubr.bf16.gmra.mrb[0].mxu0 %v2055
        %v2213 = vpop.f32.mrb[0].mxu0
        %v2214 = vadd.f32 0.0, %v2213
        %v2215 = vpop.f32.mrb[0].mxu0
        %v2216 = vadd.f32 0.0, %v2215
        %v2217 = vpop.f32.mrb[0].mxu0
        %v2218 = vadd.f32 0.0, %v2217
        %v2219 = vpop.f32.mrb[0].mxu0
        %v2220 = vadd.f32 0.0, %v2219
        %2221 = vmatprep.mubr.bf16.mxu0 0
        %2222 = vmatmul.mubr.bf16.gmra.mrb[0].mxu0 %v2058
        %v2223 = vpop.f32.mrb[0].mxu0
        %v2224 = vadd.f32 0.0, %v2223
        %v2225 = vpop.f32.mrb[0].mxu0
        %v2226 = vadd.f32 0.0, %v2225
        %v2227 = vpop.f32.mrb[0].mxu0
        %v2228 = vadd.f32 0.0, %v2227
        %v2229 = vpop.f32.mrb[0].mxu0
        %v2230 = vadd.f32 0.0, %v2229
        %2231 = vmatprep.mubr.bf16.mxu0 0
        %2232 = vmatmul.mubr.bf16.gmra.mrb[0].mxu0 %v2061
        %v2233 = vpop.f32.mrb[0].mxu0
        %v2234 = vadd.f32 0.0, %v2233
        %v2235 = vpop.f32.mrb[0].mxu0
        %v2236 = vadd.f32 0.0, %v2235
        %v2237 = vpop.f32.mrb[0].mxu0
        %v2238 = vadd.f32 0.0, %v2237
        %v2239 = vpop.f32.mrb[0].mxu0
        %v2240 = vadd.f32 0.0, %v2239
        %2241 = vmatprep.mubr.bf16.mxu0 0
        %2242 = vmatmul.mubr.bf16.gmra.mrb[0].mxu0 %v2064
        %v2243 = vpop.f32.mrb[0].mxu0
        %v2244 = vadd.f32 0.0, %v2243
        %v2245 = vpop.f32.mrb[0].mxu0
        %v2246 = vadd.f32 0.0, %v2245
        %v2247 = vpop.f32.mrb[0].mxu0
        %v2248 = vadd.f32 0.0, %v2247
        %v2249 = vpop.f32.mrb[0].mxu0
        %v2250 = vadd.f32 0.0, %v2249
        %2251 = vmatprep.mubr.bf16.mxu0 0
        %2252 = vmatmul.mubr.bf16.gmra.mrb[0].mxu0 %v2067
        %v2253 = vpop.f32.mrb[0].mxu0
        %v2254 = vadd.f32 0.0, %v2253
        %v2255 = vpop.f32.mrb[0].mxu0
        %v2256 = vadd.f32 0.0, %v2255
        %v2257 = vpop.f32.mrb[0].mxu0
        %v2258 = vadd.f32 0.0, %v2257
        %v2259 = vpop.f32.mrb[0].mxu0
        %v2260 = vadd.f32 0.0, %v2259
        %2261 = vdwg.mxu0
        %v2262 = vadd.f32 %v1883, %v2104
        %v2263 = vadd.f32 %v1884, %v2106
        %v2264 = vadd.f32 %v1885, %v2108
        %v2265 = vadd.f32 %v1886, %v2110
        %v2266 = vadd.f32 %v1887, %v2114
        %v2267 = vadd.f32 %v1888, %v2116
        %v2268 = vadd.f32 %v1889, %v2118
        %v2269 = vadd.f32 %v1890, %v2120
        %v2270 = vadd.f32 %v1891, %v2124
        %v2271 = vadd.f32 %v1892, %v2126
        %v2272 = vadd.f32 %v1893, %v2128
        %v2273 = vadd.f32 %v1894, %v2130
        %v2274 = vadd.f32 %v1895, %v2134
        %v2275 = vadd.f32 %v1896, %v2136
        %v2276 = vadd.f32 %v1897, %v2138
        %v2277 = vadd.f32 %v1898, %v2140
        %v2278 = vadd.f32 %v1899, %v2144
        %v2279 = vadd.f32 %v1900, %v2146
        %v2280 = vadd.f32 %v1901, %v2148
        %v2281 = vadd.f32 %v1902, %v2150
        %v2282 = vadd.f32 %v1903, %v2154
        %v2283 = vadd.f32 %v1904, %v2156
        %v2284 = vadd.f32 %v1905, %v2158
        %v2285 = vadd.f32 %v1906, %v2160
        %v2286 = vadd.f32 %v1907, %v2164
        %v2287 = vadd.f32 %v1908, %v2166
        %v2288 = vadd.f32 %v1909, %v2168
        %v2289 = vadd.f32 %v1910, %v2170
        %v2290 = vadd.f32 %v1911, %v2174
        %v2291 = vadd.f32 %v1912, %v2176
        %v2292 = vadd.f32 %v1913, %v2178
        %v2293 = vadd.f32 %v1914, %v2180
        %v2294 = vadd.f32 %v1915, %v2184
        %v2295 = vadd.f32 %v1916, %v2186
        %v2296 = vadd.f32 %v1917, %v2188
        %v2297 = vadd.f32 %v1918, %v2190
        %v2298 = vadd.f32 %v1919, %v2194
        %v2299 = vadd.f32 %v1920, %v2196
        %v2300 = vadd.f32 %v1921, %v2198
        %v2301 = vadd.f32 %v1922, %v2200
        %v2302 = vadd.f32 %v1923, %v2204
        %v2303 = vadd.f32 %v1924, %v2206
        %v2304 = vadd.f32 %v1925, %v2208
        %v2305 = vadd.f32 %v1926, %v2210
        %v2306 = vadd.f32 %v1927, %v2214
        %v2307 = vadd.f32 %v1928, %v2216
        %v2308 = vadd.f32 %v1929, %v2218
        %v2309 = vadd.f32 %v1930, %v2220
        %v2310 = vadd.f32 %v1931, %v2224
        %v2311 = vadd.f32 %v1932, %v2226
        %v2312 = vadd.f32 %v1933, %v2228
        %v2313 = vadd.f32 %v1934, %v2230
        %v2314 = vadd.f32 %v1935, %v2234
        %v2315 = vadd.f32 %v1936, %v2236
        %v2316 = vadd.f32 %v1937, %v2238
        %v2317 = vadd.f32 %v1938, %v2240
        %v2318 = vadd.f32 %v1939, %v2244
        %v2319 = vadd.f32 %v1940, %v2246
        %v2320 = vadd.f32 %v1941, %v2248
        %v2321 = vadd.f32 %v1942, %v2250
        %v2322 = vadd.f32 %v1943, %v2254
        %v2323 = vadd.f32 %v1944, %v2256
        %v2324 = vadd.f32 %v1945, %v2258
        %v2325 = vadd.f32 %v1946, %v2260
        %v2326 = vld [vmem:[%s2] sm:$0x3]
        %v2328 = vlaneseq
        %v2329 = vshrl.u32 %v2328, 7
        %v2330 = vsub.s32 0, %v2329
        %v2331 = vrot.slane %v2326, %v2330
        %v2332 = vlaneseq
        %v2333 = vshrl.u32 %v2332, 7
        %v2334 = vsub.s32 1, %v2333
        %v2335 = vrot.slane %v2326, %v2334
        %v2338 = vadd.f32 %v2262, %v2331
        %v2339 = vadd.f32 %v2263, %v2335
        %v2340 = vadd.f32 %v2264, %v2331
        %v2341 = vadd.f32 %v2265, %v2335
        %v2342 = vadd.f32 %v2266, %v2331
        %v2343 = vadd.f32 %v2267, %v2335
        %v2344 = vadd.f32 %v2268, %v2331
        %v2345 = vadd.f32 %v2269, %v2335
        %v2346 = vadd.f32 %v2270, %v2331
        %v2347 = vadd.f32 %v2271, %v2335
        %v2348 = vadd.f32 %v2272, %v2331
        %v2349 = vadd.f32 %v2273, %v2335
        %v2350 = vadd.f32 %v2274, %v2331
        %v2351 = vadd.f32 %v2275, %v2335
        %v2352 = vadd.f32 %v2276, %v2331
        %v2353 = vadd.f32 %v2277, %v2335
        %v2354 = vadd.f32 %v2278, %v2331
        %v2355 = vadd.f32 %v2279, %v2335
        %v2356 = vadd.f32 %v2280, %v2331
        %v2357 = vadd.f32 %v2281, %v2335
        %v2358 = vadd.f32 %v2282, %v2331
        %v2359 = vadd.f32 %v2283, %v2335
        %v2360 = vadd.f32 %v2284, %v2331
        %v2361 = vadd.f32 %v2285, %v2335
        %v2362 = vadd.f32 %v2286, %v2331
        %v2363 = vadd.f32 %v2287, %v2335
        %v2364 = vadd.f32 %v2288, %v2331
        %v2365 = vadd.f32 %v2289, %v2335
        %v2366 = vadd.f32 %v2290, %v2331
        %v2367 = vadd.f32 %v2291, %v2335
        %v2368 = vadd.f32 %v2292, %v2331
        %v2369 = vadd.f32 %v2293, %v2335
        %v2370 = vadd.f32 %v2294, %v2331
        %v2371 = vadd.f32 %v2295, %v2335
        %v2372 = vadd.f32 %v2296, %v2331
        %v2373 = vadd.f32 %v2297, %v2335
        %v2374 = vadd.f32 %v2298, %v2331
        %v2375 = vadd.f32 %v2299, %v2335
        %v2376 = vadd.f32 %v2300, %v2331
        %v2377 = vadd.f32 %v2301, %v2335
        %v2378 = vadd.f32 %v2302, %v2331
        %v2379 = vadd.f32 %v2303, %v2335
        %v2380 = vadd.f32 %v2304, %v2331
        %v2381 = vadd.f32 %v2305, %v2335
        %v2382 = vadd.f32 %v2306, %v2331
        %v2383 = vadd.f32 %v2307, %v2335
        %v2384 = vadd.f32 %v2308, %v2331
        %v2385 = vadd.f32 %v2309, %v2335
        %v2386 = vadd.f32 %v2310, %v2331
        %v2387 = vadd.f32 %v2311, %v2335
        %v2388 = vadd.f32 %v2312, %v2331
        %v2389 = vadd.f32 %v2313, %v2335
        %v2390 = vadd.f32 %v2314, %v2331
        %v2391 = vadd.f32 %v2315, %v2335
        %v2392 = vadd.f32 %v2316, %v2331
        %v2393 = vadd.f32 %v2317, %v2335
        %v2394 = vadd.f32 %v2318, %v2331
        %v2395 = vadd.f32 %v2319, %v2335
        %v2396 = vadd.f32 %v2320, %v2331
        %v2397 = vadd.f32 %v2321, %v2335
        %v2398 = vadd.f32 %v2322, %v2331
        %v2399 = vadd.f32 %v2323, %v2335
        %v2400 = vadd.f32 %v2324, %v2331
        %v2401 = vadd.f32 %v2325, %v2335
        %v2402 = vmax.f32 %v2338, 0.0
        %v2403 = vmax.f32 %v2339, 0.0
        %v2404 = vmax.f32 %v2340, 0.0
        %v2405 = vmax.f32 %v2341, 0.0
        %v2406 = vmax.f32 %v2342, 0.0
        %v2407 = vmax.f32 %v2343, 0.0
        %v2408 = vmax.f32 %v2344, 0.0
        %v2409 = vmax.f32 %v2345, 0.0
        %v2410 = vmax.f32 %v2346, 0.0
        %v2411 = vmax.f32 %v2347, 0.0
        %v2412 = vmax.f32 %v2348, 0.0
        %v2413 = vmax.f32 %v2349, 0.0
        %v2414 = vmax.f32 %v2350, 0.0
        %v2415 = vmax.f32 %v2351, 0.0
        %v2416 = vmax.f32 %v2352, 0.0
        %v2417 = vmax.f32 %v2353, 0.0
        %v2418 = vmax.f32 %v2354, 0.0
        %v2419 = vmax.f32 %v2355, 0.0
        %v2420 = vmax.f32 %v2356, 0.0
        %v2421 = vmax.f32 %v2357, 0.0
        %v2422 = vmax.f32 %v2358, 0.0
        %v2423 = vmax.f32 %v2359, 0.0
        %v2424 = vmax.f32 %v2360, 0.0
        %v2425 = vmax.f32 %v2361, 0.0
        %v2426 = vmax.f32 %v2362, 0.0
        %v2427 = vmax.f32 %v2363, 0.0
        %v2428 = vmax.f32 %v2364, 0.0
        %v2429 = vmax.f32 %v2365, 0.0
        %v2430 = vmax.f32 %v2366, 0.0
        %v2431 = vmax.f32 %v2367, 0.0
        %v2432 = vmax.f32 %v2368, 0.0
        %v2433 = vmax.f32 %v2369, 0.0
        %v2434 = vmax.f32 %v2370, 0.0
        %v2435 = vmax.f32 %v2371, 0.0
        %v2436 = vmax.f32 %v2372, 0.0
        %v2437 = vmax.f32 %v2373, 0.0
        %v2438 = vmax.f32 %v2374, 0.0
        %v2439 = vmax.f32 %v2375, 0.0
        %v2440 = vmax.f32 %v2376, 0.0
        %v2441 = vmax.f32 %v2377, 0.0
        %v2442 = vmax.f32 %v2378, 0.0
        %v2443 = vmax.f32 %v2379, 0.0
        %v2444 = vmax.f32 %v2380, 0.0
        %v2445 = vmax.f32 %v2381, 0.0
        %v2446 = vmax.f32 %v2382, 0.0
        %v2447 = vmax.f32 %v2383, 0.0
        %v2448 = vmax.f32 %v2384, 0.0
        %v2449 = vmax.f32 %v2385, 0.0
        %v2450 = vmax.f32 %v2386, 0.0
        %v2451 = vmax.f32 %v2387, 0.0
        %v2452 = vmax.f32 %v2388, 0.0
        %v2453 = vmax.f32 %v2389, 0.0
        %v2454 = vmax.f32 %v2390, 0.0
        %v2455 = vmax.f32 %v2391, 0.0
        %v2456 = vmax.f32 %v2392, 0.0
        %v2457 = vmax.f32 %v2393, 0.0
        %v2458 = vmax.f32 %v2394, 0.0
        %v2459 = vmax.f32 %v2395, 0.0
        %v2460 = vmax.f32 %v2396, 0.0
        %v2461 = vmax.f32 %v2397, 0.0
        %v2462 = vmax.f32 %v2398, 0.0
        %v2463 = vmax.f32 %v2399, 0.0
        %v2464 = vmax.f32 %v2400, 0.0
        %v2465 = vmax.f32 %v2401, 0.0
        %v2466 = vmax.f32 %v2402, %v2404
        %v2467 = vmax.f32 %v2403, %v2405
        %v2468 = vmax.f32 %v2410, %v2412
        %v2469 = vmax.f32 %v2411, %v2413
        %v2470 = vmax.f32 %v2418, %v2420
        %v2471 = vmax.f32 %v2419, %v2421
        %v2472 = vmax.f32 %v2426, %v2428
        %v2473 = vmax.f32 %v2427, %v2429
        %v2474 = vmax.f32 %v2434, %v2436
        %v2475 = vmax.f32 %v2435, %v2437
        %v2476 = vmax.f32 %v2442, %v2444
        %v2477 = vmax.f32 %v2443, %v2445
        %v2478 = vmax.f32 %v2450, %v2452
        %v2479 = vmax.f32 %v2451, %v2453
        %v2480 = vmax.f32 %v2458, %v2460
        %v2481 = vmax.f32 %v2459, %v2461
        %v2482 = vmax.f32 %v2466, %v2406
        %v2483 = vmax.f32 %v2467, %v2407
        %v2484 = vmax.f32 %v2468, %v2414
        %v2485 = vmax.f32 %v2469, %v2415
        %v2486 = vmax.f32 %v2470, %v2422
        %v2487 = vmax.f32 %v2471, %v2423
        %v2488 = vmax.f32 %v2472, %v2430
        %v2489 = vmax.f32 %v2473, %v2431
        %v2490 = vmax.f32 %v2474, %v2438
        %v2491 = vmax.f32 %v2475, %v2439
        %v2492 = vmax.f32 %v2476, %v2446
        %v2493 = vmax.f32 %v2477, %v2447
        %v2494 = vmax.f32 %v2478, %v2454
        %v2495 = vmax.f32 %v2479, %v2455
        %v2496 = vmax.f32 %v2480, %v2462
        %v2497 = vmax.f32 %v2481, %v2463
        %v2498 = vmax.f32 %v2482, %v2408
        %v2499 = vmax.f32 %v2483, %v2409
        %v2500 = vmax.f32 %v2484, %v2416
        %v2501 = vmax.f32 %v2485, %v2417
        %v2502 = vmax.f32 %v2486, %v2424
        %v2503 = vmax.f32 %v2487, %v2425
        %v2504 = vmax.f32 %v2488, %v2432
        %v2505 = vmax.f32 %v2489, %v2433
        %v2506 = vmax.f32 %v2490, %v2440
        %v2507 = vmax.f32 %v2491, %v2441
        %v2508 = vmax.f32 %v2492, %v2448
        %v2509 = vmax.f32 %v2493, %v2449
        %v2510 = vmax.f32 %v2494, %v2456
        %v2511 = vmax.f32 %v2495, %v2457
        %v2512 = vmax.f32 %v2496, %v2464
        %v2513 = vmax.f32 %v2497, %v2465
        %2530 = vrot.lane.b32.xlu0 %v2498, 120
        %v2531 = vpop.permute.xlu0 %2530
        %2532 = vrot.lane.b32.xlu0 %v2499, 120
        %v2533 = vpop.permute.xlu0 %2532
        %2534 = vrot.lane.b32.xlu0 %v2500, 120
        %v2535 = vpop.permute.xlu0 %2534
        %2536 = vrot.lane.b32.xlu0 %v2501, 120
        %v2537 = vpop.permute.xlu0 %2536
        %2538 = vrot.lane.b32.xlu0 %v2502, 120
        %v2539 = vpop.permute.xlu0 %2538
        %2540 = vrot.lane.b32.xlu0 %v2503, 120
        %v2541 = vpop.permute.xlu0 %2540
        %2542 = vrot.lane.b32.xlu0 %v2504, 120
        %v2543 = vpop.permute.xlu0 %2542
        %2544 = vrot.lane.b32.xlu0 %v2505, 120
        %v2545 = vpop.permute.xlu0 %2544
        %2546 = vrot.lane.b32.xlu0 %v2506, 120
        %v2547 = vpop.permute.xlu0 %2546
        %2548 = vrot.lane.b32.xlu0 %v2507, 120
        %v2549 = vpop.permute.xlu0 %2548
        %2550 = vrot.lane.b32.xlu0 %v2508, 120
        %v2551 = vpop.permute.xlu0 %2550
        %2552 = vrot.lane.b32.xlu0 %v2509, 120
        %v2553 = vpop.permute.xlu0 %2552
        %2554 = vrot.lane.b32.xlu0 %v2510, 120
        %v2555 = vpop.permute.xlu0 %2554
        %2556 = vrot.lane.b32.xlu0 %v2511, 120
        %v2557 = vpop.permute.xlu0 %2556
        %2558 = vrot.lane.b32.xlu0 %v2512, 120
        %v2559 = vpop.permute.xlu0 %2558
        %2560 = vrot.lane.b32.xlu0 %v2513, 120
        %v2561 = vpop.permute.xlu0 %2560
        %vm2562 = vcmask 982016
        %v2563 = vsel %vm2562, %v2531, %v2533
        %v2564 = vsel %vm2562, %v2535, %v2537
        %v2565 = vsel %vm2562, %v2539, %v2541
        %v2566 = vsel %vm2562, %v2543, %v2545
        %v2567 = vsel %vm2562, %v2547, %v2549
        %v2568 = vsel %vm2562, %v2551, %v2553
        %v2569 = vsel %vm2562, %v2555, %v2557
        %v2570 = vsel %vm2562, %v2559, %v2561
        %v2595 = vsel %vm2562, %v2533, %v2531
        %v2596 = vsel %vm2562, %v2537, %v2535
        %v2597 = vsel %vm2562, %v2541, %v2539
        %v2598 = vsel %vm2562, %v2545, %v2543
        %v2599 = vsel %vm2562, %v2549, %v2547
        %v2600 = vsel %vm2562, %v2553, %v2551
        %v2601 = vsel %vm2562, %v2557, %v2555
        %v2602 = vsel %vm2562, %v2561, %v2559
        %v2603 = vmax.f32 %v2498, %v2563
        %v2604 = vmax.f32 %v2499, %v2595
        %v2605 = vmax.f32 %v2500, %v2564
        %v2606 = vmax.f32 %v2501, %v2596
        %v2607 = vmax.f32 %v2502, %v2565
        %v2608 = vmax.f32 %v2503, %v2597
        %v2609 = vmax.f32 %v2504, %v2566
        %v2610 = vmax.f32 %v2505, %v2598
        %v2611 = vmax.f32 %v2506, %v2567
        %v2612 = vmax.f32 %v2507, %v2599
        %v2613 = vmax.f32 %v2508, %v2568
        %v2614 = vmax.f32 %v2509, %v2600
        %v2615 = vmax.f32 %v2510, %v2569
        %v2616 = vmax.f32 %v2511, %v2601
        %v2617 = vmax.f32 %v2512, %v2570
        %v2618 = vmax.f32 %v2513, %v2602
        %2619 = vrot.lane.b32.xlu0 %v2498, 112
        %v2620 = vpop.permute.xlu0 %2619
        %2621 = vrot.lane.b32.xlu0 %v2499, 112
        %v2622 = vpop.permute.xlu0 %2621
        %2623 = vrot.lane.b32.xlu0 %v2500, 112
        %v2624 = vpop.permute.xlu0 %2623
        %2625 = vrot.lane.b32.xlu0 %v2501, 112
        %v2626 = vpop.permute.xlu0 %2625
        %2627 = vrot.lane.b32.xlu0 %v2502, 112
        %v2628 = vpop.permute.xlu0 %2627
        %2629 = vrot.lane.b32.xlu0 %v2503, 112
        %v2630 = vpop.permute.xlu0 %2629
        %2631 = vrot.lane.b32.xlu0 %v2504, 112
        %v2632 = vpop.permute.xlu0 %2631
        %2633 = vrot.lane.b32.xlu0 %v2505, 112
        %v2634 = vpop.permute.xlu0 %2633
        %2635 = vrot.lane.b32.xlu0 %v2506, 112
        %v2636 = vpop.permute.xlu0 %2635
        %2637 = vrot.lane.b32.xlu0 %v2507, 112
        %v2638 = vpop.permute.xlu0 %2637
        %2639 = vrot.lane.b32.xlu0 %v2508, 112
        %v2640 = vpop.permute.xlu0 %2639
        %2641 = vrot.lane.b32.xlu0 %v2509, 112
        %v2642 = vpop.permute.xlu0 %2641
        %2643 = vrot.lane.b32.xlu0 %v2510, 112
        %v2644 = vpop.permute.xlu0 %2643
        %2645 = vrot.lane.b32.xlu0 %v2511, 112
        %v2646 = vpop.permute.xlu0 %2645
        %2647 = vrot.lane.b32.xlu0 %v2512, 112
        %v2648 = vpop.permute.xlu0 %2647
        %2649 = vrot.lane.b32.xlu0 %v2513, 112
        %v2650 = vpop.permute.xlu0 %2649
        %vm2651 = vcmask 916480
        %v2652 = vsel %vm2651, %v2620, %v2622
        %v2653 = vsel %vm2651, %v2624, %v2626
        %v2654 = vsel %vm2651, %v2628, %v2630
        %v2655 = vsel %vm2651, %v2632, %v2634
        %v2656 = vsel %vm2651, %v2636, %v2638
        %v2657 = vsel %vm2651, %v2640, %v2642
        %v2658 = vsel %vm2651, %v2644, %v2646
        %v2659 = vsel %vm2651, %v2648, %v2650
        %v2684 = vsel %vm2651, %v2622, %v2620
        %v2685 = vsel %vm2651, %v2626, %v2624
        %v2686 = vsel %vm2651, %v2630, %v2628
        %v2687 = vsel %vm2651, %v2634, %v2632
        %v2688 = vsel %vm2651, %v2638, %v2636
        %v2689 = vsel %vm2651, %v2642, %v2640
        %v2690 = vsel %vm2651, %v2646, %v2644
        %v2691 = vsel %vm2651, %v2650, %v2648
        %v2692 = vmax.f32 %v2603, %v2652
        %v2693 = vmax.f32 %v2604, %v2684
        %v2694 = vmax.f32 %v2605, %v2653
        %v2695 = vmax.f32 %v2606, %v2685
        %v2696 = vmax.f32 %v2607, %v2654
        %v2697 = vmax.f32 %v2608, %v2686
        %v2698 = vmax.f32 %v2609, %v2655
        %v2699 = vmax.f32 %v2610, %v2687
        %v2700 = vmax.f32 %v2611, %v2656
        %v2701 = vmax.f32 %v2612, %v2688
        %v2702 = vmax.f32 %v2613, %v2657
        %v2703 = vmax.f32 %v2614, %v2689
        %v2704 = vmax.f32 %v2615, %v2658
        %v2705 = vmax.f32 %v2616, %v2690
        %v2706 = vmax.f32 %v2617, %v2659
        %v2707 = vmax.f32 %v2618, %v2691
        %2708 = vrot.lane.b32.xlu0 %v2498, 104
        %v2709 = vpop.permute.xlu0 %2708
        %2710 = vrot.lane.b32.xlu0 %v2499, 104
        %v2711 = vpop.permute.xlu0 %2710
        %2712 = vrot.lane.b32.xlu0 %v2500, 104
        %v2713 = vpop.permute.xlu0 %2712
        %2714 = vrot.lane.b32.xlu0 %v2501, 104
        %v2715 = vpop.permute.xlu0 %2714
        %2716 = vrot.lane.b32.xlu0 %v2502, 104
        %v2717 = vpop.permute.xlu0 %2716
        %2718 = vrot.lane.b32.xlu0 %v2503, 104
        %v2719 = vpop.permute.xlu0 %2718
        %2720 = vrot.lane.b32.xlu0 %v2504, 104
        %v2721 = vpop.permute.xlu0 %2720
        %2722 = vrot.lane.b32.xlu0 %v2505, 104
        %v2723 = vpop.permute.xlu0 %2722
        %2724 = vrot.lane.b32.xlu0 %v2506, 104
        %v2725 = vpop.permute.xlu0 %2724
        %2726 = vrot.lane.b32.xlu0 %v2507, 104
        %v2727 = vpop.permute.xlu0 %2726
        %2728 = vrot.lane.b32.xlu0 %v2508, 104
        %v2729 = vpop.permute.xlu0 %2728
        %2730 = vrot.lane.b32.xlu0 %v2509, 104
        %v2731 = vpop.permute.xlu0 %2730
        %2732 = vrot.lane.b32.xlu0 %v2510, 104
        %v2733 = vpop.permute.xlu0 %2732
        %2734 = vrot.lane.b32.xlu0 %v2511, 104
        %v2735 = vpop.permute.xlu0 %2734
        %2736 = vrot.lane.b32.xlu0 %v2512, 104
        %v2737 = vpop.permute.xlu0 %2736
        %2738 = vrot.lane.b32.xlu0 %v2513, 104
        %v2739 = vpop.permute.xlu0 %2738
        %vm2740 = vcmask 850944
        %v2741 = vsel %vm2740, %v2709, %v2711
        %v2742 = vsel %vm2740, %v2713, %v2715
        %v2743 = vsel %vm2740, %v2717, %v2719
        %v2744 = vsel %vm2740, %v2721, %v2723
        %v2745 = vsel %vm2740, %v2725, %v2727
        %v2746 = vsel %vm2740, %v2729, %v2731
        %v2747 = vsel %vm2740, %v2733, %v2735
        %v2748 = vsel %vm2740, %v2737, %v2739
        %v2773 = vsel %vm2740, %v2711, %v2709
        %v2774 = vsel %vm2740, %v2715, %v2713
        %v2775 = vsel %vm2740, %v2719, %v2717
        %v2776 = vsel %vm2740, %v2723, %v2721
        %v2777 = vsel %vm2740, %v2727, %v2725
        %v2778 = vsel %vm2740, %v2731, %v2729
        %v2779 = vsel %vm2740, %v2735, %v2733
        %v2780 = vsel %vm2740, %v2739, %v2737
        %v2781 = vmax.f32 %v2692, %v2741
        %v2782 = vmax.f32 %v2693, %v2773
        %v2783 = vmax.f32 %v2694, %v2742
        %v2784 = vmax.f32 %v2695, %v2774
        %v2785 = vmax.f32 %v2696, %v2743
        %v2786 = vmax.f32 %v2697, %v2775
        %v2787 = vmax.f32 %v2698, %v2744
        %v2788 = vmax.f32 %v2699, %v2776
        %v2789 = vmax.f32 %v2700, %v2745
        %v2790 = vmax.f32 %v2701, %v2777
        %v2791 = vmax.f32 %v2702, %v2746
        %v2792 = vmax.f32 %v2703, %v2778
        %v2793 = vmax.f32 %v2704, %v2747
        %v2794 = vmax.f32 %v2705, %v2779
        %v2795 = vmax.f32 %v2706, %v2748
        %v2796 = vmax.f32 %v2707, %v2780
        %v2797 = vpack.c.bf16 0.0, 0.0
        %v2798 = vpack.c.bf16 %v2783, %v2781
        %v2799 = vpack.c.bf16 %v2784, %v2782
        %v2800 = vpack.c.bf16 %v2787, %v2785
        %v2801 = vpack.c.bf16 %v2788, %v2786
        %v2802 = vpack.c.bf16 %v2791, %v2789
        %v2803 = vpack.c.bf16 %v2792, %v2790
        %v2804 = vld [vmem:[%s3] sm:$0xf]
        %v2805 = vld [vmem:[%s3 + $0x4] sm:$0xf]
        %v2806 = vld [vmem:[%s3 + $0x8] sm:$0xf]
        %v2807 = vld [vmem:[%s3 + $0xc] sm:$0xf]
        %v2808 = vld [vmem:[%s3 + $0x10] sm:$0xf]
        %v2809 = vld [vmem:[%s3 + $0x14] sm:$0xf]
        %v2810 = vld [vmem:[%s3 + $0x18] sm:$0xf]
        %v2811 = vld [vmem:[%s3 + $0x1c] sm:$0xf]
        %v2812 = vld [vmem:[%s3 + $0x20] sm:$0xf]
        %v2813 = vld [vmem:[%s3 + $0x24] sm:$0xf]
        %v2814 = vld [vmem:[%s3 + $0x28] sm:$0xf]
        %v2815 = vld [vmem:[%s3 + $0x2c] sm:$0xf]
        %v2816 = vld [vmem:[%s3 + $0x30] sm:$0xf]
        %v2817 = vld [vmem:[%s3 + $0x34] sm:$0xf]
        %v2818 = vld [vmem:[%s3 + $0x38] sm:$0xf]
        %v2819 = vld [vmem:[%s3 + $0x3c] sm:$0xf]
        %v2820 = vld [vmem:[%s3 + $0x40] sm:$0xf]
        %v2821 = vld [vmem:[%s3 + $0x44] sm:$0xf]
        %v2822 = vld [vmem:[%s3 + $0x48] sm:$0xf]
        %v2823 = vld [vmem:[%s3 + $0x4c] sm:$0xf]
        %v2824 = vld [vmem:[%s3 + $0x50] sm:$0xf]
        %v2825 = vld [vmem:[%s3 + $0x54] sm:$0xf]
        %v2826 = vld [vmem:[%s3 + $0x58] sm:$0xf]
        %v2827 = vld [vmem:[%s3 + $0x5c] sm:$0xf]
        %v2828 = vld [vmem:[%s3 + $0x60] sm:$0xf]
        %v2829 = vld [vmem:[%s3 + $0x64] sm:$0xf]
        %v2830 = vld [vmem:[%s3 + $0x68] sm:$0xf]
        %v2831 = vld [vmem:[%s3 + $0x6c] sm:$0xf]
        %v2832 = vld [vmem:[%s3 + $0x70] sm:$0xf]
        %v2833 = vld [vmem:[%s3 + $0x74] sm:$0xf]
        %v2834 = vld [vmem:[%s3 + $0x78] sm:$0xf]
        %v2835 = vld [vmem:[%s3 + $0x7c] sm:$0xf]
        %v2836 = vpack.c.bf16 %v2781, 0.0
        %v2837 = vpack.c.bf16 %v2782, 0.0
        %v2838 = vpack.c.bf16 %v2785, %v2783
        %v2839 = vpack.c.bf16 %v2786, %v2784
        %v2840 = vpack.c.bf16 %v2789, %v2787
        %v2841 = vpack.c.bf16 %v2790, %v2788
        %v2842 = vpack.c.bf16 %v2793, %v2791
        %v2843 = vpack.c.bf16 %v2794, %v2792
        %s2844 = scalar_lea.vmem %s3, 128
        %v2845 = vld [vmem:[%s2844] sm:$0xf]
        %v2846 = vld [vmem:[%s2844 + $0x4] sm:$0xf]
        %v2847 = vld [vmem:[%s2844 + $0x8] sm:$0xf]
        %v2848 = vld [vmem:[%s2844 + $0xc] sm:$0xf]
        %v2849 = vld [vmem:[%s2844 + $0x10] sm:$0xf]
        %v2850 = vld [vmem:[%s2844 + $0x14] sm:$0xf]
        %v2851 = vld [vmem:[%s2844 + $0x18] sm:$0xf]
        %v2852 = vld [vmem:[%s2844 + $0x1c] sm:$0xf]
        %v2853 = vld [vmem:[%s2844 + $0x20] sm:$0xf]
        %v2854 = vld [vmem:[%s2844 + $0x24] sm:$0xf]
        %v2855 = vld [vmem:[%s2844 + $0x28] sm:$0xf]
        %v2856 = vld [vmem:[%s2844 + $0x2c] sm:$0xf]
        %v2857 = vld [vmem:[%s2844 + $0x30] sm:$0xf]
        %v2858 = vld [vmem:[%s2844 + $0x34] sm:$0xf]
        %v2859 = vld [vmem:[%s2844 + $0x38] sm:$0xf]
        %v2860 = vld [vmem:[%s2844 + $0x3c] sm:$0xf]
        %v2861 = vld [vmem:[%s2844 + $0x40] sm:$0xf]
        %v2862 = vld [vmem:[%s2844 + $0x44] sm:$0xf]
        %v2863 = vld [vmem:[%s2844 + $0x48] sm:$0xf]
        %v2864 = vld [vmem:[%s2844 + $0x4c] sm:$0xf]
        %v2865 = vld [vmem:[%s2844 + $0x50] sm:$0xf]
        %v2866 = vld [vmem:[%s2844 + $0x54] sm:$0xf]
        %v2867 = vld [vmem:[%s2844 + $0x58] sm:$0xf]
        %v2868 = vld [vmem:[%s2844 + $0x5c] sm:$0xf]
        %v2869 = vld [vmem:[%s2844 + $0x60] sm:$0xf]
        %v2870 = vld [vmem:[%s2844 + $0x64] sm:$0xf]
        %v2871 = vld [vmem:[%s2844 + $0x68] sm:$0xf]
        %v2872 = vld [vmem:[%s2844 + $0x6c] sm:$0xf]
        %v2873 = vld [vmem:[%s2844 + $0x70] sm:$0xf]
        %v2874 = vld [vmem:[%s2844 + $0x74] sm:$0xf]
        %v2875 = vld [vmem:[%s2844 + $0x78] sm:$0xf]
        %v2876 = vld [vmem:[%s2844 + $0x7c] sm:$0xf]
        %v2909 = vunpack.c.l.b16 %v2845
        %v2910 = vunpack.c.l.b16 %v2846
        %v2911 = vunpack.c.l.b16 %v2847
        %v2912 = vunpack.c.l.b16 %v2848
        %v2913 = vunpack.c.l.b16 %v2849
        %v2914 = vunpack.c.l.b16 %v2850
        %v2915 = vunpack.c.l.b16 %v2851
        %v2916 = vunpack.c.l.b16 %v2852
        %v2917 = vunpack.c.l.b16 %v2853
        %v2918 = vunpack.c.l.b16 %v2854
        %v2919 = vunpack.c.l.b16 %v2855
        %v2920 = vunpack.c.l.b16 %v2856
        %v2921 = vunpack.c.l.b16 %v2857
        %v2922 = vunpack.c.l.b16 %v2858
        %v2923 = vunpack.c.l.b16 %v2859
        %v2924 = vunpack.c.l.b16 %v2860
        %v2925 = vunpack.c.l.b16 %v2861
        %v2926 = vunpack.c.l.b16 %v2862
        %v2927 = vunpack.c.l.b16 %v2863
        %v2928 = vunpack.c.l.b16 %v2864
        %v2929 = vunpack.c.l.b16 %v2865
        %v2930 = vunpack.c.l.b16 %v2866
        %v2931 = vunpack.c.l.b16 %v2867
        %v2932 = vunpack.c.l.b16 %v2868
        %v2933 = vunpack.c.l.b16 %v2869
        %v2934 = vunpack.c.l.b16 %v2870
        %v2935 = vunpack.c.l.b16 %v2871
        %v2936 = vunpack.c.l.b16 %v2872
        %v2937 = vunpack.c.l.b16 %v2873
        %v2938 = vunpack.c.l.b16 %v2874
        %v2939 = vunpack.c.l.b16 %v2875
        %v2940 = vunpack.c.l.b16 %v2876
        %v2941 = vpack.c.b16 %v2910, %v2909
        %v2942 = vpack.c.b16 %v2912, %v2911
        %v2943 = vpack.c.b16 %v2914, %v2913
        %v2944 = vpack.c.b16 %v2916, %v2915
        %v2945 = vpack.c.b16 %v2918, %v2917
        %v2946 = vpack.c.b16 %v2920, %v2919
        %v2947 = vpack.c.b16 %v2922, %v2921
        %v2948 = vpack.c.b16 %v2924, %v2923
        %v2949 = vpack.c.b16 %v2926, %v2925
        %v2950 = vpack.c.b16 %v2928, %v2927
        %v2951 = vpack.c.b16 %v2930, %v2929
        %v2952 = vpack.c.b16 %v2932, %v2931
        %v2953 = vpack.c.b16 %v2934, %v2933
        %v2954 = vpack.c.b16 %v2936, %v2935
        %v2955 = vpack.c.b16 %v2938, %v2937
        %v2956 = vpack.c.b16 %v2940, %v2939
        %2973 = vmatprep.subr.bf16.mxu0 0
        %2974 = vmatpush1.bf16.msra.mxu0 %v2941
        %2975 = vmatprep.subr.bf16.mxu0 0
        %2976 = vmatpush1.bf16.msra.mxu0 %v2942
        %2977 = vmatprep.subr.bf16.mxu0 0
        %2978 = vmatpush1.bf16.msra.mxu0 %v2943
        %2979 = vmatprep.subr.bf16.mxu0 0
        %2980 = vmatpush1.bf16.msra.mxu0 %v2944
        %2981 = vmatprep.subr.bf16.mxu0 0
        %2982 = vmatpush1.bf16.msra.mxu0 %v2945
        %2983 = vmatprep.subr.bf16.mxu0 0
        %2984 = vmatpush1.bf16.msra.mxu0 %v2946
        %2985 = vmatprep.subr.bf16.mxu0 0
        %2986 = vmatpush1.bf16.msra.mxu0 %v2947
        %2987 = vmatprep.subr.bf16.mxu0 0
        %2988 = vmatpush1.bf16.msra.mxu0 %v2948
        %2989 = vmatprep.subr.bf16.mxu0 0
        %2990 = vmatpush1.bf16.msra.mxu0 %v2949
        %2991 = vmatprep.subr.bf16.mxu0 0
        %2992 = vmatpush1.bf16.msra.mxu0 %v2950
        %2993 = vmatprep.subr.bf16.mxu0 0
        %2994 = vmatpush1.bf16.msra.mxu0 %v2951
        %2995 = vmatprep.subr.bf16.mxu0 0
        %2996 = vmatpush1.bf16.msra.mxu0 %v2952
        %2997 = vmatprep.subr.bf16.mxu0 0
        %2998 = vmatpush1.bf16.msra.mxu0 %v2953
        %2999 = vmatprep.subr.bf16.mxu0 0
        %3000 = vmatpush1.bf16.msra.mxu0 %v2954
        %3001 = vmatprep.subr.bf16.mxu0 0
        %3002 = vmatpush1.bf16.msra.mxu0 %v2955
        %3003 = vmatprep.subr.bf16.mxu0 0
        %3004 = vmatpush1.bf16.msra.mxu0 %v2956
        %3005 = vmatprep.mubr.bf16.mxu0 %v2837
        %3006 = vmatmul.mubr.bf16.gmra.mrb[0].mxu0 %v2836
        %v3007 = vpop.f32.mrb[0].mxu0
        %v3008 = vadd.f32 0.0, %v3007
        %v3009 = vpop.f32.mrb[0].mxu0
        %v3010 = vpop.f32.mrb[0].mxu0
        %v3011 = vadd.f32 0.0, %v3010
        %v3012 = vpop.f32.mrb[0].mxu0
        %3013 = vmatprep.mubr.bf16.mxu0 %v2839
        %3014 = vmatmul.mubr.bf16.gmra.mrb[0].mxu0 %v2838
        %v3015 = vpop.f32.mrb[0].mxu0
        %v3016 = vadd.f32 0.0, %v3015
        %v3017 = vpop.f32.mrb[0].mxu0
        %v3018 = vpop.f32.mrb[0].mxu0
        %v3019 = vadd.f32 0.0, %v3018
        %v3020 = vpop.f32.mrb[0].mxu0
        %3021 = vmatprep.mubr.bf16.mxu0 %v2841
        %3022 = vmatmul.mubr.bf16.gmra.mrb[0].mxu0 %v2840
        %v3023 = vpop.f32.mrb[0].mxu0
        %v3024 = vadd.f32 0.0, %v3023
        %v3025 = vpop.f32.mrb[0].mxu0
        %v3026 = vpop.f32.mrb[0].mxu0
        %v3027 = vadd.f32 0.0, %v3026
        %v3028 = vpop.f32.mrb[0].mxu0
        %3029 = vmatprep.mubr.bf16.mxu0 %v2843
        %3030 = vmatmul.mubr.bf16.gmra.mrb[0].mxu0 %v2842
        %v3031 = vpop.f32.mrb[0].mxu0
        %v3032 = vadd.f32 0.0, %v3031
        %v3033 = vpop.f32.mrb[0].mxu0
        %v3034 = vpop.f32.mrb[0].mxu0
        %v3035 = vadd.f32 0.0, %v3034
        %v3036 = vpop.f32.mrb[0].mxu0
        %3037 = vdwg.mxu0
        %v3070 = vunpack.c.l.b16 %v2804
        %v3071 = vunpack.c.l.b16 %v2805
        %v3072 = vunpack.c.l.b16 %v2806
        %v3073 = vunpack.c.l.b16 %v2807
        %v3074 = vunpack.c.l.b16 %v2808
        %v3075 = vunpack.c.l.b16 %v2809
        %v3076 = vunpack.c.l.b16 %v2810
        %v3077 = vunpack.c.l.b16 %v2811
        %v3078 = vunpack.c.l.b16 %v2812
        %v3079 = vunpack.c.l.b16 %v2813
        %v3080 = vunpack.c.l.b16 %v2814
        %v3081 = vunpack.c.l.b16 %v2815
        %v3082 = vunpack.c.l.b16 %v2816
        %v3083 = vunpack.c.l.b16 %v2817
        %v3084 = vunpack.c.l.b16 %v2818
        %v3085 = vunpack.c.l.b16 %v2819
        %v3086 = vunpack.c.l.b16 %v2820
        %v3087 = vunpack.c.l.b16 %v2821
        %v3088 = vunpack.c.l.b16 %v2822
        %v3089 = vunpack.c.l.b16 %v2823
        %v3090 = vunpack.c.l.b16 %v2824
        %v3091 = vunpack.c.l.b16 %v2825
        %v3092 = vunpack.c.l.b16 %v2826
        %v3093 = vunpack.c.l.b16 %v2827
        %v3094 = vunpack.c.l.b16 %v2828
        %v3095 = vunpack.c.l.b16 %v2829
        %v3096 = vunpack.c.l.b16 %v2830
        %v3097 = vunpack.c.l.b16 %v2831
        %v3098 = vunpack.c.l.b16 %v2832
        %v3099 = vunpack.c.l.b16 %v2833
        %v3100 = vunpack.c.l.b16 %v2834
        %v3101 = vunpack.c.l.b16 %v2835
        %v3102 = vpack.c.b16 %v3071, %v3070
        %v3103 = vpack.c.b16 %v3073, %v3072
        %v3104 = vpack.c.b16 %v3075, %v3074
        %v3105 = vpack.c.b16 %v3077, %v3076
        %v3106 = vpack.c.b16 %v3079, %v3078
        %v3107 = vpack.c.b16 %v3081, %v3080
        %v3108 = vpack.c.b16 %v3083, %v3082
        %v3109 = vpack.c.b16 %v3085, %v3084
        %v3110 = vpack.c.b16 %v3087, %v3086
        %v3111 = vpack.c.b16 %v3089, %v3088
        %v3112 = vpack.c.b16 %v3091, %v3090
        %v3113 = vpack.c.b16 %v3093, %v3092
        %v3114 = vpack.c.b16 %v3095, %v3094
        %v3115 = vpack.c.b16 %v3097, %v3096
        %v3116 = vpack.c.b16 %v3099, %v3098
        %v3117 = vpack.c.b16 %v3101, %v3100
        %3134 = vmatprep.subr.bf16.mxu0 0
        %3135 = vmatpush1.bf16.msra.mxu0 %v3102
        %3136 = vmatprep.subr.bf16.mxu0 0
        %3137 = vmatpush1.bf16.msra.mxu0 %v3103
        %3138 = vmatprep.subr.bf16.mxu0 0
        %3139 = vmatpush1.bf16.msra.mxu0 %v3104
        %3140 = vmatprep.subr.bf16.mxu0 0
        %3141 = vmatpush1.bf16.msra.mxu0 %v3105
        %3142 = vmatprep.subr.bf16.mxu0 0
        %3143 = vmatpush1.bf16.msra.mxu0 %v3106
        %3144 = vmatprep.subr.bf16.mxu0 0
        %3145 = vmatpush1.bf16.msra.mxu0 %v3107
        %3146 = vmatprep.subr.bf16.mxu0 0
        %3147 = vmatpush1.bf16.msra.mxu0 %v3108
        %3148 = vmatprep.subr.bf16.mxu0 0
        %3149 = vmatpush1.bf16.msra.mxu0 %v3109
        %3150 = vmatprep.subr.bf16.mxu0 0
        %3151 = vmatpush1.bf16.msra.mxu0 %v3110
        %3152 = vmatprep.subr.bf16.mxu0 0
        %3153 = vmatpush1.bf16.msra.mxu0 %v3111
        %3154 = vmatprep.subr.bf16.mxu0 0
        %3155 = vmatpush1.bf16.msra.mxu0 %v3112
        %3156 = vmatprep.subr.bf16.mxu0 0
        %3157 = vmatpush1.bf16.msra.mxu0 %v3113
        %3158 = vmatprep.subr.bf16.mxu0 0
        %3159 = vmatpush1.bf16.msra.mxu0 %v3114
        %3160 = vmatprep.subr.bf16.mxu0 0
        %3161 = vmatpush1.bf16.msra.mxu0 %v3115
        %3162 = vmatprep.subr.bf16.mxu0 0
        %3163 = vmatpush1.bf16.msra.mxu0 %v3116
        %3164 = vmatprep.subr.bf16.mxu0 0
        %3165 = vmatpush1.bf16.msra.mxu0 %v3117
        %3166 = vmatprep.mubr.bf16.mxu0 %v2797
        %3167 = vmatmul.mubr.bf16.gmra.mrb[0].mxu0 %v2797
        %v3168 = vpop.f32.mrb[0].mxu0
        %v3169 = vadd.f32 %v3008, %v3168
        %v3170 = vpop.f32.mrb[0].mxu0
        %v3171 = vpop.f32.mrb[0].mxu0
        %v3172 = vadd.f32 %v3011, %v3171
        %v3173 = vpop.f32.mrb[0].mxu0
        %3174 = vmatprep.mubr.bf16.mxu0 %v2799
        %3175 = vmatmul.mubr.bf16.gmra.mrb[0].mxu0 %v2798
        %v3176 = vpop.f32.mrb[0].mxu0
        %v3177 = vadd.f32 %v3016, %v3176
        %v3178 = vpop.f32.mrb[0].mxu0
        %v3179 = vpop.f32.mrb[0].mxu0
        %v3180 = vadd.f32 %v3019, %v3179
        %v3181 = vpop.f32.mrb[0].mxu0
        %3182 = vmatprep.mubr.bf16.mxu0 %v2801
        %3183 = vmatmul.mubr.bf16.gmra.mrb[0].mxu0 %v2800
        %v3184 = vpop.f32.mrb[0].mxu0
        %v3185 = vadd.f32 %v3024, %v3184
        %v3186 = vpop.f32.mrb[0].mxu0
        %v3187 = vpop.f32.mrb[0].mxu0
        %v3188 = vadd.f32 %v3027, %v3187
        %v3189 = vpop.f32.mrb[0].mxu0
        %3190 = vmatprep.mubr.bf16.mxu0 %v2803
        %3191 = vmatmul.mubr.bf16.gmra.mrb[0].mxu0 %v2802
        %v3192 = vpop.f32.mrb[0].mxu0
        %v3193 = vadd.f32 %v3032, %v3192
        %v3194 = vpop.f32.mrb[0].mxu0
        %v3195 = vpop.f32.mrb[0].mxu0
        %v3196 = vadd.f32 %v3035, %v3195
        %v3197 = vpop.f32.mrb[0].mxu0
        %3198 = vdwg.mxu0
        %v3199 = vpack.c.bf16 %v2795, %v2793
        %v3200 = vpack.c.bf16 %v2796, %v2794
        %s3201 = scalar_lea.vmem %s3, 256
        %v3202 = vld [vmem:[%s3201] sm:$0xf]
        %v3203 = vld [vmem:[%s3201 + $0x4] sm:$0xf]
        %v3204 = vld [vmem:[%s3201 + $0x8] sm:$0xf]
        %v3205 = vld [vmem:[%s3201 + $0xc] sm:$0xf]
        %v3206 = vld [vmem:[%s3201 + $0x10] sm:$0xf]
        %v3207 = vld [vmem:[%s3201 + $0x14] sm:$0xf]
        %v3208 = vld [vmem:[%s3201 + $0x18] sm:$0xf]
        %v3209 = vld [vmem:[%s3201 + $0x1c] sm:$0xf]
        %v3210 = vld [vmem:[%s3201 + $0x20] sm:$0xf]
        %v3211 = vld [vmem:[%s3201 + $0x24] sm:$0xf]
        %v3212 = vld [vmem:[%s3201 + $0x28] sm:$0xf]
        %v3213 = vld [vmem:[%s3201 + $0x2c] sm:$0xf]
        %v3214 = vld [vmem:[%s3201 + $0x30] sm:$0xf]
        %v3215 = vld [vmem:[%s3201 + $0x34] sm:$0xf]
        %v3216 = vld [vmem:[%s3201 + $0x38] sm:$0xf]
        %v3217 = vld [vmem:[%s3201 + $0x3c] sm:$0xf]
        %v3218 = vld [vmem:[%s3201 + $0x40] sm:$0xf]
        %v3219 = vld [vmem:[%s3201 + $0x44] sm:$0xf]
        %v3220 = vld [vmem:[%s3201 + $0x48] sm:$0xf]
        %v3221 = vld [vmem:[%s3201 + $0x4c] sm:$0xf]
        %v3222 = vld [vmem:[%s3201 + $0x50] sm:$0xf]
        %v3223 = vld [vmem:[%s3201 + $0x54] sm:$0xf]
        %v3224 = vld [vmem:[%s3201 + $0x58] sm:$0xf]
        %v3225 = vld [vmem:[%s3201 + $0x5c] sm:$0xf]
        %v3226 = vld [vmem:[%s3201 + $0x60] sm:$0xf]
        %v3227 = vld [vmem:[%s3201 + $0x64] sm:$0xf]
        %v3228 = vld [vmem:[%s3201 + $0x68] sm:$0xf]
        %v3229 = vld [vmem:[%s3201 + $0x6c] sm:$0xf]
        %v3230 = vld [vmem:[%s3201 + $0x70] sm:$0xf]
        %v3231 = vld [vmem:[%s3201 + $0x74] sm:$0xf]
        %v3232 = vld [vmem:[%s3201 + $0x78] sm:$0xf]
        %v3233 = vld [vmem:[%s3201 + $0x7c] sm:$0xf]
        %v3266 = vunpack.c.l.b16 %v3202
        %v3267 = vunpack.c.l.b16 %v3203
        %v3268 = vunpack.c.l.b16 %v3204
        %v3269 = vunpack.c.l.b16 %v3205
        %v3270 = vunpack.c.l.b16 %v3206
        %v3271 = vunpack.c.l.b16 %v3207
        %v3272 = vunpack.c.l.b16 %v3208
        %v3273 = vunpack.c.l.b16 %v3209
        %v3274 = vunpack.c.l.b16 %v3210
        %v3275 = vunpack.c.l.b16 %v3211
        %v3276 = vunpack.c.l.b16 %v3212
        %v3277 = vunpack.c.l.b16 %v3213
        %v3278 = vunpack.c.l.b16 %v3214
        %v3279 = vunpack.c.l.b16 %v3215
        %v3280 = vunpack.c.l.b16 %v3216
        %v3281 = vunpack.c.l.b16 %v3217
        %v3282 = vunpack.c.l.b16 %v3218
        %v3283 = vunpack.c.l.b16 %v3219
        %v3284 = vunpack.c.l.b16 %v3220
        %v3285 = vunpack.c.l.b16 %v3221
        %v3286 = vunpack.c.l.b16 %v3222
        %v3287 = vunpack.c.l.b16 %v3223
        %v3288 = vunpack.c.l.b16 %v3224
        %v3289 = vunpack.c.l.b16 %v3225
        %v3290 = vunpack.c.l.b16 %v3226
        %v3291 = vunpack.c.l.b16 %v3227
        %v3292 = vunpack.c.l.b16 %v3228
        %v3293 = vunpack.c.l.b16 %v3229
        %v3294 = vunpack.c.l.b16 %v3230
        %v3295 = vunpack.c.l.b16 %v3231
        %v3296 = vunpack.c.l.b16 %v3232
        %v3297 = vunpack.c.l.b16 %v3233
        %v3298 = vpack.c.b16 %v3267, %v3266
        %v3299 = vpack.c.b16 %v3269, %v3268
        %v3300 = vpack.c.b16 %v3271, %v3270
        %v3301 = vpack.c.b16 %v3273, %v3272
        %v3302 = vpack.c.b16 %v3275, %v3274
        %v3303 = vpack.c.b16 %v3277, %v3276
        %v3304 = vpack.c.b16 %v3279, %v3278
        %v3305 = vpack.c.b16 %v3281, %v3280
        %v3306 = vpack.c.b16 %v3283, %v3282
        %v3307 = vpack.c.b16 %v3285, %v3284
        %v3308 = vpack.c.b16 %v3287, %v3286
        %v3309 = vpack.c.b16 %v3289, %v3288
        %v3310 = vpack.c.b16 %v3291, %v3290
        %v3311 = vpack.c.b16 %v3293, %v3292
        %v3312 = vpack.c.b16 %v3295, %v3294
        %v3313 = vpack.c.b16 %v3297, %v3296
        %3330 = vmatprep.subr.bf16.mxu0 0
        %3331 = vmatpush1.bf16.msra.mxu0 %v3298
        %3332 = vmatprep.subr.bf16.mxu0 0
        %3333 = vmatpush1.bf16.msra.mxu0 %v3299
        %3334 = vmatprep.subr.bf16.mxu0 0
        %3335 = vmatpush1.bf16.msra.mxu0 %v3300
        %3336 = vmatprep.subr.bf16.mxu0 0
        %3337 = vmatpush1.bf16.msra.mxu0 %v3301
        %3338 = vmatprep.subr.bf16.mxu0 0
        %3339 = vmatpush1.bf16.msra.mxu0 %v3302
        %3340 = vmatprep.subr.bf16.mxu0 0
        %3341 = vmatpush1.bf16.msra.mxu0 %v3303
        %3342 = vmatprep.subr.bf16.mxu0 0
        %3343 = vmatpush1.bf16.msra.mxu0 %v3304
        %3344 = vmatprep.subr.bf16.mxu0 0
        %3345 = vmatpush1.bf16.msra.mxu0 %v3305
        %3346 = vmatprep.subr.bf16.mxu0 0
        %3347 = vmatpush1.bf16.msra.mxu0 %v3306
        %3348 = vmatprep.subr.bf16.mxu0 0
        %3349 = vmatpush1.bf16.msra.mxu0 %v3307
        %3350 = vmatprep.subr.bf16.mxu0 0
        %3351 = vmatpush1.bf16.msra.mxu0 %v3308
        %3352 = vmatprep.subr.bf16.mxu0 0
        %3353 = vmatpush1.bf16.msra.mxu0 %v3309
        %3354 = vmatprep.subr.bf16.mxu0 0
        %3355 = vmatpush1.bf16.msra.mxu0 %v3310
        %3356 = vmatprep.subr.bf16.mxu0 0
        %3357 = vmatpush1.bf16.msra.mxu0 %v3311
        %3358 = vmatprep.subr.bf16.mxu0 0
        %3359 = vmatpush1.bf16.msra.mxu0 %v3312
        %3360 = vmatprep.subr.bf16.mxu0 0
        %3361 = vmatpush1.bf16.msra.mxu0 %v3313
        %3362 = vmatprep.mubr.bf16.mxu0 %v2799
        %3363 = vmatmul.mubr.bf16.gmra.mrb[0].mxu0 %v2798
        %v3364 = vpop.f32.mrb[0].mxu0
        %v3365 = vadd.f32 0.0, %v3364
        %v3366 = vpop.f32.mrb[0].mxu0
        %v3367 = vpop.f32.mrb[0].mxu0
        %v3368 = vadd.f32 0.0, %v3367
        %v3369 = vpop.f32.mrb[0].mxu0
        %3370 = vmatprep.mubr.bf16.mxu0 %v2801
        %3371 = vmatmul.mubr.bf16.gmra.mrb[0].mxu0 %v2800
        %v3372 = vpop.f32.mrb[0].mxu0
        %v3373 = vadd.f32 0.0, %v3372
        %v3374 = vpop.f32.mrb[0].mxu0
        %v3375 = vpop.f32.mrb[0].mxu0
        %v3376 = vadd.f32 0.0, %v3375
        %v3377 = vpop.f32.mrb[0].mxu0
        %3378 = vmatprep.mubr.bf16.mxu0 %v2803
        %3379 = vmatmul.mubr.bf16.gmra.mrb[0].mxu0 %v2802
        %v3380 = vpop.f32.mrb[0].mxu0
        %v3381 = vadd.f32 0.0, %v3380
        %v3382 = vpop.f32.mrb[0].mxu0
        %v3383 = vpop.f32.mrb[0].mxu0
        %v3384 = vadd.f32 0.0, %v3383
        %v3385 = vpop.f32.mrb[0].mxu0
        %3386 = vmatprep.mubr.bf16.mxu0 %v3200
        %3387 = vmatmul.mubr.bf16.gmra.mrb[0].mxu0 %v3199
        %v3388 = vpop.f32.mrb[0].mxu0
        %v3389 = vadd.f32 0.0, %v3388
        %v3390 = vpop.f32.mrb[0].mxu0
        %v3391 = vpop.f32.mrb[0].mxu0
        %v3392 = vadd.f32 0.0, %v3391
        %v3393 = vpop.f32.mrb[0].mxu0
        %3394 = vdwg.mxu0
        %v3395 = vadd.f32 %v3169, %v3365
        %v3396 = vadd.f32 %v3172, %v3368
        %v3397 = vadd.f32 %v3177, %v3373
        %v3398 = vadd.f32 %v3180, %v3376
        %v3399 = vadd.f32 %v3185, %v3381
        %v3400 = vadd.f32 %v3188, %v3384
        %v3401 = vadd.f32 %v3193, %v3389
        %v3402 = vadd.f32 %v3196, %v3392
        %v3403 = vpack.c.bf16 0.0, %v2795
        %v3404 = vpack.c.bf16 0.0, %v2796
        %s3405 = scalar_lea.vmem %s3, 384
        %v3406 = vld [vmem:[%s3405] sm:$0xf]
        %v3407 = vld [vmem:[%s3405 + $0x4] sm:$0xf]
        %v3408 = vld [vmem:[%s3405 + $0x8] sm:$0xf]
        %v3409 = vld [vmem:[%s3405 + $0xc] sm:$0xf]
        %v3410 = vld [vmem:[%s3405 + $0x10] sm:$0xf]
        %v3411 = vld [vmem:[%s3405 + $0x14] sm:$0xf]
        %v3412 = vld [vmem:[%s3405 + $0x18] sm:$0xf]
        %v3413 = vld [vmem:[%s3405 + $0x1c] sm:$0xf]
        %v3414 = vld [vmem:[%s3405 + $0x20] sm:$0xf]
        %v3415 = vld [vmem:[%s3405 + $0x24] sm:$0xf]
        %v3416 = vld [vmem:[%s3405 + $0x28] sm:$0xf]
        %v3417 = vld [vmem:[%s3405 + $0x2c] sm:$0xf]
        %v3418 = vld [vmem:[%s3405 + $0x30] sm:$0xf]
        %v3419 = vld [vmem:[%s3405 + $0x34] sm:$0xf]
        %v3420 = vld [vmem:[%s3405 + $0x38] sm:$0xf]
        %v3421 = vld [vmem:[%s3405 + $0x3c] sm:$0xf]
        %v3422 = vld [vmem:[%s3405 + $0x40] sm:$0xf]
        %v3423 = vld [vmem:[%s3405 + $0x44] sm:$0xf]
        %v3424 = vld [vmem:[%s3405 + $0x48] sm:$0xf]
        %v3425 = vld [vmem:[%s3405 + $0x4c] sm:$0xf]
        %v3426 = vld [vmem:[%s3405 + $0x50] sm:$0xf]
        %v3427 = vld [vmem:[%s3405 + $0x54] sm:$0xf]
        %v3428 = vld [vmem:[%s3405 + $0x58] sm:$0xf]
        %v3429 = vld [vmem:[%s3405 + $0x5c] sm:$0xf]
        %v3430 = vld [vmem:[%s3405 + $0x60] sm:$0xf]
        %v3431 = vld [vmem:[%s3405 + $0x64] sm:$0xf]
        %v3432 = vld [vmem:[%s3405 + $0x68] sm:$0xf]
        %v3433 = vld [vmem:[%s3405 + $0x6c] sm:$0xf]
        %v3434 = vld [vmem:[%s3405 + $0x70] sm:$0xf]
        %v3435 = vld [vmem:[%s3405 + $0x74] sm:$0xf]
        %v3436 = vld [vmem:[%s3405 + $0x78] sm:$0xf]
        %v3437 = vld [vmem:[%s3405 + $0x7c] sm:$0xf]
        %v3470 = vunpack.c.l.b16 %v3406
        %v3471 = vunpack.c.l.b16 %v3407
        %v3472 = vunpack.c.l.b16 %v3408
        %v3473 = vunpack.c.l.b16 %v3409
        %v3474 = vunpack.c.l.b16 %v3410
        %v3475 = vunpack.c.l.b16 %v3411
        %v3476 = vunpack.c.l.b16 %v3412
        %v3477 = vunpack.c.l.b16 %v3413
        %v3478 = vunpack.c.l.b16 %v3414
        %v3479 = vunpack.c.l.b16 %v3415
        %v3480 = vunpack.c.l.b16 %v3416
        %v3481 = vunpack.c.l.b16 %v3417
        %v3482 = vunpack.c.l.b16 %v3418
        %v3483 = vunpack.c.l.b16 %v3419
        %v3484 = vunpack.c.l.b16 %v3420
        %v3485 = vunpack.c.l.b16 %v3421
        %v3486 = vunpack.c.l.b16 %v3422
        %v3487 = vunpack.c.l.b16 %v3423
        %v3488 = vunpack.c.l.b16 %v3424
        %v3489 = vunpack.c.l.b16 %v3425
        %v3490 = vunpack.c.l.b16 %v3426
        %v3491 = vunpack.c.l.b16 %v3427
        %v3492 = vunpack.c.l.b16 %v3428
        %v3493 = vunpack.c.l.b16 %v3429
        %v3494 = vunpack.c.l.b16 %v3430
        %v3495 = vunpack.c.l.b16 %v3431
        %v3496 = vunpack.c.l.b16 %v3432
        %v3497 = vunpack.c.l.b16 %v3433
        %v3498 = vunpack.c.l.b16 %v3434
        %v3499 = vunpack.c.l.b16 %v3435
        %v3500 = vunpack.c.l.b16 %v3436
        %v3501 = vunpack.c.l.b16 %v3437
        %v3502 = vpack.c.b16 %v3471, %v3470
        %v3503 = vpack.c.b16 %v3473, %v3472
        %v3504 = vpack.c.b16 %v3475, %v3474
        %v3505 = vpack.c.b16 %v3477, %v3476
        %v3506 = vpack.c.b16 %v3479, %v3478
        %v3507 = vpack.c.b16 %v3481, %v3480
        %v3508 = vpack.c.b16 %v3483, %v3482
        %v3509 = vpack.c.b16 %v3485, %v3484
        %v3510 = vpack.c.b16 %v3487, %v3486
        %v3511 = vpack.c.b16 %v3489, %v3488
        %v3512 = vpack.c.b16 %v3491, %v3490
        %v3513 = vpack.c.b16 %v3493, %v3492
        %v3514 = vpack.c.b16 %v3495, %v3494
        %v3515 = vpack.c.b16 %v3497, %v3496
        %v3516 = vpack.c.b16 %v3499, %v3498
        %v3517 = vpack.c.b16 %v3501, %v3500
        %3534 = vmatprep.subr.bf16.mxu0 0
        %3535 = vmatpush1.bf16.msra.mxu0 %v3502
        %3536 = vmatprep.subr.bf16.mxu0 0
        %3537 = vmatpush1.bf16.msra.mxu0 %v3503
        %3538 = vmatprep.subr.bf16.mxu0 0
        %3539 = vmatpush1.bf16.msra.mxu0 %v3504
        %3540 = vmatprep.subr.bf16.mxu0 0
        %3541 = vmatpush1.bf16.msra.mxu0 %v3505
        %3542 = vmatprep.subr.bf16.mxu0 0
        %3543 = vmatpush1.bf16.msra.mxu0 %v3506
        %3544 = vmatprep.subr.bf16.mxu0 0
        %3545 = vmatpush1.bf16.msra.mxu0 %v3507
        %3546 = vmatprep.subr.bf16.mxu0 0
        %3547 = vmatpush1.bf16.msra.mxu0 %v3508
        %3548 = vmatprep.subr.bf16.mxu0 0
        %3549 = vmatpush1.bf16.msra.mxu0 %v3509
        %3550 = vmatprep.subr.bf16.mxu0 0
        %3551 = vmatpush1.bf16.msra.mxu0 %v3510
        %3552 = vmatprep.subr.bf16.mxu0 0
        %3553 = vmatpush1.bf16.msra.mxu0 %v3511
        %3554 = vmatprep.subr.bf16.mxu0 0
        %3555 = vmatpush1.bf16.msra.mxu0 %v3512
        %3556 = vmatprep.subr.bf16.mxu0 0
        %3557 = vmatpush1.bf16.msra.mxu0 %v3513
        %3558 = vmatprep.subr.bf16.mxu0 0
        %3559 = vmatpush1.bf16.msra.mxu0 %v3514
        %3560 = vmatprep.subr.bf16.mxu0 0
        %3561 = vmatpush1.bf16.msra.mxu0 %v3515
        %3562 = vmatprep.subr.bf16.mxu0 0
        %3563 = vmatpush1.bf16.msra.mxu0 %v3516
        %3564 = vmatprep.subr.bf16.mxu0 0
        %3565 = vmatpush1.bf16.msra.mxu0 %v3517
        %3566 = vmatprep.mubr.bf16.mxu0 %v2839
        %3567 = vmatmul.mubr.bf16.gmra.mrb[0].mxu0 %v2838
        %v3568 = vpop.f32.mrb[0].mxu0
        %v3569 = vadd.f32 0.0, %v3568
        %v3570 = vpop.f32.mrb[0].mxu0
        %v3571 = vpop.f32.mrb[0].mxu0
        %v3572 = vadd.f32 0.0, %v3571
        %v3573 = vpop.f32.mrb[0].mxu0
        %3574 = vmatprep.mubr.bf16.mxu0 %v2841
        %3575 = vmatmul.mubr.bf16.gmra.mrb[0].mxu0 %v2840
        %v3576 = vpop.f32.mrb[0].mxu0
        %v3577 = vadd.f32 0.0, %v3576
        %v3578 = vpop.f32.mrb[0].mxu0
        %v3579 = vpop.f32.mrb[0].mxu0
        %v3580 = vadd.f32 0.0, %v3579
        %v3581 = vpop.f32.mrb[0].mxu0
        %3582 = vmatprep.mubr.bf16.mxu0 %v2843
        %3583 = vmatmul.mubr.bf16.gmra.mrb[0].mxu0 %v2842
        %v3584 = vpop.f32.mrb[0].mxu0
        %v3585 = vadd.f32 0.0, %v3584
        %v3586 = vpop.f32.mrb[0].mxu0
        %v3587 = vpop.f32.mrb[0].mxu0
        %v3588 = vadd.f32 0.0, %v3587
        %v3589 = vpop.f32.mrb[0].mxu0
        %3590 = vmatprep.mubr.bf16.mxu0 %v3404
        %3591 = vmatmul.mubr.bf16.gmra.mrb[0].mxu0 %v3403
        %v3592 = vpop.f32.mrb[0].mxu0
        %v3593 = vadd.f32 0.0, %v3592
        %v3594 = vpop.f32.mrb[0].mxu0
        %v3595 = vpop.f32.mrb[0].mxu0
        %v3596 = vadd.f32 0.0, %v3595
        %v3597 = vpop.f32.mrb[0].mxu0
        %3598 = vdwg.mxu0
        %v3599 = vadd.f32 %v3395, %v3569
        %v3600 = vadd.f32 %v3396, %v3572
        %v3601 = vadd.f32 %v3397, %v3577
        %v3602 = vadd.f32 %v3398, %v3580
        %v3603 = vadd.f32 %v3399, %v3585
        %v3604 = vadd.f32 %v3400, %v3588
        %v3605 = vadd.f32 %v3401, %v3593
        %v3606 = vadd.f32 %v3402, %v3596
        %s3607 = scalar_lea.vmem %s3, 512
        %v3608 = vld [vmem:[%s3607] sm:$0xf]
        %v3609 = vld [vmem:[%s3607 + $0x4] sm:$0xf]
        %v3610 = vld [vmem:[%s3607 + $0x8] sm:$0xf]
        %v3611 = vld [vmem:[%s3607 + $0xc] sm:$0xf]
        %v3612 = vld [vmem:[%s3607 + $0x10] sm:$0xf]
        %v3613 = vld [vmem:[%s3607 + $0x14] sm:$0xf]
        %v3614 = vld [vmem:[%s3607 + $0x18] sm:$0xf]
        %v3615 = vld [vmem:[%s3607 + $0x1c] sm:$0xf]
        %v3616 = vld [vmem:[%s3607 + $0x20] sm:$0xf]
        %v3617 = vld [vmem:[%s3607 + $0x24] sm:$0xf]
        %v3618 = vld [vmem:[%s3607 + $0x28] sm:$0xf]
        %v3619 = vld [vmem:[%s3607 + $0x2c] sm:$0xf]
        %v3620 = vld [vmem:[%s3607 + $0x30] sm:$0xf]
        %v3621 = vld [vmem:[%s3607 + $0x34] sm:$0xf]
        %v3622 = vld [vmem:[%s3607 + $0x38] sm:$0xf]
        %v3623 = vld [vmem:[%s3607 + $0x3c] sm:$0xf]
        %v3624 = vld [vmem:[%s3607 + $0x40] sm:$0xf]
        %v3625 = vld [vmem:[%s3607 + $0x44] sm:$0xf]
        %v3626 = vld [vmem:[%s3607 + $0x48] sm:$0xf]
        %v3627 = vld [vmem:[%s3607 + $0x4c] sm:$0xf]
        %v3628 = vld [vmem:[%s3607 + $0x50] sm:$0xf]
        %v3629 = vld [vmem:[%s3607 + $0x54] sm:$0xf]
        %v3630 = vld [vmem:[%s3607 + $0x58] sm:$0xf]
        %v3631 = vld [vmem:[%s3607 + $0x5c] sm:$0xf]
        %v3632 = vld [vmem:[%s3607 + $0x60] sm:$0xf]
        %v3633 = vld [vmem:[%s3607 + $0x64] sm:$0xf]
        %v3634 = vld [vmem:[%s3607 + $0x68] sm:$0xf]
        %v3635 = vld [vmem:[%s3607 + $0x6c] sm:$0xf]
        %v3636 = vld [vmem:[%s3607 + $0x70] sm:$0xf]
        %v3637 = vld [vmem:[%s3607 + $0x74] sm:$0xf]
        %v3638 = vld [vmem:[%s3607 + $0x78] sm:$0xf]
        %v3639 = vld [vmem:[%s3607 + $0x7c] sm:$0xf]
        %v3672 = vunpack.c.l.b16 %v3608
        %v3673 = vunpack.c.l.b16 %v3609
        %v3674 = vunpack.c.l.b16 %v3610
        %v3675 = vunpack.c.l.b16 %v3611
        %v3676 = vunpack.c.l.b16 %v3612
        %v3677 = vunpack.c.l.b16 %v3613
        %v3678 = vunpack.c.l.b16 %v3614
        %v3679 = vunpack.c.l.b16 %v3615
        %v3680 = vunpack.c.l.b16 %v3616
        %v3681 = vunpack.c.l.b16 %v3617
        %v3682 = vunpack.c.l.b16 %v3618
        %v3683 = vunpack.c.l.b16 %v3619
        %v3684 = vunpack.c.l.b16 %v3620
        %v3685 = vunpack.c.l.b16 %v3621
        %v3686 = vunpack.c.l.b16 %v3622
        %v3687 = vunpack.c.l.b16 %v3623
        %v3688 = vunpack.c.l.b16 %v3624
        %v3689 = vunpack.c.l.b16 %v3625
        %v3690 = vunpack.c.l.b16 %v3626
        %v3691 = vunpack.c.l.b16 %v3627
        %v3692 = vunpack.c.l.b16 %v3628
        %v3693 = vunpack.c.l.b16 %v3629
        %v3694 = vunpack.c.l.b16 %v3630
        %v3695 = vunpack.c.l.b16 %v3631
        %v3696 = vunpack.c.l.b16 %v3632
        %v3697 = vunpack.c.l.b16 %v3633
        %v3698 = vunpack.c.l.b16 %v3634
        %v3699 = vunpack.c.l.b16 %v3635
        %v3700 = vunpack.c.l.b16 %v3636
        %v3701 = vunpack.c.l.b16 %v3637
        %v3702 = vunpack.c.l.b16 %v3638
        %v3703 = vunpack.c.l.b16 %v3639
        %v3704 = vpack.c.b16 %v3673, %v3672
        %v3705 = vpack.c.b16 %v3675, %v3674
        %v3706 = vpack.c.b16 %v3677, %v3676
        %v3707 = vpack.c.b16 %v3679, %v3678
        %v3708 = vpack.c.b16 %v3681, %v3680
        %v3709 = vpack.c.b16 %v3683, %v3682
        %v3710 = vpack.c.b16 %v3685, %v3684
        %v3711 = vpack.c.b16 %v3687, %v3686
        %v3712 = vpack.c.b16 %v3689, %v3688
        %v3713 = vpack.c.b16 %v3691, %v3690
        %v3714 = vpack.c.b16 %v3693, %v3692
        %v3715 = vpack.c.b16 %v3695, %v3694
        %v3716 = vpack.c.b16 %v3697, %v3696
        %v3717 = vpack.c.b16 %v3699, %v3698
        %v3718 = vpack.c.b16 %v3701, %v3700
        %v3719 = vpack.c.b16 %v3703, %v3702
        %3736 = vmatprep.subr.bf16.mxu0 0
        %3737 = vmatpush1.bf16.msra.mxu0 %v3704
        %3738 = vmatprep.subr.bf16.mxu0 0
        %3739 = vmatpush1.bf16.msra.mxu0 %v3705
        %3740 = vmatprep.subr.bf16.mxu0 0
        %3741 = vmatpush1.bf16.msra.mxu0 %v3706
        %3742 = vmatprep.subr.bf16.mxu0 0
        %3743 = vmatpush1.bf16.msra.mxu0 %v3707
        %3744 = vmatprep.subr.bf16.mxu0 0
        %3745 = vmatpush1.bf16.msra.mxu0 %v3708
        %3746 = vmatprep.subr.bf16.mxu0 0
        %3747 = vmatpush1.bf16.msra.mxu0 %v3709
        %3748 = vmatprep.subr.bf16.mxu0 0
        %3749 = vmatpush1.bf16.msra.mxu0 %v3710
        %3750 = vmatprep.subr.bf16.mxu0 0
        %3751 = vmatpush1.bf16.msra.mxu0 %v3711
        %3752 = vmatprep.subr.bf16.mxu0 0
        %3753 = vmatpush1.bf16.msra.mxu0 %v3712
        %3754 = vmatprep.subr.bf16.mxu0 0
        %3755 = vmatpush1.bf16.msra.mxu0 %v3713
        %3756 = vmatprep.subr.bf16.mxu0 0
        %3757 = vmatpush1.bf16.msra.mxu0 %v3714
        %3758 = vmatprep.subr.bf16.mxu0 0
        %3759 = vmatpush1.bf16.msra.mxu0 %v3715
        %3760 = vmatprep.subr.bf16.mxu0 0
        %3761 = vmatpush1.bf16.msra.mxu0 %v3716
        %3762 = vmatprep.subr.bf16.mxu0 0
        %3763 = vmatpush1.bf16.msra.mxu0 %v3717
        %3764 = vmatprep.subr.bf16.mxu0 0
        %3765 = vmatpush1.bf16.msra.mxu0 %v3718
        %3766 = vmatprep.subr.bf16.mxu0 0
        %3767 = vmatpush1.bf16.msra.mxu0 %v3719
        %3768 = vmatprep.mubr.bf16.mxu0 %v2801
        %3769 = vmatmul.mubr.bf16.gmra.mrb[0].mxu0 %v2800
        %v3770 = vpop.f32.mrb[0].mxu0
        %v3771 = vadd.f32 0.0, %v3770
        %v3772 = vpop.f32.mrb[0].mxu0
        %v3773 = vpop.f32.mrb[0].mxu0
        %v3774 = vadd.f32 0.0, %v3773
        %v3775 = vpop.f32.mrb[0].mxu0
        %3776 = vmatprep.mubr.bf16.mxu0 %v2803
        %3777 = vmatmul.mubr.bf16.gmra.mrb[0].mxu0 %v2802
        %v3778 = vpop.f32.mrb[0].mxu0
        %v3779 = vadd.f32 0.0, %v3778
        %v3780 = vpop.f32.mrb[0].mxu0
        %v3781 = vpop.f32.mrb[0].mxu0
        %v3782 = vadd.f32 0.0, %v3781
        %v3783 = vpop.f32.mrb[0].mxu0
        %3784 = vmatprep.mubr.bf16.mxu0 %v3200
        %3785 = vmatmul.mubr.bf16.gmra.mrb[0].mxu0 %v3199
        %v3786 = vpop.f32.mrb[0].mxu0
        %v3787 = vadd.f32 0.0, %v3786
        %v3788 = vpop.f32.mrb[0].mxu0
        %v3789 = vpop.f32.mrb[0].mxu0
        %v3790 = vadd.f32 0.0, %v3789
        %v3791 = vpop.f32.mrb[0].mxu0
        %3792 = vmatprep.mubr.bf16.mxu0 %v2797
        %3793 = vmatmul.mubr.bf16.gmra.mrb[0].mxu0 %v2797
        %v3794 = vpop.f32.mrb[0].mxu0
        %v3795 = vadd.f32 0.0, %v3794
        %v3796 = vpop.f32.mrb[0].mxu0
        %v3797 = vpop.f32.mrb[0].mxu0
        %v3798 = vadd.f32 0.0, %v3797
        %v3799 = vpop.f32.mrb[0].mxu0
        %3800 = vdwg.mxu0
        %v3801 = vadd.f32 %v3599, %v3771
        %v3802 = vadd.f32 %v3600, %v3774
        %v3803 = vadd.f32 %v3601, %v3779
        %v3804 = vadd.f32 %v3602, %v3782
        %v3805 = vadd.f32 %v3603, %v3787
        %v3806 = vadd.f32 %v3604, %v3790
        %v3807 = vadd.f32 %v3605, %v3795
        %v3808 = vadd.f32 %v3606, %v3798
        %v3809 = vld [vmem:[%s4] sm:$0x1]
        %v3811 = vlaneseq
        %v3812 = vshrl.u32 %v3811, 7
        %v3813 = vsub.s32 0, %v3812
        %v3814 = vrot.slane %v3809, %v3813
        %v3816 = vadd.f32 %v3801, %v3814
        %v3817 = vadd.f32 %v3802, %v3814
        %v3818 = vadd.f32 %v3803, %v3814
        %v3819 = vadd.f32 %v3804, %v3814
        %v3820 = vadd.f32 %v3805, %v3814
        %v3821 = vadd.f32 %v3806, %v3814
        %v3822 = vadd.f32 %v3807, %v3814
        %v3823 = vadd.f32 %v3808, %v3814
        %v3824 = vmax.f32 %v3816, 0.0
        %v3825 = vmax.f32 %v3817, 0.0
        %v3826 = vmax.f32 %v3818, 0.0
        %v3827 = vmax.f32 %v3819, 0.0
        %v3828 = vmax.f32 %v3820, 0.0
        %v3829 = vmax.f32 %v3821, 0.0
        %v3830 = vmax.f32 %v3822, 0.0
        %v3831 = vmax.f32 %v3823, 0.0
        %v3832 = vmax.f32 %v3824, %v3825
        %v3833 = vmax.f32 %v3828, %v3829
        %v3834 = vmax.f32 %v3832, %v3826
        %v3835 = vmax.f32 %v3833, %v3830
        %v3836 = vmax.f32 %v3834, %v3827
        %v3837 = vmax.f32 %v3835, %v3831
        %3840 = vrot.lane.b32.xlu0 %v3836, 112
        %v3841 = vpop.permute.xlu0 %3840
        %3842 = vrot.lane.b32.xlu0 %v3837, 112
        %v3843 = vpop.permute.xlu0 %3842
        %v3846 = vmax.f32 %v3836, %v3841
        %v3847 = vmax.f32 %v3837, %v3843
        %3848 = vrot.lane.b32.xlu0 %v3836, 96
        %v3849 = vpop.permute.xlu0 %3848
        %3850 = vrot.lane.b32.xlu0 %v3837, 96
        %v3851 = vpop.permute.xlu0 %3850
        %v3854 = vmax.f32 %v3846, %v3849
        %v3855 = vmax.f32 %v3847, %v3851
        %3856 = vrot.lane.b32.xlu0 %v3836, 80
        %v3857 = vpop.permute.xlu0 %3856
        %3858 = vrot.lane.b32.xlu0 %v3837, 80
        %v3859 = vpop.permute.xlu0 %3858
        %v3862 = vmax.f32 %v3854, %v3857
        %v3863 = vmax.f32 %v3855, %v3859
        %v3864 = vpack.c.bf16 %v3862, %v3862
        %v3865 = vpack.c.bf16 %v3863, %v3863
        %v3866 = vld [vmem:[%s5] sm:$0xf]
        %v3867 = vld [vmem:[%s5 + $0x4] sm:$0xf]
        %v3868 = vld [vmem:[%s5 + $0x8] sm:$0xf]
        %v3869 = vld [vmem:[%s5 + $0xc] sm:$0xf]
        %v3870 = vld [vmem:[%s5 + $0x10] sm:$0xf]
        %v3871 = vld [vmem:[%s5 + $0x14] sm:$0xf]
        %v3872 = vld [vmem:[%s5 + $0x18] sm:$0xf]
        %v3873 = vld [vmem:[%s5 + $0x1c] sm:$0xf]
        %v3874 = vld [vmem:[%s5 + $0x20] sm:$0xf]
        %v3875 = vld [vmem:[%s5 + $0x24] sm:$0xf]
        %v3876 = vld [vmem:[%s5 + $0x28] sm:$0xf]
        %v3877 = vld [vmem:[%s5 + $0x2c] sm:$0xf]
        %v3878 = vld [vmem:[%s5 + $0x30] sm:$0xf]
        %v3879 = vld [vmem:[%s5 + $0x34] sm:$0xf]
        %v3880 = vld [vmem:[%s5 + $0x38] sm:$0xf]
        %v3881 = vld [vmem:[%s5 + $0x3c] sm:$0xf]
        %v3882 = vld [vmem:[%s5 + $0x40] sm:$0xf]
        %v3883 = vld [vmem:[%s5 + $0x44] sm:$0xf]
        %v3884 = vld [vmem:[%s5 + $0x48] sm:$0xf]
        %v3885 = vld [vmem:[%s5 + $0x4c] sm:$0xf]
        %v3886 = vld [vmem:[%s5 + $0x50] sm:$0xf]
        %v3887 = vld [vmem:[%s5 + $0x54] sm:$0xf]
        %v3888 = vld [vmem:[%s5 + $0x58] sm:$0xf]
        %v3889 = vld [vmem:[%s5 + $0x5c] sm:$0xf]
        %v3890 = vld [vmem:[%s5 + $0x60] sm:$0xf]
        %v3891 = vld [vmem:[%s5 + $0x64] sm:$0xf]
        %v3892 = vld [vmem:[%s5 + $0x68] sm:$0xf]
        %v3893 = vld [vmem:[%s5 + $0x6c] sm:$0xf]
        %v3894 = vld [vmem:[%s5 + $0x70] sm:$0xf]
        %v3895 = vld [vmem:[%s5 + $0x74] sm:$0xf]
        %v3896 = vld [vmem:[%s5 + $0x78] sm:$0xf]
        %v3897 = vld [vmem:[%s5 + $0x7c] sm:$0xf]
        %v3898 = vld [vmem:[%s6] sm:$0x1]
        %v3900 = vlaneseq
        %v3901 = vshrl.u32 %v3900, 7
        %v3902 = vsub.s32 0, %v3901
        %v3903 = vrot.slane %v3898, %v3902
        %v3937 = vunpack.c.l.b16 %v3866
        %v3938 = vunpack.c.l.b16 %v3867
        %v3939 = vunpack.c.l.b16 %v3868
        %v3940 = vunpack.c.l.b16 %v3869
        %v3941 = vunpack.c.l.b16 %v3870
        %v3942 = vunpack.c.l.b16 %v3871
        %v3943 = vunpack.c.l.b16 %v3872
        %v3944 = vunpack.c.l.b16 %v3873
        %v3945 = vunpack.c.l.b16 %v3874
        %v3946 = vunpack.c.l.b16 %v3875
        %v3947 = vunpack.c.l.b16 %v3876
        %v3948 = vunpack.c.l.b16 %v3877
        %v3949 = vunpack.c.l.b16 %v3878
        %v3950 = vunpack.c.l.b16 %v3879
        %v3951 = vunpack.c.l.b16 %v3880
        %v3952 = vunpack.c.l.b16 %v3881
        %v3953 = vunpack.c.l.b16 %v3882
        %v3954 = vunpack.c.l.b16 %v3883
        %v3955 = vunpack.c.l.b16 %v3884
        %v3956 = vunpack.c.l.b16 %v3885
        %v3957 = vunpack.c.l.b16 %v3886
        %v3958 = vunpack.c.l.b16 %v3887
        %v3959 = vunpack.c.l.b16 %v3888
        %v3960 = vunpack.c.l.b16 %v3889
        %v3961 = vunpack.c.l.b16 %v3890
        %v3962 = vunpack.c.l.b16 %v3891
        %v3963 = vunpack.c.l.b16 %v3892
        %v3964 = vunpack.c.l.b16 %v3893
        %v3965 = vunpack.c.l.b16 %v3894
        %v3966 = vunpack.c.l.b16 %v3895
        %v3967 = vunpack.c.l.b16 %v3896
        %v3968 = vunpack.c.l.b16 %v3897
        %v3969 = vpack.c.b16 %v3938, %v3937
        %v3970 = vpack.c.b16 %v3940, %v3939
        %v3971 = vpack.c.b16 %v3942, %v3941
        %v3972 = vpack.c.b16 %v3944, %v3943
        %v3973 = vpack.c.b16 %v3946, %v3945
        %v3974 = vpack.c.b16 %v3948, %v3947
        %v3975 = vpack.c.b16 %v3950, %v3949
        %v3976 = vpack.c.b16 %v3952, %v3951
        %v3977 = vpack.c.b16 %v3954, %v3953
        %v3978 = vpack.c.b16 %v3956, %v3955
        %v3979 = vpack.c.b16 %v3958, %v3957
        %v3980 = vpack.c.b16 %v3960, %v3959
        %v3981 = vpack.c.b16 %v3962, %v3961
        %v3982 = vpack.c.b16 %v3964, %v3963
        %v3983 = vpack.c.b16 %v3966, %v3965
        %v3984 = vpack.c.b16 %v3968, %v3967
        %4001 = vmatprep.subr.bf16.mxu0 0
        %4002 = vmatpush1.bf16.msra.mxu0 %v3969
        %4003 = vmatprep.subr.bf16.mxu0 0
        %4004 = vmatpush1.bf16.msra.mxu0 %v3970
        %4005 = vmatprep.subr.bf16.mxu0 0
        %4006 = vmatpush1.bf16.msra.mxu0 %v3971
        %4007 = vmatprep.subr.bf16.mxu0 0
        %4008 = vmatpush1.bf16.msra.mxu0 %v3972
        %4009 = vmatprep.subr.bf16.mxu0 0
        %4010 = vmatpush1.bf16.msra.mxu0 %v3973
        %4011 = vmatprep.subr.bf16.mxu0 0
        %4012 = vmatpush1.bf16.msra.mxu0 %v3974
        %4013 = vmatprep.subr.bf16.mxu0 0
        %4014 = vmatpush1.bf16.msra.mxu0 %v3975
        %4015 = vmatprep.subr.bf16.mxu0 0
        %4016 = vmatpush1.bf16.msra.mxu0 %v3976
        %4017 = vmatprep.subr.bf16.mxu0 0
        %4018 = vmatpush1.bf16.msra.mxu0 %v3977
        %4019 = vmatprep.subr.bf16.mxu0 0
        %4020 = vmatpush1.bf16.msra.mxu0 %v3978
        %4021 = vmatprep.subr.bf16.mxu0 0
        %4022 = vmatpush1.bf16.msra.mxu0 %v3979
        %4023 = vmatprep.subr.bf16.mxu0 0
        %4024 = vmatpush1.bf16.msra.mxu0 %v3980
        %4025 = vmatprep.subr.bf16.mxu0 0
        %4026 = vmatpush1.bf16.msra.mxu0 %v3981
        %4027 = vmatprep.subr.bf16.mxu0 0
        %4028 = vmatpush1.bf16.msra.mxu0 %v3982
        %4029 = vmatprep.subr.bf16.mxu0 0
        %4030 = vmatpush1.bf16.msra.mxu0 %v3983
        %4031 = vmatprep.subr.bf16.mxu0 0
        %4032 = vmatpush1.bf16.msra.mxu0 %v3984
        %4033 = vmatprep.mubr.bf16.mxu0 %v3865
        %4034 = vmatmul.mubr.bf16.gmra.mrb[0].mxu0 %v3864
        %v4035 = vpop.f32.mrb[0].mxu0
        %v4036 = vadd.f32 %v3903, %v4035
        %v4037 = vpop.f32.mrb[0].mxu0
        %v4038 = vpop.f32.mrb[0].mxu0
        %v4039 = vpop.f32.mrb[0].mxu0
        %4040 = vdwg.mxu0
        %v4041 = vmax.f32 %v4036, 0.0
        %v4042 = vpack.c.bf16 %v4041, %v4041
        %v4043 = vld [vmem:[%s7] sm:$0xf]
        %v4044 = vld [vmem:[%s7 + $0x4] sm:$0xf]
        %v4045 = vld [vmem:[%s7 + $0x8] sm:$0xf]
        %v4046 = vld [vmem:[%s7 + $0xc] sm:$0xf]
        %v4047 = vld [vmem:[%s7 + $0x10] sm:$0xf]
        %v4048 = vld [vmem:[%s7 + $0x14] sm:$0xf]
        %v4049 = vld [vmem:[%s7 + $0x18] sm:$0xf]
        %v4050 = vld [vmem:[%s7 + $0x1c] sm:$0xf]
        %v4051 = vld [vmem:[%s8] sm:$0x1]
        %v4053 = vlaneseq
        %v4054 = vshrl.u32 %v4053, 7
        %v4055 = vsub.s32 0, %v4054
        %v4056 = vrot.slane %v4051, %v4055
        %v4066 = vunpack.c.l.b16 %v4043
        %v4067 = vunpack.c.l.b16 %v4044
        %v4068 = vunpack.c.l.b16 %v4045
        %v4069 = vunpack.c.l.b16 %v4046
        %v4070 = vunpack.c.l.b16 %v4047
        %v4071 = vunpack.c.l.b16 %v4048
        %v4072 = vunpack.c.l.b16 %v4049
        %v4073 = vunpack.c.l.b16 %v4050
        %v4074 = vpack.c.b16 %v4067, %v4066
        %v4075 = vpack.c.b16 %v4069, %v4068
        %v4076 = vpack.c.b16 %v4071, %v4070
        %v4077 = vpack.c.b16 %v4073, %v4072
        %vm4082 = vcmask 523264
        %v4084 = vsel %vm4082, %v4042, 0
        %4086 = vmatprep.subr.bf16.mxu0 0
        %4087 = vmatpush1.bf16.msra.mxu0 %v4074
        %4088 = vmatprep.subr.bf16.mxu0 0
        %4089 = vmatpush1.bf16.msra.mxu0 %v4075
        %4090 = vmatprep.subr.bf16.mxu0 0
        %4091 = vmatpush1.bf16.msra.mxu0 %v4076
        %4092 = vmatprep.subr.bf16.mxu0 0
        %4093 = vmatpush1.bf16.msra.mxu0 %v4077
        %4094 = vmatprep.subr.bf16.mxu0 0
        %4095 = vmatpush1.bf16.msra.mxu0 0
        %4096 = vmatprep.subr.bf16.mxu0 0
        %4097 = vmatpush1.bf16.msra.mxu0 0
        %4098 = vmatprep.subr.bf16.mxu0 0
        %4099 = vmatpush1.bf16.msra.mxu0 0
        %4100 = vmatprep.subr.bf16.mxu0 0
        %4101 = vmatpush1.bf16.msra.mxu0 0
        %4102 = vmatprep.subr.bf16.mxu0 0
        %4103 = vmatpush1.bf16.msra.mxu0 0
        %4104 = vmatprep.subr.bf16.mxu0 0
        %4105 = vmatpush1.bf16.msra.mxu0 0
        %4106 = vmatprep.subr.bf16.mxu0 0
        %4107 = vmatpush1.bf16.msra.mxu0 0
        %4108 = vmatprep.subr.bf16.mxu0 0
        %4109 = vmatpush1.bf16.msra.mxu0 0
        %4110 = vmatprep.subr.bf16.mxu0 0
        %4111 = vmatpush1.bf16.msra.mxu0 0
        %4112 = vmatprep.subr.bf16.mxu0 0
        %4113 = vmatpush1.bf16.msra.mxu0 0
        %4114 = vmatprep.subr.bf16.mxu0 0
        %4115 = vmatpush1.bf16.msra.mxu0 0
        %4116 = vmatprep.subr.bf16.mxu0 0
        %4117 = vmatpush1.bf16.msra.mxu0 0
        %4118 = vmatprep.mubr.bf16.mxu0 0
        %4119 = vmatmul.mubr.bf16.gmra.mrb[0].mxu0 %v4084
        %v4120 = vpop.f32.mrb[0].mxu0
        %v4121 = vadd.f32 %v4056, %v4120
        %v4122 = vpop.f32.mrb[0].mxu0
        %v4123 = vpop.f32.mrb[0].mxu0
        %v4124 = vpop.f32.mrb[0].mxu0
        %4125 = vdwg.mxu0
        %v4126 = vmax.f32 %v4121, 0.0
        %v4127 = vpack.c.bf16 %v4126, %v4126
        %v4128 = vld [vmem:[%s9] sm:$0xf]
        %v4129 = vld [vmem:[%s9 + $0x4] sm:$0xf]
        %v4130 = vld [vmem:[%s9 + $0x8] sm:$0xf]
        %v4131 = vld [vmem:[%s9 + $0xc] sm:$0xf]
        %v4132 = vld [vmem:[%s10] sm:$0x1]
        %v4134 = vlaneseq
        %v4135 = vshrl.u32 %v4134, 7
        %v4136 = vsub.s32 0, %v4135
        %v4137 = vrot.slane %v4132, %v4136
        %v4143 = vunpack.c.l.b16 %v4128
        %v4144 = vunpack.c.l.b16 %v4129
        %v4145 = vunpack.c.l.b16 %v4130
        %v4146 = vunpack.c.l.b16 %v4131
        %v4147 = vpack.c.b16 %v4144, %v4143
        %v4148 = vpack.c.b16 %v4146, %v4145
        %v4152 = vsel %vm686, %v4127, 0
        %4154 = vmatprep.subr.bf16.mxu0 0
        %4155 = vmatpush1.bf16.msra.mxu0 %v4147
        %4156 = vmatprep.subr.bf16.mxu0 0
        %4157 = vmatpush1.bf16.msra.mxu0 %v4148
        %4158 = vmatprep.subr.bf16.mxu0 0
        %4159 = vmatpush1.bf16.msra.mxu0 0
        %4160 = vmatprep.subr.bf16.mxu0 0
        %4161 = vmatpush1.bf16.msra.mxu0 0
        %4162 = vmatprep.subr.bf16.mxu0 0
        %4163 = vmatpush1.bf16.msra.mxu0 0
        %4164 = vmatprep.subr.bf16.mxu0 0
        %4165 = vmatpush1.bf16.msra.mxu0 0
        %4166 = vmatprep.subr.bf16.mxu0 0
        %4167 = vmatpush1.bf16.msra.mxu0 0
        %4168 = vmatprep.subr.bf16.mxu0 0
        %4169 = vmatpush1.bf16.msra.mxu0 0
        %4170 = vmatprep.subr.bf16.mxu0 0
        %4171 = vmatpush1.bf16.msra.mxu0 0
        %4172 = vmatprep.subr.bf16.mxu0 0
        %4173 = vmatpush1.bf16.msra.mxu0 0
        %4174 = vmatprep.subr.bf16.mxu0 0
        %4175 = vmatpush1.bf16.msra.mxu0 0
        %4176 = vmatprep.subr.bf16.mxu0 0
        %4177 = vmatpush1.bf16.msra.mxu0 0
        %4178 = vmatprep.subr.bf16.mxu0 0
        %4179 = vmatpush1.bf16.msra.mxu0 0
        %4180 = vmatprep.subr.bf16.mxu0 0
        %4181 = vmatpush1.bf16.msra.mxu0 0
        %4182 = vmatprep.subr.bf16.mxu0 0
        %4183 = vmatpush1.bf16.msra.mxu0 0
        %4184 = vmatprep.subr.bf16.mxu0 0
        %4185 = vmatpush1.bf16.msra.mxu0 0
        %4186 = vmatprep.mubr.bf16.mxu0 0
        %4187 = vmatmul.mubr.bf16.gmra.mrb[0].mxu0 %v4152
        %v4188 = vpop.f32.mrb[0].mxu0
        %v4189 = vadd.f32 %v4137, %v4188
        %v4190 = vpop.f32.mrb[0].mxu0
        %v4191 = vpop.f32.mrb[0].mxu0
        %v4192 = vpop.f32.mrb[0].mxu0
        %4193 = vdwg.mxu0
        %4194 = vst [vmem:[%s558] sm:$0xff] %v4189
        %p4195 = scmp.lt.s32.totalorder %s22, 1
        %s4196 = scalar_select %p4195, %s22, 1
        %s4197 = smul.addr %s4196, 8
        %s4198 = scalar_lea.vmem %s11, %s4197
        // Predicated region
        $region103: #{model_synthetic_forward.1} parent=97 // pred_check
          %p4199 = pneg %p276
        $region104: #{model_synthetic_forward.1} parent=97 // pred_check_branch
          %4201 = sbr.rel (%p4199) target = $region106
        $region105: #{model_synthetic_forward.1} parent=97 // pred_region
          _
        $region106: #{model_synthetic_forward.1} parent=97 // pred_fallthru
          _
      $region98: #{model_synthetic_forward.1} parent=5 // pred_fallthru
        _
      %p4202 = scmp.le.s32.totalorder 2, %s17
      // Predicated region
      $region107: #{model_synthetic_forward.1} parent=5 // pred_check
        %p4203 = pneg %p4202
      $region108: #{model_synthetic_forward.1} parent=5 // pred_check_branch
        %4205 = sbr.rel (%p4203) target = $region110
      $region109: #{model_synthetic_forward.1} parent=5 // pred_region
        %s4206 = ssub.s32 %s17, 2
        // Predicated region
        $region111: #{model_synthetic_forward.1} parent=109 // pred_check
          %p4207 = pneg %p282
        $region112: #{model_synthetic_forward.1} parent=109 // pred_check_branch
          %4209 = sbr.rel (%p4207) target = $region114
        $region113: #{model_synthetic_forward.1} parent=109 // pred_region
          %p4210 = scmp.lt.s32.totalorder %s23, 1
          %s4211 = scalar_select %p4210, %s23, 1
          %s4212 = smul.addr %s4211, 8
          %s4213 = scalar_lea.vmem %s11, %s4212
        $region114: #{model_synthetic_forward.1} parent=109 // pred_fallthru
          _
      $region110: #{model_synthetic_forward.1} parent=5 // pred_fallthru
        _
    $region6: #{model_synthetic_forward.1} parent=1 // loop_footer
      %s21 = sadd.s32 1, %s17
    $region7: #{model_synthetic_forward.1} parent=1 // loop_footer_branch
      %16 = sbr.rel target = $region3
    $region8: #{model_synthetic_forward.1} parent=1 // loop_exit
      _

</llo_original>
